<compile_context>
chip_gen: v7x
topology: tpu7x:2x2x1
jax: 0.10.0
libtpu: 0.0.40
codegen_flags: <defaults>
</compile_context>

<pallas_src>
import functools
import math

import numpy as np
import jax
import jax.numpy as jnp
from jax import lax
from jax.experimental import pallas as pl
from jax.experimental.pallas import tpu as pltpu

# ----------------------------- configuration ------------------------------
DATA_WIDTH = 416           # config.DATA_WIDTH
NUM_CLASSES = 3
V = 5 + NUM_CLASSES        # per-anchor vector: [p, tx, ty, tw, th, c0, c1, c2]
NUM_ANCHORS = 3
SCALES = (13, 26, 52)

# standard YOLOv3 anchors (w, h) per grid size
ANCHORS = {
    13: ((116.0, 90.0), (156.0, 198.0), (373.0, 326.0)),
    26: ((30.0, 61.0), (62.0, 45.0), (59.0, 119.0)),
    52: ((10.0, 13.0), (16.0, 30.0), (33.0, 23.0)),
}

# Component-major, sublane-tile-aligned head-row layout (built at prep time).
# Kernel-weight row (row0 + a) holds component `v` of anchor `a`.  tx (v=1) is
# never used by the reference _parse, so it is dropped; pad rows keep every
# (3, HW) component slab inside one (8,128) sublane tile (no tile-crossing
# slices in the kernel).
ROW_P, ROW_TY = 0, 3            # sublane tile 0
ROW_TW, ROW_TH = 8, 11          # sublane tile 1
ROW_C0, ROW_C1 = 16, 19         # sublane tile 2
ROW_C2 = 24                     # sublane tile 3
HEAD_ROWS = 32                  # 4 sublane tiles; 11 zero pad rows
_COMPONENT_ROWS = ((0, ROW_P), (2, ROW_TY), (3, ROW_TW), (4, ROW_TH),
                   (5, ROW_C0), (6, ROW_C1), (7, ROW_C2))


# --------------------- fused head + filter + parse kernel ------------------
def _detector_kernel(x13_ref, x26_ref, x52_ref, w_ref, b_ref,
                     o13_ref, o26_ref, o52_ref, *, scale_meta, logit_thresh):
    """All three scales of: 1x1-conv head (MXU) + _filter/_parse math.

    Output per scale: (1, 8, 3, HW) with rows
    [n, sigmoid(p), cx, cy, w, h, class_index, valid], lane-dense along HW.
    """
    n_f = pl.program_id(0).astype(jnp.float32)
    x_refs = (x13_ref, x26_ref, x52_ref)
    o_refs = (o13_ref, o26_ref, o52_ref)

    for s, (g, t_over_case, aw, ah) in enumerate(scale_meta):   # static, 3 iters
        hw = g * g
        # 1x1-conv detection head on the MXU: (32, C)bf16 @ (C, HW)bf16 -> f32.
        # bf16 cast of the feature map happens here (VPU, hidden under the DMA).
        x = x_refs[s][0].astype(jnp.bfloat16)
        head = jnp.dot(w_ref[s], x,
                       preferred_element_type=jnp.float32) + b_ref[s]   # (32, HW)

        # Component-major all-anchor slabs, each (3, HW), sublane-tile aligned.
        p = head[ROW_P:ROW_P + 3]
        ty = head[ROW_TY:ROW_TY + 3]      # reference uses vecs[:,2] for BOTH cx & cy
        tw = head[ROW_TW:ROW_TW + 3]
        th = head[ROW_TH:ROW_TH + 3]
        c0 = head[ROW_C0:ROW_C0 + 3]
        c1 = head[ROW_C1:ROW_C1 + 3]
        c2 = head[ROW_C2:ROW_C2 + 3]

        # Spatial decomposition of lane index sidx = y*g + x via float
        # reciprocal-multiply (+0.5 guard keeps the floor exact for sidx < g*g).
        sidx = lax.broadcasted_iota(jnp.int32, (1, hw), 1).astype(jnp.float32)
        iy = jnp.floor((sidx + 0.5) * (1.0 / g))
        ix = sidx - iy * g

        # Per-anchor (sublane) constants: anchors[a] / case, built from iota.
        arow = lax.broadcasted_iota(jnp.int32, (3, 1), 0)
        aw_col = jnp.where(arow == 0, aw[0], jnp.where(arow == 1, aw[1], aw[2]))
        ah_col = jnp.where(arow == 0, ah[0], jnp.where(arow == 1, ah[1], ah[2]))

        # Store each output row as soon as it is produced (short live ranges).
        o = o_refs[s]
        o[0, 0] = jnp.broadcast_to(n_f, (3, hw))                        # n
        o[0, 1] = pl.reciprocal(1.0 + jnp.exp(-p), approx=True)         # sigmoid(p)
        o[0, 2] = (ix + ty) * t_over_case                               # cx
        o[0, 3] = (iy + ty) * t_over_case                               # cy
        o[0, 4] = aw_col * jnp.exp(tw)                                  # w
        o[0, 5] = ah_col * jnp.exp(th)                                  # h
        cmax = jnp.maximum(jnp.maximum(c0, c1), c2)
        o[0, 6] = jnp.where(c0 >= cmax, 0.0,
                            jnp.where(c1 >= cmax, 1.0, 2.0))            # argmax(softmax)
        o[0, 7] = (p > logit_thresh).astype(jnp.float32)                # objectness mask


# ----------------------- one-time parameter preparation --------------------
def prepare_detector_params(raw_params):
    """Hoisted weight prep: reorder each scale's 1x1-conv head (torch layout,
    out channel = a*V + v) into the kernel's component-major, tile-aligned row
    layout, cast to bf16 and stack across scales.

    Returns (w_stacked (3, HEAD_ROWS, C) bf16, b_stacked (3, HEAD_ROWS, 1) f32).
    """
    ws, bs, c_ref = [], [], None
    for g in SCALES:
        w_np = np.asarray(raw_params[g]["w"], np.float32)          # (C, 3V)
        b_np = np.asarray(raw_params[g]["b"], np.float32).reshape(-1)
        c = w_np.shape[0]
        if c_ref is None:
            c_ref = c
        assert c == c_ref, "fused kernel assumes equal head input channels per scale"
        wk = np.zeros((HEAD_ROWS, c), np.float32)
        bk = np.zeros((HEAD_ROWS,), np.float32)
        for v, row0 in _COMPONENT_ROWS:
            for a in range(NUM_ANCHORS):
                src = a * V + v
                wk[row0 + a] = w_np[:, src]
                bk[row0 + a] = b_np[src]
        ws.append(wk)
        bs.append(bk)
    w_stacked = jnp.asarray(np.stack(ws)).astype(jnp.bfloat16)
    b_stacked = jnp.asarray(np.stack(bs)).reshape(len(SCALES), HEAD_ROWS, 1)
    return w_stacked, b_stacked


# ----------------------------- fused pallas call ---------------------------
def fused_detector_heads(feats, w_stacked, b_stacked, thresh_value, anchors, case):
    """Single pallas_call for all scales. Returns {g: (N, 8, 3, g*g) f32}."""
    N = feats[SCALES[0]].shape[0]
    C = w_stacked.shape[-1]
    xs = []
    for g in SCALES:
        x = feats[g]
        assert x.shape == (N, C, g, g)
        xs.append(x.reshape(N, C, g * g))      # free reshape; no transpose / cast

    logit_thresh = float(math.log(thresh_value / (1.0 - thresh_value)))
    scale_meta = tuple(
        (g, float(DATA_WIDTH / g / case),
         tuple(float(a[0] / case) for a in anchors[g]),
         tuple(float(a[1] / case) for a in anchors[g]))
        for g in SCALES)

    kernel = functools.partial(_detector_kernel, scale_meta=scale_meta,
                               logit_thresh=logit_thresh)

    in_specs = [pl.BlockSpec((1, C, g * g), lambda i: (i, 0, 0)) for g in SCALES]
    in_specs += [
        pl.BlockSpec((len(SCALES), HEAD_ROWS, C), lambda i: (0, 0, 0)),
        pl.BlockSpec((len(SCALES), HEAD_ROWS, 1), lambda i: (0, 0, 0)),
    ]
    out_shape = tuple(jax.ShapeDtypeStruct((N, 8, NUM_ANCHORS, g * g), jnp.float32)
                      for g in SCALES)
    out_specs = tuple(pl.BlockSpec((1, 8, NUM_ANCHORS, g * g),
                                   lambda i: (i, 0, 0, 0)) for g in SCALES)

    outs = pl.pallas_call(
        kernel,
        out_shape=out_shape,
        grid=(N,),
        in_specs=in_specs,
        out_specs=out_specs,
        compiler_params=pltpu.CompilerParams(
            dimension_semantics=("parallel",)),   # batch axis; shardable on v7x
    )(*xs, w_stacked, b_stacked)
    return dict(zip(SCALES, outs))


def _gather_boxes(dense):
    """Eager-mode equivalent of mask.nonzero() / vecs[mask]: gather only the
    surviving boxes directly from the kernel layout and restore the reference
    (n, y, x, a) row order per scale; concatenate scales 13, 26, 52."""
    boxes_per_scale = []
    for g in SCALES:
        d = dense[g]                                   # (N, 8, 3, g*g)
        hw = g * g
        valid = d[:, 7] > 0.5                          # (N, 3, HW)
        n_i, a_i, s_i = jnp.nonzero(valid)             # dynamic-shape, eager only
        cols = d[n_i[:, None], jnp.arange(7)[None, :], a_i[:, None], s_i[:, None]]
        order = jnp.argsort(n_i * (hw * NUM_ANCHORS) + s_i * NUM_ANCHORS + a_i)
        boxes_per_scale.append(cols[order])
    return jnp.concatenate(boxes_per_scale, axis=0)


def detector_forward(feats, prepped_params, thresh_value, anchors, case,
                     *, return_dense=False):
    """JAX/Pallas equivalent of Detector.forward."""
    w_stacked, b_stacked = prepped_params
    dense = fused_detector_heads(feats, w_stacked, b_stacked,
                                 thresh_value, anchors, case)
    boxes = _gather_boxes(dense)
    # TODO(synk): nms(boxes, 0.5, mode='inter') is a data-dependent sequential
    # suppression loop with no clean Pallas equivalent; boxes are un-suppressed.
    return (boxes, dense) if return_dense else boxes


# ------------------------- pure-JAX reference mirror -----------------------
def _reference_dense(feats, raw_params, thresh_value, anchors, case):
    """Pure-JAX mirror of Detector._filter/_parse (same bf16 head matmul),
    emitted in the kernel's (N, 8, 3, HW) layout for comparison."""
    dense = {}
    for g in SCALES:
        x = feats[g]
        w = raw_params[g]["w"]
        b = jnp.reshape(raw_params[g]["b"], (-1,))
        N, C, H, W = x.shape
        hw = H * W
        head = jnp.einsum("vc,nci->nvi",
                          jnp.transpose(w).astype(jnp.bfloat16),
                          x.reshape(N, C, hw).astype(jnp.bfloat16),
                          preferred_element_type=jnp.float32) + b.reshape(1, -1, 1)
        head = head.reshape(N, NUM_ANCHORS, V, hw)
        p, ty, tw, th = head[:, :, 0], head[:, :, 2], head[:, :, 3], head[:, :, 4]
        cls = head[:, :, 5:]
        sidx = jnp.arange(hw)
        iy = (sidx // g).astype(jnp.float32).reshape(1, 1, hw)
        ix = (sidx % g).astype(jnp.float32).reshape(1, 1, hw)
        t = DATA_WIDTH / g
        aw = jnp.array([a[0] for a in anchors[g]], jnp.float32).reshape(1, NUM_ANCHORS, 1)
        ah = jnp.array([a[1] for a in anchors[g]], jnp.float32).reshape(1, NUM_ANCHORS, 1)
        sig_p = jax.nn.sigmoid(p)
        n_col = jnp.broadcast_to(jnp.arange(N, dtype=jnp.float32).reshape(N, 1, 1),
                                 p.shape)
        cls_idx = jnp.argmax(jax.nn.softmax(cls, axis=2), axis=2).astype(jnp.float32)
        dense[g] = jnp.stack([
            n_col, sig_p,
            (ix + ty) * t / case, (iy + ty) * t / case,
            aw * jnp.exp(tw) / case, ah * jnp.exp(th) / case,
            cls_idx, (sig_p > thresh_value).astype(jnp.float32)], axis=1)
    return dense


# ----------------------------------- main ----------------------------------
if __name__ == "__main__":
    key = jax.random.PRNGKey(0)
    N, CIN = 2, 32
    COUT = NUM_ANCHORS * V
    keys = jax.random.split(key, 3 * len(SCALES))

    # TODO(synk): the Yolov3 backbone + WEIGHT_PATH state_dict from the
    # reference are unavailable; deterministic random 1x1-conv heads per scale
    # stand in for `self.net(input)`'s final detection layers.
    feats, raw_params = {}, {}
    for i, g in enumerate(SCALES):
        feats[g] = 0.5 * jax.random.normal(keys[3 * i], (N, CIN, g, g), jnp.float32)
        raw_params[g] = {
            "w": 0.1 * jax.random.normal(keys[3 * i + 1], (CIN, COUT), jnp.float32),
            "b": 0.1 * jax.random.normal(keys[3 * i + 2], (1, COUT), jnp.float32),
        }

    thresh, case = 0.55, 1.0
    prepped = prepare_detector_params(raw_params)      # one-time weight prep

    boxes, dense_kernel = detector_forward(feats, prepped, thresh, ANCHORS, case,
                                           return_dense=True)
    boxes = jax.block_until_ready(boxes)
    assert boxes.ndim == 2 and boxes.shape[1] == 7

    # Correctness check against a pure-JAX mirror of _filter/_parse.
    dense_ref = _reference_dense(feats, raw_params, thresh, ANCHORS, case)
    for g in SCALES:
        got = np.asarray(dense_kernel[g])
        ref = np.asarray(dense_ref[g])
        assert np.allclose(got[:, :6], ref[:, :6], rtol=2e-2, atol=2e-2), \
            f"scale {g}: continuous columns mismatch"
        mismatch = float(np.mean(got[:, 6:] != ref[:, 6:]))
        assert mismatch <= 1e-3, f"scale {g}: class/valid mismatch rate {mismatch}"

    print("KERNEL_OK")
</pallas_src>

<mosaic_0001>
module attributes {stable_mosaic.version = 11 : i64} {
  func.func @_detector_kernel(%arg0: i32, %arg1: memref<1x32x169xf32, #tpu.memory_space<vmem>>, %arg2: memref<1x32x676xf32, #tpu.memory_space<vmem>>, %arg3: memref<1x32x2704xf32, #tpu.memory_space<vmem>>, %arg4: memref<3x32x32xbf16, #tpu.memory_space<vmem>>, %arg5: memref<3x32x1xf32, #tpu.memory_space<vmem>>, %arg6: memref<1x8x3x169xf32, #tpu.memory_space<vmem>>, %arg7: memref<1x8x3x676xf32, #tpu.memory_space<vmem>>, %arg8: memref<1x8x3x2704xf32, #tpu.memory_space<vmem>>) attributes {dimension_semantics = [#tpu.dimension_semantics<parallel>], iteration_bounds = array<i64: 2>, scalar_prefetch = 0 : i64, scratch_operands = 0 : i64, tpu.core_type = #tpu.core_type<tc>, window_params = [{transform_indices = @transform_0, window_bounds = array<i64: 1, 32, 169>}, {transform_indices = @transform_1, window_bounds = array<i64: 1, 32, 676>}, {transform_indices = @transform_2, window_bounds = array<i64: 1, 32, 2704>}, {pipeline_mode = #tpu.pipeline_mode<synchronous>, transform_indices = @transform_3, window_bounds = array<i64: 3, 32, 32>}, {pipeline_mode = #tpu.pipeline_mode<synchronous>, transform_indices = @transform_4, window_bounds = array<i64: 3, 32, 1>}, {transform_indices = @transform_5, window_bounds = array<i64: 1, 8, 3, 169>}, {transform_indices = @transform_6, window_bounds = array<i64: 1, 8, 3, 676>}, {transform_indices = @transform_7, window_bounds = array<i64: 1, 8, 3, 2704>}]} {
    %0 = arith.sitofp %arg0 : i32 to f32
    %c0 = arith.constant 0 : index
    %c0_0 = arith.constant 0 : index
    %c0_1 = arith.constant 0 : index
    %1 = vector.load %arg1[%c0, %c0_0, %c0_1] : memref<1x32x169xf32, #tpu.memory_space<vmem>>, vector<1x32x169xf32>
    %2 = vector.shape_cast %1 : vector<1x32x169xf32> to vector<32x169xf32>
    %3 = arith.truncf %2 : vector<32x169xf32> to vector<32x169xbf16>
    %c0_2 = arith.constant 0 : index
    %c0_3 = arith.constant 0 : index
    %c0_4 = arith.constant 0 : index
    %4 = vector.load %arg4[%c0_2, %c0_3, %c0_4] : memref<3x32x32xbf16, #tpu.memory_space<vmem>>, vector<1x32x32xbf16>
    %5 = vector.shape_cast %4 : vector<1x32x32xbf16> to vector<32x32xbf16>
    %cst = arith.constant dense<0.000000e+00> : vector<32x169xf32>
    %6 = tpu.matmul %5, %3, %cst {dimension_numbers = #tpu.dot_dimension_numbers<[1], [0], [0], [1], [0, 0, 1, 1], [], []>} : vector<32x32xbf16>, vector<32x169xbf16>, vector<32x169xf32> -> vector<32x169xf32>
    %c0_5 = arith.constant 0 : index
    %c0_6 = arith.constant 0 : index
    %c0_7 = arith.constant 0 : index
    %7 = vector.load %arg5[%c0_5, %c0_6, %c0_7] : memref<3x32x1xf32, #tpu.memory_space<vmem>>, vector<1x32x1xf32>
    %8 = vector.shape_cast %7 : vector<1x32x1xf32> to vector<32x1xf32>
    %9 = vector.broadcast %8 : vector<32x1xf32> to vector<32x169xf32>
    %10 = arith.addf %6, %9 : vector<32x169xf32>
    %11 = vector.extract_strided_slice %10 {offsets = [0, 0], sizes = [3, 169], strides = [1, 1]} : vector<32x169xf32> to vector<3x169xf32>
    %12 = vector.extract_strided_slice %10 {offsets = [3, 0], sizes = [3, 169], strides = [1, 1]} : vector<32x169xf32> to vector<3x169xf32>
    %13 = vector.extract_strided_slice %10 {offsets = [8, 0], sizes = [3, 169], strides = [1, 1]} : vector<32x169xf32> to vector<3x169xf32>
    %14 = vector.extract_strided_slice %10 {offsets = [11, 0], sizes = [3, 169], strides = [1, 1]} : vector<32x169xf32> to vector<3x169xf32>
    %15 = vector.extract_strided_slice %10 {offsets = [16, 0], sizes = [3, 169], strides = [1, 1]} : vector<32x169xf32> to vector<3x169xf32>
    %16 = vector.extract_strided_slice %10 {offsets = [19, 0], sizes = [3, 169], strides = [1, 1]} : vector<32x169xf32> to vector<3x169xf32>
    %17 = vector.extract_strided_slice %10 {offsets = [24, 0], sizes = [3, 169], strides = [1, 1]} : vector<32x169xf32> to vector<3x169xf32>
    %18 = tpu.iota {dimensions = array<i32: 1>} : vector<1x169xi32>
    %19 = arith.sitofp %18 : vector<1x169xi32> to vector<1x169xf32>
    %cst_8 = arith.constant 5.000000e-01 : f32
    %20 = vector.broadcast %cst_8 : f32 to vector<1x169xf32>
    %21 = arith.addf %19, %20 : vector<1x169xf32>
    %cst_9 = arith.constant 0.0769230798 : f32
    %22 = vector.broadcast %cst_9 : f32 to vector<1x169xf32>
    %23 = arith.mulf %21, %22 : vector<1x169xf32>
    %24 = math.floor %23 : vector<1x169xf32>
    %cst_10 = arith.constant 1.300000e+01 : f32
    %25 = vector.broadcast %cst_10 : f32 to vector<1x169xf32>
    %26 = arith.mulf %24, %25 : vector<1x169xf32>
    %27 = arith.subf %19, %26 : vector<1x169xf32>
    %28 = tpu.iota {dimensions = array<i32: 0>} : vector<3x1xi32>
    %c0_i32 = arith.constant 0 : i32
    %29 = vector.broadcast %c0_i32 : i32 to vector<3x1xi32>
    %30 = arith.cmpi eq, %28, %29 : vector<3x1xi32>
    %c1_i32 = arith.constant 1 : i32
    %31 = vector.broadcast %c1_i32 : i32 to vector<3x1xi32>
    %32 = arith.cmpi eq, %28, %31 : vector<3x1xi32>
    %cst_11 = arith.constant 1.560000e+02 : f32
    %cst_12 = arith.constant 3.730000e+02 : f32
    %33 = vector.broadcast %cst_11 : f32 to vector<3x1xf32>
    %34 = vector.broadcast %cst_12 : f32 to vector<3x1xf32>
    %35 = arith.select %32, %33, %34 : vector<3x1xi1>, vector<3x1xf32>
    %cst_13 = arith.constant 1.160000e+02 : f32
    %36 = vector.broadcast %cst_13 : f32 to vector<3x1xf32>
    %37 = arith.select %30, %36, %35 : vector<3x1xi1>, vector<3x1xf32>
    %c0_i32_14 = arith.constant 0 : i32
    %38 = vector.broadcast %c0_i32_14 : i32 to vector<3x1xi32>
    %39 = arith.cmpi eq, %28, %38 : vector<3x1xi32>
    %c1_i32_15 = arith.constant 1 : i32
    %40 = vector.broadcast %c1_i32_15 : i32 to vector<3x1xi32>
    %41 = arith.cmpi eq, %28, %40 : vector<3x1xi32>
    %cst_16 = arith.constant 1.980000e+02 : f32
    %cst_17 = arith.constant 3.260000e+02 : f32
    %42 = vector.broadcast %cst_16 : f32 to vector<3x1xf32>
    %43 = vector.broadcast %cst_17 : f32 to vector<3x1xf32>
    %44 = arith.select %41, %42, %43 : vector<3x1xi1>, vector<3x1xf32>
    %cst_18 = arith.constant 9.000000e+01 : f32
    %45 = vector.broadcast %cst_18 : f32 to vector<3x1xf32>
    %46 = arith.select %39, %45, %44 : vector<3x1xi1>, vector<3x1xf32>
    %47 = vector.broadcast %0 : f32 to vector<3x169xf32>
    %c0_19 = arith.constant 0 : index
    %c0_20 = arith.constant 0 : index
    %c0_21 = arith.constant 0 : index
    %c0_22 = arith.constant 0 : index
    %48 = vector.load %arg6[%c0_19, %c0_20, %c0_21, %c0_22] : memref<1x8x3x169xf32, #tpu.memory_space<vmem>>, vector<1x1x3x169xf32>
    %49 = vector.shape_cast %48 : vector<1x1x3x169xf32> to vector<3x169xf32>
    %50 = vector.shape_cast %47 : vector<3x169xf32> to vector<1x1x3x169xf32>
    tpu.vector_store %arg6[%c0_19, %c0_20, %c0_21, %c0_22], %50 {strides = array<i32>} : memref<1x8x3x169xf32, #tpu.memory_space<vmem>>, vector<1x1x3x169xf32>,
    %cst_23 = arith.constant 0.000000e+00 : f32
    %51 = vector.broadcast %cst_23 : f32 to vector<3x169xf32>
    %52 = arith.subf %51, %11 : vector<3x169xf32>
    %53 = math.exp %52 : vector<3x169xf32>
    %cst_24 = arith.constant 1.000000e+00 : f32
    %54 = vector.broadcast %cst_24 : f32 to vector<3x169xf32>
    %55 = arith.addf %54, %53 : vector<3x169xf32>
    %56 = tpu.reciprocal %55 {approx = true} : vector<3x169xf32> -> vector<3x169xf32>
    %c0_25 = arith.constant 0 : index
    %c1 = arith.constant 1 : index
    %c0_26 = arith.constant 0 : index
    %c0_27 = arith.constant 0 : index
    %57 = vector.load %arg6[%c0_25, %c1, %c0_26, %c0_27] : memref<1x8x3x169xf32, #tpu.memory_space<vmem>>, vector<1x1x3x169xf32>
    %58 = vector.shape_cast %57 : vector<1x1x3x169xf32> to vector<3x169xf32>
    %59 = vector.shape_cast %56 : vector<3x169xf32> to vector<1x1x3x169xf32>
    tpu.vector_store %arg6[%c0_25, %c1, %c0_26, %c0_27], %59 {strides = array<i32>} : memref<1x8x3x169xf32, #tpu.memory_space<vmem>>, vector<1x1x3x169xf32>,
    %60 = vector.broadcast %27 : vector<1x169xf32> to vector<3x169xf32>
    %61 = arith.addf %60, %12 : vector<3x169xf32>
    %cst_28 = arith.constant 3.200000e+01 : f32
    %62 = vector.broadcast %cst_28 : f32 to vector<3x169xf32>
    %63 = arith.mulf %61, %62 : vector<3x169xf32>
    %c0_29 = arith.constant 0 : index
    %c2 = arith.constant 2 : index
    %c0_30 = arith.constant 0 : index
    %c0_31 = arith.constant 0 : index
    %64 = vector.load %arg6[%c0_29, %c2, %c0_30, %c0_31] : memref<1x8x3x169xf32, #tpu.memory_space<vmem>>, vector<1x1x3x169xf32>
    %65 = vector.shape_cast %64 : vector<1x1x3x169xf32> to vector<3x169xf32>
    %66 = vector.shape_cast %63 : vector<3x169xf32> to vector<1x1x3x169xf32>
    tpu.vector_store %arg6[%c0_29, %c2, %c0_30, %c0_31], %66 {strides = array<i32>} : memref<1x8x3x169xf32, #tpu.memory_space<vmem>>, vector<1x1x3x169xf32>,
    %67 = vector.broadcast %24 : vector<1x169xf32> to vector<3x169xf32>
    %68 = arith.addf %67, %12 : vector<3x169xf32>
    %cst_32 = arith.constant 3.200000e+01 : f32
    %69 = vector.broadcast %cst_32 : f32 to vector<3x169xf32>
    %70 = arith.mulf %68, %69 : vector<3x169xf32>
    %c0_33 = arith.constant 0 : index
    %c3 = arith.constant 3 : index
    %c0_34 = arith.constant 0 : index
    %c0_35 = arith.constant 0 : index
    %71 = vector.load %arg6[%c0_33, %c3, %c0_34, %c0_35] : memref<1x8x3x169xf32, #tpu.memory_space<vmem>>, vector<1x1x3x169xf32>
    %72 = vector.shape_cast %71 : vector<1x1x3x169xf32> to vector<3x169xf32>
    %73 = vector.shape_cast %70 : vector<3x169xf32> to vector<1x1x3x169xf32>
    tpu.vector_store %arg6[%c0_33, %c3, %c0_34, %c0_35], %73 {strides = array<i32>} : memref<1x8x3x169xf32, #tpu.memory_space<vmem>>, vector<1x1x3x169xf32>,
    %74 = math.exp %13 : vector<3x169xf32>
    %75 = vector.broadcast %37 : vector<3x1xf32> to vector<3x169xf32>
    %76 = arith.mulf %75, %74 : vector<3x169xf32>
    %c0_36 = arith.constant 0 : index
    %c4 = arith.constant 4 : index
    %c0_37 = arith.constant 0 : index
    %c0_38 = arith.constant 0 : index
    %77 = vector.load %arg6[%c0_36, %c4, %c0_37, %c0_38] : memref<1x8x3x169xf32, #tpu.memory_space<vmem>>, vector<1x1x3x169xf32>
    %78 = vector.shape_cast %77 : vector<1x1x3x169xf32> to vector<3x169xf32>
    %79 = vector.shape_cast %76 : vector<3x169xf32> to vector<1x1x3x169xf32>
    tpu.vector_store %arg6[%c0_36, %c4, %c0_37, %c0_38], %79 {strides = array<i32>} : memref<1x8x3x169xf32, #tpu.memory_space<vmem>>, vector<1x1x3x169xf32>,
    %80 = math.exp %14 : vector<3x169xf32>
    %81 = vector.broadcast %46 : vector<3x1xf32> to vector<3x169xf32>
    %82 = arith.mulf %81, %80 : vector<3x169xf32>
    %c0_39 = arith.constant 0 : index
    %c5 = arith.constant 5 : index
    %c0_40 = arith.constant 0 : index
    %c0_41 = arith.constant 0 : index
    %83 = vector.load %arg6[%c0_39, %c5, %c0_40, %c0_41] : memref<1x8x3x169xf32, #tpu.memory_space<vmem>>, vector<1x1x3x169xf32>
    %84 = vector.shape_cast %83 : vector<1x1x3x169xf32> to vector<3x169xf32>
    %85 = vector.shape_cast %82 : vector<3x169xf32> to vector<1x1x3x169xf32>
    tpu.vector_store %arg6[%c0_39, %c5, %c0_40, %c0_41], %85 {strides = array<i32>} : memref<1x8x3x169xf32, #tpu.memory_space<vmem>>, vector<1x1x3x169xf32>,
    %86 = arith.maximumf %15, %16 : vector<3x169xf32>
    %87 = arith.maximumf %86, %17 : vector<3x169xf32>
    %88 = arith.cmpf oge, %15, %87 : vector<3x169xf32>
    %89 = arith.cmpf oge, %16, %87 : vector<3x169xf32>
    %cst_42 = arith.constant 1.000000e+00 : f32
    %cst_43 = arith.constant 2.000000e+00 : f32
    %90 = vector.broadcast %cst_42 : f32 to vector<3x169xf32>
    %91 = vector.broadcast %cst_43 : f32 to vector<3x169xf32>
    %92 = arith.select %89, %90, %91 : vector<3x169xi1>, vector<3x169xf32>
    %cst_44 = arith.constant 0.000000e+00 : f32
    %93 = vector.broadcast %cst_44 : f32 to vector<3x169xf32>
    %94 = arith.select %88, %93, %92 : vector<3x169xi1>, vector<3x169xf32>
    %c0_45 = arith.constant 0 : index
    %c6 = arith.constant 6 : index
    %c0_46 = arith.constant 0 : index
    %c0_47 = arith.constant 0 : index
    %95 = vector.load %arg6[%c0_45, %c6, %c0_46, %c0_47] : memref<1x8x3x169xf32, #tpu.memory_space<vmem>>, vector<1x1x3x169xf32>
    %96 = vector.shape_cast %95 : vector<1x1x3x169xf32> to vector<3x169xf32>
    %97 = vector.shape_cast %94 : vector<3x169xf32> to vector<1x1x3x169xf32>
    tpu.vector_store %arg6[%c0_45, %c6, %c0_46, %c0_47], %97 {strides = array<i32>} : memref<1x8x3x169xf32, #tpu.memory_space<vmem>>, vector<1x1x3x169xf32>,
    %cst_48 = arith.constant 0.200670689 : f32
    %98 = vector.broadcast %cst_48 : f32 to vector<3x169xf32>
    %99 = arith.cmpf ogt, %11, %98 : vector<3x169xf32>
    %100 = arith.extui %99 : vector<3x169xi1> to vector<3x169xi32>
    %101 = arith.sitofp %100 : vector<3x169xi32> to vector<3x169xf32>
    %c0_49 = arith.constant 0 : index
    %c7 = arith.constant 7 : index
    %c0_50 = arith.constant 0 : index
    %c0_51 = arith.constant 0 : index
    %102 = vector.load %arg6[%c0_49, %c7, %c0_50, %c0_51] : memref<1x8x3x169xf32, #tpu.memory_space<vmem>>, vector<1x1x3x169xf32>
    %103 = vector.shape_cast %102 : vector<1x1x3x169xf32> to vector<3x169xf32>
    %104 = vector.shape_cast %101 : vector<3x169xf32> to vector<1x1x3x169xf32>
    tpu.vector_store %arg6[%c0_49, %c7, %c0_50, %c0_51], %104 {strides = array<i32>} : memref<1x8x3x169xf32, #tpu.memory_space<vmem>>, vector<1x1x3x169xf32>,
    %c0_52 = arith.constant 0 : index
    %c0_53 = arith.constant 0 : index
    %c0_54 = arith.constant 0 : index
    %105 = vector.load %arg2[%c0_52, %c0_53, %c0_54] : memref<1x32x676xf32, #tpu.memory_space<vmem>>, vector<1x32x676xf32>
    %106 = vector.shape_cast %105 : vector<1x32x676xf32> to vector<32x676xf32>
    %107 = arith.truncf %106 : vector<32x676xf32> to vector<32x676xbf16>
    %c1_55 = arith.constant 1 : index
    %c0_56 = arith.constant 0 : index
    %c0_57 = arith.constant 0 : index
    %108 = vector.load %arg4[%c1_55, %c0_56, %c0_57] : memref<3x32x32xbf16, #tpu.memory_space<vmem>>, vector<1x32x32xbf16>
    %109 = vector.shape_cast %108 : vector<1x32x32xbf16> to vector<32x32xbf16>
    %cst_58 = arith.constant dense<0.000000e+00> : vector<32x676xf32>
    %110 = tpu.matmul %109, %107, %cst_58 {dimension_numbers = #tpu.dot_dimension_numbers<[1], [0], [0], [1], [0, 0, 1, 1], [], []>} : vector<32x32xbf16>, vector<32x676xbf16>, vector<32x676xf32> -> vector<32x676xf32>
    %c1_59 = arith.constant 1 : index
    %c0_60 = arith.constant 0 : index
    %c0_61 = arith.constant 0 : index
    %111 = vector.load %arg5[%c1_59, %c0_60, %c0_61] : memref<3x32x1xf32, #tpu.memory_space<vmem>>, vector<1x32x1xf32>
    %112 = vector.shape_cast %111 : vector<1x32x1xf32> to vector<32x1xf32>
    %113 = vector.broadcast %112 : vector<32x1xf32> to vector<32x676xf32>
    %114 = arith.addf %110, %113 : vector<32x676xf32>
    %115 = vector.extract_strided_slice %114 {offsets = [0, 0], sizes = [3, 676], strides = [1, 1]} : vector<32x676xf32> to vector<3x676xf32>
    %116 = vector.extract_strided_slice %114 {offsets = [3, 0], sizes = [3, 676], strides = [1, 1]} : vector<32x676xf32> to vector<3x676xf32>
    %117 = vector.extract_strided_slice %114 {offsets = [8, 0], sizes = [3, 676], strides = [1, 1]} : vector<32x676xf32> to vector<3x676xf32>
    %118 = vector.extract_strided_slice %114 {offsets = [11, 0], sizes = [3, 676], strides = [1, 1]} : vector<32x676xf32> to vector<3x676xf32>
    %119 = vector.extract_strided_slice %114 {offsets = [16, 0], sizes = [3, 676], strides = [1, 1]} : vector<32x676xf32> to vector<3x676xf32>
    %120 = vector.extract_strided_slice %114 {offsets = [19, 0], sizes = [3, 676], strides = [1, 1]} : vector<32x676xf32> to vector<3x676xf32>
    %121 = vector.extract_strided_slice %114 {offsets = [24, 0], sizes = [3, 676], strides = [1, 1]} : vector<32x676xf32> to vector<3x676xf32>
    %122 = tpu.iota {dimensions = array<i32: 1>} : vector<1x676xi32>
    %123 = arith.sitofp %122 : vector<1x676xi32> to vector<1x676xf32>
    %cst_62 = arith.constant 5.000000e-01 : f32
    %124 = vector.broadcast %cst_62 : f32 to vector<1x676xf32>
    %125 = arith.addf %123, %124 : vector<1x676xf32>
    %cst_63 = arith.constant 0.0384615399 : f32
    %126 = vector.broadcast %cst_63 : f32 to vector<1x676xf32>
    %127 = arith.mulf %125, %126 : vector<1x676xf32>
    %128 = math.floor %127 : vector<1x676xf32>
    %cst_64 = arith.constant 2.600000e+01 : f32
    %129 = vector.broadcast %cst_64 : f32 to vector<1x676xf32>
    %130 = arith.mulf %128, %129 : vector<1x676xf32>
    %131 = arith.subf %123, %130 : vector<1x676xf32>
    %132 = tpu.iota {dimensions = array<i32: 0>} : vector<3x1xi32>
    %c0_i32_65 = arith.constant 0 : i32
    %133 = vector.broadcast %c0_i32_65 : i32 to vector<3x1xi32>
    %134 = arith.cmpi eq, %132, %133 : vector<3x1xi32>
    %c1_i32_66 = arith.constant 1 : i32
    %135 = vector.broadcast %c1_i32_66 : i32 to vector<3x1xi32>
    %136 = arith.cmpi eq, %132, %135 : vector<3x1xi32>
    %cst_67 = arith.constant 6.200000e+01 : f32
    %cst_68 = arith.constant 5.900000e+01 : f32
    %137 = vector.broadcast %cst_67 : f32 to vector<3x1xf32>
    %138 = vector.broadcast %cst_68 : f32 to vector<3x1xf32>
    %139 = arith.select %136, %137, %138 : vector<3x1xi1>, vector<3x1xf32>
    %cst_69 = arith.constant 3.000000e+01 : f32
    %140 = vector.broadcast %cst_69 : f32 to vector<3x1xf32>
    %141 = arith.select %134, %140, %139 : vector<3x1xi1>, vector<3x1xf32>
    %c0_i32_70 = arith.constant 0 : i32
    %142 = vector.broadcast %c0_i32_70 : i32 to vector<3x1xi32>
    %143 = arith.cmpi eq, %132, %142 : vector<3x1xi32>
    %c1_i32_71 = arith.constant 1 : i32
    %144 = vector.broadcast %c1_i32_71 : i32 to vector<3x1xi32>
    %145 = arith.cmpi eq, %132, %144 : vector<3x1xi32>
    %cst_72 = arith.constant 4.500000e+01 : f32
    %cst_73 = arith.constant 1.190000e+02 : f32
    %146 = vector.broadcast %cst_72 : f32 to vector<3x1xf32>
    %147 = vector.broadcast %cst_73 : f32 to vector<3x1xf32>
    %148 = arith.select %145, %146, %147 : vector<3x1xi1>, vector<3x1xf32>
    %cst_74 = arith.constant 6.100000e+01 : f32
    %149 = vector.broadcast %cst_74 : f32 to vector<3x1xf32>
    %150 = arith.select %143, %149, %148 : vector<3x1xi1>, vector<3x1xf32>
    %151 = vector.broadcast %0 : f32 to vector<3x676xf32>
    %c0_75 = arith.constant 0 : index
    %c0_76 = arith.constant 0 : index
    %c0_77 = arith.constant 0 : index
    %c0_78 = arith.constant 0 : index
    %152 = vector.load %arg7[%c0_75, %c0_76, %c0_77, %c0_78] : memref<1x8x3x676xf32, #tpu.memory_space<vmem>>, vector<1x1x3x676xf32>
    %153 = vector.shape_cast %152 : vector<1x1x3x676xf32> to vector<3x676xf32>
    %154 = vector.shape_cast %151 : vector<3x676xf32> to vector<1x1x3x676xf32>
    tpu.vector_store %arg7[%c0_75, %c0_76, %c0_77, %c0_78], %154 {strides = array<i32>} : memref<1x8x3x676xf32, #tpu.memory_space<vmem>>, vector<1x1x3x676xf32>,
    %cst_79 = arith.constant 0.000000e+00 : f32
    %155 = vector.broadcast %cst_79 : f32 to vector<3x676xf32>
    %156 = arith.subf %155, %115 : vector<3x676xf32>
    %157 = math.exp %156 : vector<3x676xf32>
    %cst_80 = arith.constant 1.000000e+00 : f32
    %158 = vector.broadcast %cst_80 : f32 to vector<3x676xf32>
    %159 = arith.addf %158, %157 : vector<3x676xf32>
    %160 = tpu.reciprocal %159 {approx = true} : vector<3x676xf32> -> vector<3x676xf32>
    %c0_81 = arith.constant 0 : index
    %c1_82 = arith.constant 1 : index
    %c0_83 = arith.constant 0 : index
    %c0_84 = arith.constant 0 : index
    %161 = vector.load %arg7[%c0_81, %c1_82, %c0_83, %c0_84] : memref<1x8x3x676xf32, #tpu.memory_space<vmem>>, vector<1x1x3x676xf32>
    %162 = vector.shape_cast %161 : vector<1x1x3x676xf32> to vector<3x676xf32>
    %163 = vector.shape_cast %160 : vector<3x676xf32> to vector<1x1x3x676xf32>
    tpu.vector_store %arg7[%c0_81, %c1_82, %c0_83, %c0_84], %163 {strides = array<i32>} : memref<1x8x3x676xf32, #tpu.memory_space<vmem>>, vector<1x1x3x676xf32>,
    %164 = vector.broadcast %131 : vector<1x676xf32> to vector<3x676xf32>
    %165 = arith.addf %164, %116 : vector<3x676xf32>
    %cst_85 = arith.constant 1.600000e+01 : f32
    %166 = vector.broadcast %cst_85 : f32 to vector<3x676xf32>
    %167 = arith.mulf %165, %166 : vector<3x676xf32>
    %c0_86 = arith.constant 0 : index
    %c2_87 = arith.constant 2 : index
    %c0_88 = arith.constant 0 : index
    %c0_89 = arith.constant 0 : index
    %168 = vector.load %arg7[%c0_86, %c2_87, %c0_88, %c0_89] : memref<1x8x3x676xf32, #tpu.memory_space<vmem>>, vector<1x1x3x676xf32>
    %169 = vector.shape_cast %168 : vector<1x1x3x676xf32> to vector<3x676xf32>
    %170 = vector.shape_cast %167 : vector<3x676xf32> to vector<1x1x3x676xf32>
    tpu.vector_store %arg7[%c0_86, %c2_87, %c0_88, %c0_89], %170 {strides = array<i32>} : memref<1x8x3x676xf32, #tpu.memory_space<vmem>>, vector<1x1x3x676xf32>,
    %171 = vector.broadcast %128 : vector<1x676xf32> to vector<3x676xf32>
    %172 = arith.addf %171, %116 : vector<3x676xf32>
    %cst_90 = arith.constant 1.600000e+01 : f32
    %173 = vector.broadcast %cst_90 : f32 to vector<3x676xf32>
    %174 = arith.mulf %172, %173 : vector<3x676xf32>
    %c0_91 = arith.constant 0 : index
    %c3_92 = arith.constant 3 : index
    %c0_93 = arith.constant 0 : index
    %c0_94 = arith.constant 0 : index
    %175 = vector.load %arg7[%c0_91, %c3_92, %c0_93, %c0_94] : memref<1x8x3x676xf32, #tpu.memory_space<vmem>>, vector<1x1x3x676xf32>
    %176 = vector.shape_cast %175 : vector<1x1x3x676xf32> to vector<3x676xf32>
    %177 = vector.shape_cast %174 : vector<3x676xf32> to vector<1x1x3x676xf32>
    tpu.vector_store %arg7[%c0_91, %c3_92, %c0_93, %c0_94], %177 {strides = array<i32>} : memref<1x8x3x676xf32, #tpu.memory_space<vmem>>, vector<1x1x3x676xf32>,
    %178 = math.exp %117 : vector<3x676xf32>
    %179 = vector.broadcast %141 : vector<3x1xf32> to vector<3x676xf32>
    %180 = arith.mulf %179, %178 : vector<3x676xf32>
    %c0_95 = arith.constant 0 : index
    %c4_96 = arith.constant 4 : index
    %c0_97 = arith.constant 0 : index
    %c0_98 = arith.constant 0 : index
    %181 = vector.load %arg7[%c0_95, %c4_96, %c0_97, %c0_98] : memref<1x8x3x676xf32, #tpu.memory_space<vmem>>, vector<1x1x3x676xf32>
    %182 = vector.shape_cast %181 : vector<1x1x3x676xf32> to vector<3x676xf32>
    %183 = vector.shape_cast %180 : vector<3x676xf32> to vector<1x1x3x676xf32>
    tpu.vector_store %arg7[%c0_95, %c4_96, %c0_97, %c0_98], %183 {strides = array<i32>} : memref<1x8x3x676xf32, #tpu.memory_space<vmem>>, vector<1x1x3x676xf32>,
    %184 = math.exp %118 : vector<3x676xf32>
    %185 = vector.broadcast %150 : vector<3x1xf32> to vector<3x676xf32>
    %186 = arith.mulf %185, %184 : vector<3x676xf32>
    %c0_99 = arith.constant 0 : index
    %c5_100 = arith.constant 5 : index
    %c0_101 = arith.constant 0 : index
    %c0_102 = arith.constant 0 : index
    %187 = vector.load %arg7[%c0_99, %c5_100, %c0_101, %c0_102] : memref<1x8x3x676xf32, #tpu.memory_space<vmem>>, vector<1x1x3x676xf32>
    %188 = vector.shape_cast %187 : vector<1x1x3x676xf32> to vector<3x676xf32>
    %189 = vector.shape_cast %186 : vector<3x676xf32> to vector<1x1x3x676xf32>
    tpu.vector_store %arg7[%c0_99, %c5_100, %c0_101, %c0_102], %189 {strides = array<i32>} : memref<1x8x3x676xf32, #tpu.memory_space<vmem>>, vector<1x1x3x676xf32>,
    %190 = arith.maximumf %119, %120 : vector<3x676xf32>
    %191 = arith.maximumf %190, %121 : vector<3x676xf32>
    %192 = arith.cmpf oge, %119, %191 : vector<3x676xf32>
    %193 = arith.cmpf oge, %120, %191 : vector<3x676xf32>
    %cst_103 = arith.constant 1.000000e+00 : f32
    %cst_104 = arith.constant 2.000000e+00 : f32
    %194 = vector.broadcast %cst_103 : f32 to vector<3x676xf32>
    %195 = vector.broadcast %cst_104 : f32 to vector<3x676xf32>
    %196 = arith.select %193, %194, %195 : vector<3x676xi1>, vector<3x676xf32>
    %cst_105 = arith.constant 0.000000e+00 : f32
    %197 = vector.broadcast %cst_105 : f32 to vector<3x676xf32>
    %198 = arith.select %192, %197, %196 : vector<3x676xi1>, vector<3x676xf32>
    %c0_106 = arith.constant 0 : index
    %c6_107 = arith.constant 6 : index
    %c0_108 = arith.constant 0 : index
    %c0_109 = arith.constant 0 : index
    %199 = vector.load %arg7[%c0_106, %c6_107, %c0_108, %c0_109] : memref<1x8x3x676xf32, #tpu.memory_space<vmem>>, vector<1x1x3x676xf32>
    %200 = vector.shape_cast %199 : vector<1x1x3x676xf32> to vector<3x676xf32>
    %201 = vector.shape_cast %198 : vector<3x676xf32> to vector<1x1x3x676xf32>
    tpu.vector_store %arg7[%c0_106, %c6_107, %c0_108, %c0_109], %201 {strides = array<i32>} : memref<1x8x3x676xf32, #tpu.memory_space<vmem>>, vector<1x1x3x676xf32>,
    %cst_110 = arith.constant 0.200670689 : f32
    %202 = vector.broadcast %cst_110 : f32 to vector<3x676xf32>
    %203 = arith.cmpf ogt, %115, %202 : vector<3x676xf32>
    %204 = arith.extui %203 : vector<3x676xi1> to vector<3x676xi32>
    %205 = arith.sitofp %204 : vector<3x676xi32> to vector<3x676xf32>
    %c0_111 = arith.constant 0 : index
    %c7_112 = arith.constant 7 : index
    %c0_113 = arith.constant 0 : index
    %c0_114 = arith.constant 0 : index
    %206 = vector.load %arg7[%c0_111, %c7_112, %c0_113, %c0_114] : memref<1x8x3x676xf32, #tpu.memory_space<vmem>>, vector<1x1x3x676xf32>
    %207 = vector.shape_cast %206 : vector<1x1x3x676xf32> to vector<3x676xf32>
    %208 = vector.shape_cast %205 : vector<3x676xf32> to vector<1x1x3x676xf32>
    tpu.vector_store %arg7[%c0_111, %c7_112, %c0_113, %c0_114], %208 {strides = array<i32>} : memref<1x8x3x676xf32, #tpu.memory_space<vmem>>, vector<1x1x3x676xf32>,
    %c0_115 = arith.constant 0 : index
    %c0_116 = arith.constant 0 : index
    %c0_117 = arith.constant 0 : index
    %209 = vector.load %arg3[%c0_115, %c0_116, %c0_117] : memref<1x32x2704xf32, #tpu.memory_space<vmem>>, vector<1x32x2704xf32>
    %210 = vector.shape_cast %209 : vector<1x32x2704xf32> to vector<32x2704xf32>
    %211 = arith.truncf %210 : vector<32x2704xf32> to vector<32x2704xbf16>
    %c2_118 = arith.constant 2 : index
    %c0_119 = arith.constant 0 : index
    %c0_120 = arith.constant 0 : index
    %212 = vector.load %arg4[%c2_118, %c0_119, %c0_120] : memref<3x32x32xbf16, #tpu.memory_space<vmem>>, vector<1x32x32xbf16>
    %213 = vector.shape_cast %212 : vector<1x32x32xbf16> to vector<32x32xbf16>
    %cst_121 = arith.constant dense<0.000000e+00> : vector<32x2704xf32>
    %214 = tpu.matmul %213, %211, %cst_121 {dimension_numbers = #tpu.dot_dimension_numbers<[1], [0], [0], [1], [0, 0, 1, 1], [], []>} : vector<32x32xbf16>, vector<32x2704xbf16>, vector<32x2704xf32> -> vector<32x2704xf32>
    %c2_122 = arith.constant 2 : index
    %c0_123 = arith.constant 0 : index
    %c0_124 = arith.constant 0 : index
    %215 = vector.load %arg5[%c2_122, %c0_123, %c0_124] : memref<3x32x1xf32, #tpu.memory_space<vmem>>, vector<1x32x1xf32>
    %216 = vector.shape_cast %215 : vector<1x32x1xf32> to vector<32x1xf32>
    %217 = vector.broadcast %216 : vector<32x1xf32> to vector<32x2704xf32>
    %218 = arith.addf %214, %217 : vector<32x2704xf32>
    %219 = vector.extract_strided_slice %218 {offsets = [0, 0], sizes = [3, 2704], strides = [1, 1]} : vector<32x2704xf32> to vector<3x2704xf32>
    %220 = vector.extract_strided_slice %218 {offsets = [3, 0], sizes = [3, 2704], strides = [1, 1]} : vector<32x2704xf32> to vector<3x2704xf32>
    %221 = vector.extract_strided_slice %218 {offsets = [8, 0], sizes = [3, 2704], strides = [1, 1]} : vector<32x2704xf32> to vector<3x2704xf32>
    %222 = vector.extract_strided_slice %218 {offsets = [11, 0], sizes = [3, 2704], strides = [1, 1]} : vector<32x2704xf32> to vector<3x2704xf32>
    %223 = vector.extract_strided_slice %218 {offsets = [16, 0], sizes = [3, 2704], strides = [1, 1]} : vector<32x2704xf32> to vector<3x2704xf32>
    %224 = vector.extract_strided_slice %218 {offsets = [19, 0], sizes = [3, 2704], strides = [1, 1]} : vector<32x2704xf32> to vector<3x2704xf32>
    %225 = vector.extract_strided_slice %218 {offsets = [24, 0], sizes = [3, 2704], strides = [1, 1]} : vector<32x2704xf32> to vector<3x2704xf32>
    %226 = tpu.iota {dimensions = array<i32: 1>} : vector<1x2704xi32>
    %227 = arith.sitofp %226 : vector<1x2704xi32> to vector<1x2704xf32>
    %cst_125 = arith.constant 5.000000e-01 : f32
    %228 = vector.broadcast %cst_125 : f32 to vector<1x2704xf32>
    %229 = arith.addf %227, %228 : vector<1x2704xf32>
    %cst_126 = arith.constant 0.0192307699 : f32
    %230 = vector.broadcast %cst_126 : f32 to vector<1x2704xf32>
    %231 = arith.mulf %229, %230 : vector<1x2704xf32>
    %232 = math.floor %231 : vector<1x2704xf32>
    %cst_127 = arith.constant 5.200000e+01 : f32
    %233 = vector.broadcast %cst_127 : f32 to vector<1x2704xf32>
    %234 = arith.mulf %232, %233 : vector<1x2704xf32>
    %235 = arith.subf %227, %234 : vector<1x2704xf32>
    %236 = tpu.iota {dimensions = array<i32: 0>} : vector<3x1xi32>
    %c0_i32_128 = arith.constant 0 : i32
    %237 = vector.broadcast %c0_i32_128 : i32 to vector<3x1xi32>
    %238 = arith.cmpi eq, %236, %237 : vector<3x1xi32>
    %c1_i32_129 = arith.constant 1 : i32
    %239 = vector.broadcast %c1_i32_129 : i32 to vector<3x1xi32>
    %240 = arith.cmpi eq, %236, %239 : vector<3x1xi32>
    %cst_130 = arith.constant 1.600000e+01 : f32
    %cst_131 = arith.constant 3.300000e+01 : f32
    %241 = vector.broadcast %cst_130 : f32 to vector<3x1xf32>
    %242 = vector.broadcast %cst_131 : f32 to vector<3x1xf32>
    %243 = arith.select %240, %241, %242 : vector<3x1xi1>, vector<3x1xf32>
    %cst_132 = arith.constant 1.000000e+01 : f32
    %244 = vector.broadcast %cst_132 : f32 to vector<3x1xf32>
    %245 = arith.select %238, %244, %243 : vector<3x1xi1>, vector<3x1xf32>
    %c0_i32_133 = arith.constant 0 : i32
    %246 = vector.broadcast %c0_i32_133 : i32 to vector<3x1xi32>
    %247 = arith.cmpi eq, %236, %246 : vector<3x1xi32>
    %c1_i32_134 = arith.constant 1 : i32
    %248 = vector.broadcast %c1_i32_134 : i32 to vector<3x1xi32>
    %249 = arith.cmpi eq, %236, %248 : vector<3x1xi32>
    %cst_135 = arith.constant 3.000000e+01 : f32
    %cst_136 = arith.constant 2.300000e+01 : f32
    %250 = vector.broadcast %cst_135 : f32 to vector<3x1xf32>
    %251 = vector.broadcast %cst_136 : f32 to vector<3x1xf32>
    %252 = arith.select %249, %250, %251 : vector<3x1xi1>, vector<3x1xf32>
    %cst_137 = arith.constant 1.300000e+01 : f32
    %253 = vector.broadcast %cst_137 : f32 to vector<3x1xf32>
    %254 = arith.select %247, %253, %252 : vector<3x1xi1>, vector<3x1xf32>
    %255 = vector.broadcast %0 : f32 to vector<3x2704xf32>
    %c0_138 = arith.constant 0 : index
    %c0_139 = arith.constant 0 : index
    %c0_140 = arith.constant 0 : index
    %c0_141 = arith.constant 0 : index
    %256 = vector.load %arg8[%c0_138, %c0_139, %c0_140, %c0_141] : memref<1x8x3x2704xf32, #tpu.memory_space<vmem>>, vector<1x1x3x2704xf32>
    %257 = vector.shape_cast %256 : vector<1x1x3x2704xf32> to vector<3x2704xf32>
    %258 = vector.shape_cast %255 : vector<3x2704xf32> to vector<1x1x3x2704xf32>
    tpu.vector_store %arg8[%c0_138, %c0_139, %c0_140, %c0_141], %258 {strides = array<i32>} : memref<1x8x3x2704xf32, #tpu.memory_space<vmem>>, vector<1x1x3x2704xf32>,
    %cst_142 = arith.constant 0.000000e+00 : f32
    %259 = vector.broadcast %cst_142 : f32 to vector<3x2704xf32>
    %260 = arith.subf %259, %219 : vector<3x2704xf32>
    %261 = math.exp %260 : vector<3x2704xf32>
    %cst_143 = arith.constant 1.000000e+00 : f32
    %262 = vector.broadcast %cst_143 : f32 to vector<3x2704xf32>
    %263 = arith.addf %262, %261 : vector<3x2704xf32>
    %264 = tpu.reciprocal %263 {approx = true} : vector<3x2704xf32> -> vector<3x2704xf32>
    %c0_144 = arith.constant 0 : index
    %c1_145 = arith.constant 1 : index
    %c0_146 = arith.constant 0 : index
    %c0_147 = arith.constant 0 : index
    %265 = vector.load %arg8[%c0_144, %c1_145, %c0_146, %c0_147] : memref<1x8x3x2704xf32, #tpu.memory_space<vmem>>, vector<1x1x3x2704xf32>
    %266 = vector.shape_cast %265 : vector<1x1x3x2704xf32> to vector<3x2704xf32>
    %267 = vector.shape_cast %264 : vector<3x2704xf32> to vector<1x1x3x2704xf32>
    tpu.vector_store %arg8[%c0_144, %c1_145, %c0_146, %c0_147], %267 {strides = array<i32>} : memref<1x8x3x2704xf32, #tpu.memory_space<vmem>>, vector<1x1x3x2704xf32>,
    %268 = vector.broadcast %235 : vector<1x2704xf32> to vector<3x2704xf32>
    %269 = arith.addf %268, %220 : vector<3x2704xf32>
    %cst_148 = arith.constant 8.000000e+00 : f32
    %270 = vector.broadcast %cst_148 : f32 to vector<3x2704xf32>
    %271 = arith.mulf %269, %270 : vector<3x2704xf32>
    %c0_149 = arith.constant 0 : index
    %c2_150 = arith.constant 2 : index
    %c0_151 = arith.constant 0 : index
    %c0_152 = arith.constant 0 : index
    %272 = vector.load %arg8[%c0_149, %c2_150, %c0_151, %c0_152] : memref<1x8x3x2704xf32, #tpu.memory_space<vmem>>, vector<1x1x3x2704xf32>
    %273 = vector.shape_cast %272 : vector<1x1x3x2704xf32> to vector<3x2704xf32>
    %274 = vector.shape_cast %271 : vector<3x2704xf32> to vector<1x1x3x2704xf32>
    tpu.vector_store %arg8[%c0_149, %c2_150, %c0_151, %c0_152], %274 {strides = array<i32>} : memref<1x8x3x2704xf32, #tpu.memory_space<vmem>>, vector<1x1x3x2704xf32>,
    %275 = vector.broadcast %232 : vector<1x2704xf32> to vector<3x2704xf32>
    %276 = arith.addf %275, %220 : vector<3x2704xf32>
    %cst_153 = arith.constant 8.000000e+00 : f32
    %277 = vector.broadcast %cst_153 : f32 to vector<3x2704xf32>
    %278 = arith.mulf %276, %277 : vector<3x2704xf32>
    %c0_154 = arith.constant 0 : index
    %c3_155 = arith.constant 3 : index
    %c0_156 = arith.constant 0 : index
    %c0_157 = arith.constant 0 : index
    %279 = vector.load %arg8[%c0_154, %c3_155, %c0_156, %c0_157] : memref<1x8x3x2704xf32, #tpu.memory_space<vmem>>, vector<1x1x3x2704xf32>
    %280 = vector.shape_cast %279 : vector<1x1x3x2704xf32> to vector<3x2704xf32>
    %281 = vector.shape_cast %278 : vector<3x2704xf32> to vector<1x1x3x2704xf32>
    tpu.vector_store %arg8[%c0_154, %c3_155, %c0_156, %c0_157], %281 {strides = array<i32>} : memref<1x8x3x2704xf32, #tpu.memory_space<vmem>>, vector<1x1x3x2704xf32>,
    %282 = math.exp %221 : vector<3x2704xf32>
    %283 = vector.broadcast %245 : vector<3x1xf32> to vector<3x2704xf32>
    %284 = arith.mulf %283, %282 : vector<3x2704xf32>
    %c0_158 = arith.constant 0 : index
    %c4_159 = arith.constant 4 : index
    %c0_160 = arith.constant 0 : index
    %c0_161 = arith.constant 0 : index
    %285 = vector.load %arg8[%c0_158, %c4_159, %c0_160, %c0_161] : memref<1x8x3x2704xf32, #tpu.memory_space<vmem>>, vector<1x1x3x2704xf32>
    %286 = vector.shape_cast %285 : vector<1x1x3x2704xf32> to vector<3x2704xf32>
    %287 = vector.shape_cast %284 : vector<3x2704xf32> to vector<1x1x3x2704xf32>
    tpu.vector_store %arg8[%c0_158, %c4_159, %c0_160, %c0_161], %287 {strides = array<i32>} : memref<1x8x3x2704xf32, #tpu.memory_space<vmem>>, vector<1x1x3x2704xf32>,
    %288 = math.exp %222 : vector<3x2704xf32>
    %289 = vector.broadcast %254 : vector<3x1xf32> to vector<3x2704xf32>
    %290 = arith.mulf %289, %288 : vector<3x2704xf32>
    %c0_162 = arith.constant 0 : index
    %c5_163 = arith.constant 5 : index
    %c0_164 = arith.constant 0 : index
    %c0_165 = arith.constant 0 : index
    %291 = vector.load %arg8[%c0_162, %c5_163, %c0_164, %c0_165] : memref<1x8x3x2704xf32, #tpu.memory_space<vmem>>, vector<1x1x3x2704xf32>
    %292 = vector.shape_cast %291 : vector<1x1x3x2704xf32> to vector<3x2704xf32>
    %293 = vector.shape_cast %290 : vector<3x2704xf32> to vector<1x1x3x2704xf32>
    tpu.vector_store %arg8[%c0_162, %c5_163, %c0_164, %c0_165], %293 {strides = array<i32>} : memref<1x8x3x2704xf32, #tpu.memory_space<vmem>>, vector<1x1x3x2704xf32>,
    %294 = arith.maximumf %223, %224 : vector<3x2704xf32>
    %295 = arith.maximumf %294, %225 : vector<3x2704xf32>
    %296 = arith.cmpf oge, %223, %295 : vector<3x2704xf32>
    %297 = arith.cmpf oge, %224, %295 : vector<3x2704xf32>
    %cst_166 = arith.constant 1.000000e+00 : f32
    %cst_167 = arith.constant 2.000000e+00 : f32
    %298 = vector.broadcast %cst_166 : f32 to vector<3x2704xf32>
    %299 = vector.broadcast %cst_167 : f32 to vector<3x2704xf32>
    %300 = arith.select %297, %298, %299 : vector<3x2704xi1>, vector<3x2704xf32>
    %cst_168 = arith.constant 0.000000e+00 : f32
    %301 = vector.broadcast %cst_168 : f32 to vector<3x2704xf32>
    %302 = arith.select %296, %301, %300 : vector<3x2704xi1>, vector<3x2704xf32>
    %c0_169 = arith.constant 0 : index
    %c6_170 = arith.constant 6 : index
    %c0_171 = arith.constant 0 : index
    %c0_172 = arith.constant 0 : index
    %303 = vector.load %arg8[%c0_169, %c6_170, %c0_171, %c0_172] : memref<1x8x3x2704xf32, #tpu.memory_space<vmem>>, vector<1x1x3x2704xf32>
    %304 = vector.shape_cast %303 : vector<1x1x3x2704xf32> to vector<3x2704xf32>
    %305 = vector.shape_cast %302 : vector<3x2704xf32> to vector<1x1x3x2704xf32>
    tpu.vector_store %arg8[%c0_169, %c6_170, %c0_171, %c0_172], %305 {strides = array<i32>} : memref<1x8x3x2704xf32, #tpu.memory_space<vmem>>, vector<1x1x3x2704xf32>,
    %cst_173 = arith.constant 0.200670689 : f32
    %306 = vector.broadcast %cst_173 : f32 to vector<3x2704xf32>
    %307 = arith.cmpf ogt, %219, %306 : vector<3x2704xf32>
    %308 = arith.extui %307 : vector<3x2704xi1> to vector<3x2704xi32>
    %309 = arith.sitofp %308 : vector<3x2704xi32> to vector<3x2704xf32>
    %c0_174 = arith.constant 0 : index
    %c7_175 = arith.constant 7 : index
    %c0_176 = arith.constant 0 : index
    %c0_177 = arith.constant 0 : index
    %310 = vector.load %arg8[%c0_174, %c7_175, %c0_176, %c0_177] : memref<1x8x3x2704xf32, #tpu.memory_space<vmem>>, vector<1x1x3x2704xf32>
    %311 = vector.shape_cast %310 : vector<1x1x3x2704xf32> to vector<3x2704xf32>
    %312 = vector.shape_cast %309 : vector<3x2704xf32> to vector<1x1x3x2704xf32>
    tpu.vector_store %arg8[%c0_174, %c7_175, %c0_176, %c0_177], %312 {strides = array<i32>} : memref<1x8x3x2704xf32, #tpu.memory_space<vmem>>, vector<1x1x3x2704xf32>,
    return
  }
  func.func @transform_0(%arg0: i32) -> (i32, i32, i32) {
    %c0_i32 = arith.constant 0 : i32
    %c0_i32_0 = arith.constant 0 : i32
    %c0_i32_1 = arith.constant 0 : i32
    return %arg0, %c0_i32, %c0_i32_0 : i32, i32, i32
  }
  func.func @transform_1(%arg0: i32) -> (i32, i32, i32) {
    %c0_i32 = arith.constant 0 : i32
    %c0_i32_0 = arith.constant 0 : i32
    %c0_i32_1 = arith.constant 0 : i32
    return %arg0, %c0_i32, %c0_i32_0 : i32, i32, i32
  }
  func.func @transform_2(%arg0: i32) -> (i32, i32, i32) {
    %c0_i32 = arith.constant 0 : i32
    %c0_i32_0 = arith.constant 0 : i32
    %c0_i32_1 = arith.constant 0 : i32
    return %arg0, %c0_i32, %c0_i32_0 : i32, i32, i32
  }
  func.func @transform_3(%arg0: i32) -> (i32, i32, i32) {
    %c0_i32 = arith.constant 0 : i32
    %c0_i32_0 = arith.constant 0 : i32
    %c0_i32_1 = arith.constant 0 : i32
    %c0_i32_2 = arith.constant 0 : i32
    return %c0_i32, %c0_i32_0, %c0_i32_1 : i32, i32, i32
  }
  func.func @transform_4(%arg0: i32) -> (i32, i32, i32) {
    %c0_i32 = arith.constant 0 : i32
    %c0_i32_0 = arith.constant 0 : i32
    %c0_i32_1 = arith.constant 0 : i32
    %c0_i32_2 = arith.constant 0 : i32
    return %c0_i32, %c0_i32_0, %c0_i32_1 : i32, i32, i32
  }
  func.func @transform_5(%arg0: i32) -> (i32, i32, i32, i32) {
    %c0_i32 = arith.constant 0 : i32
    %c0_i32_0 = arith.constant 0 : i32
    %c0_i32_1 = arith.constant 0 : i32
    %c0_i32_2 = arith.constant 0 : i32
    return %arg0, %c0_i32, %c0_i32_0, %c0_i32_1 : i32, i32, i32, i32
  }
  func.func @transform_6(%arg0: i32) -> (i32, i32, i32, i32) {
    %c0_i32 = arith.constant 0 : i32
    %c0_i32_0 = arith.constant 0 : i32
    %c0_i32_1 = arith.constant 0 : i32
    %c0_i32_2 = arith.constant 0 : i32
    return %arg0, %c0_i32, %c0_i32_0, %c0_i32_1 : i32, i32, i32, i32
  }
  func.func @transform_7(%arg0: i32) -> (i32, i32, i32, i32) {
    %c0_i32 = arith.constant 0 : i32
    %c0_i32_0 = arith.constant 0 : i32
    %c0_i32_1 = arith.constant 0 : i32
    %c0_i32_2 = arith.constant 0 : i32
    return %arg0, %c0_i32, %c0_i32_0, %c0_i32_1 : i32, i32, i32, i32
  }
}

</mosaic_0001>

<llo_original>
// kernel: tpu_custom_call.1
$region0: #{tpu_custom_call.1}
  #allocation0 [shape = 'u32[]', space=smem, size = 0x4, offset = 0x4, fixed_abs, tag = 'smem constant byte address 0x4 - core index']
  #allocation1 [shape = 'u32[144,128]{1,0:T(1,128)}', space=vmem, size = 0x12000, scoped, tag = 'internal scratch']
  %s0 = inlined_call_operand.hbm [shape: f32[2,32,169], index: 0, kind: input, shape index: {}]
  %s1 = inlined_call_operand.hbm [shape: f32[2,32,676], index: 1, kind: input, shape index: {}]
  %s2 = inlined_call_operand.hbm [shape: f32[2,32,2704], index: 2, kind: input, shape index: {}]
  %s3 = inlined_call_operand.vmem [shape: bf16[3,32,32], index: 3, kind: input, shape index: {}]
  %s4 = inlined_call_operand.vmem [shape: f32[3,32,1], index: 4, kind: input, shape index: {}]
  %s5 = inlined_call_operand.vmem [shape: f32[2,8,3,169], index: 5, kind: output, shape index: {0}]
  %s6 = inlined_call_operand.vmem [shape: f32[2,8,3,676], index: 6, kind: output, shape index: {1}]
  %s7 = inlined_call_operand.vmem [shape: f32[2,8,3,2704], index: 7, kind: output, shape index: {2}]
  %8 = xla_tuple %s5, %s6, %s7
  %s9 = sld [smem:[#allocation0]]
  $region81: #{tpu_custom_call.1} parent=0
    _
  %s11 = ssub.s32 1, %s9
  %s12 = scalar_select 0, %s11, %s9
  $region1: #{tpu_custom_call.1} parent=0
    #allocation2 [shape = 'u8[65536]{0}', space=vmem, size = 0x10000, scoped, tag = 'input window, operand 0']
    #allocation3 [shape = 's32[2]{0}', space=sflag, size = 0x8, scoped, tag = 'scoped memory for tpu_custom_call.1']
    #allocation4 [shape = 'u8[196608]{0}', space=vmem, size = 0x30000, scoped, tag = 'input window, operand 1']
    #allocation5 [shape = 's32[2]{0}', space=sflag, size = 0x8, scoped, tag = 'scoped memory for tpu_custom_call.1']
    #allocation6 [shape = 'u8[720896]{0}', space=vmem, size = 0xb0000, scoped, tag = 'input window, operand 2']
    %13 = vsyncpa [#allocation3], 0
    %s14 = scalar_lea.sflag [#allocation3], 1
    %15 = vsyncpa %s14, 0
    %16 = vsyncpa [#allocation5], 0
    %s17 = scalar_lea.sflag [#allocation5], 1
    %18 = vsyncpa %s17, 0
    loop: start=0, step=1, limit=4
    $region2: #{tpu_custom_call.1} parent=1 // loop_pre_header
      _
    $region3: #{tpu_custom_call.1} parent=1 // loop_header
      %s20 = sphi 0, %s24
      %p21 = scmp.ge.s32.totalorder %s20, 4
      %s30 = sphi 0, %s32
      %s33 = sphi 0, %s30
      %s34 = sphi 0, %s33
      %s50 = sphi 0, %s34
      %s56 = sphi 0, %s58
      %s59 = sphi 0, %s56
      %s60 = sphi 0, %s59
      %s76 = sphi 0, %s60
      %s82 = sphi 0, %s84
      %s85 = sphi 0, %s82
      %s86 = sphi 0, %s85
      %s102 = sphi 0, %s86
      %s106 = sphi 0, %s106
      %s108 = sphi 0, %s106
      %s109 = sphi 0, %s108
      %s123 = sphi 0, %s109
      %s127 = sphi 0, %s127
      %s129 = sphi 0, %s127
      %s130 = sphi 0, %s129
      %s144 = sphi 0, %s130
      %s150 = sphi 0, %s152
      %s153 = sphi 0, %s150
      %s154 = sphi 0, %s153
      %s170 = sphi 0, %s154
      %s176 = sphi 0, %s178
      %s179 = sphi 0, %s176
      %s180 = sphi 0, %s179
      %s196 = sphi 0, %s180
      %s202 = sphi 0, %s204
      %s205 = sphi 0, %s202
      %s206 = sphi 0, %s205
      %s222 = sphi 0, %s206
    $region4: #{tpu_custom_call.1} parent=1 // loop_header_branch
      %23 = sbr.rel (%p21) target = $region8
    $region5: #{tpu_custom_call.1} parent=1 // loop_body
      %s25 = ssub.s32 %s20, 1
      %s26 = ssub.s32 %s20, 2
      %s27 = sadd.s32 %s20, 1
      %s28 = ssub.s32 %s20, %s27
      %p29 = scmp.eq.s32.totalorder %s28, 0
      %s31 = sadd.s32 %s30, 1
      %s32 = scalar_select %p29, %s30, %s31
      %p35 = pneg %p29
      %p36 = scmp.eq.s32.totalorder %s20, 1
      %p37 = por %p35, %p36
      %p38 = scmp.ne.s32.totalorder %s30, %s33
      %p39 = scmp.eq.s32.totalorder %s20, 0
      %p40 = por %p38, %p39
      %p41 = scmp.ne.s32.totalorder %s30, %s33
      %p42 = scmp.eq.s32.totalorder %s25, 1
      %p43 = por %p41, %p42
      %p44 = scmp.ne.s32.totalorder %s33, %s34
      %p45 = scmp.eq.s32.totalorder %s25, 0
      %p46 = por %p44, %p45
      %p47 = scmp.ne.s32.totalorder %s33, %s34
      %p48 = scmp.eq.s32.totalorder %s26, 1
      %p49 = por %p47, %p48
      %p51 = scmp.ne.s32.totalorder %s34, %s50
      %p52 = scmp.eq.s32.totalorder %s26, 0
      %p53 = por %p51, %p52
      %s54 = ssub.s32 %s20, %s27
      %p55 = scmp.eq.s32.totalorder %s54, 0
      %s57 = sadd.s32 %s56, 1
      %s58 = scalar_select %p55, %s56, %s57
      %p61 = pneg %p55
      %p62 = scmp.eq.s32.totalorder %s20, 1
      %p63 = por %p61, %p62
      %p64 = scmp.ne.s32.totalorder %s56, %s59
      %p65 = scmp.eq.s32.totalorder %s20, 0
      %p66 = por %p64, %p65
      %p67 = scmp.ne.s32.totalorder %s56, %s59
      %p68 = scmp.eq.s32.totalorder %s25, 1
      %p69 = por %p67, %p68
      %p70 = scmp.ne.s32.totalorder %s59, %s60
      %p71 = scmp.eq.s32.totalorder %s25, 0
      %p72 = por %p70, %p71
      %p73 = scmp.ne.s32.totalorder %s59, %s60
      %p74 = scmp.eq.s32.totalorder %s26, 1
      %p75 = por %p73, %p74
      %p77 = scmp.ne.s32.totalorder %s60, %s76
      %p78 = scmp.eq.s32.totalorder %s26, 0
      %p79 = por %p77, %p78
      %s80 = ssub.s32 %s20, %s27
      %p81 = scmp.eq.s32.totalorder %s80, 0
      %s83 = sadd.s32 %s82, 1
      %s84 = scalar_select %p81, %s82, %s83
      %p87 = pneg %p81
      %p88 = scmp.eq.s32.totalorder %s20, 1
      %p89 = por %p87, %p88
      %p90 = scmp.ne.s32.totalorder %s82, %s85
      %p91 = scmp.eq.s32.totalorder %s20, 0
      %p92 = por %p90, %p91
      %p93 = scmp.ne.s32.totalorder %s82, %s85
      %p94 = scmp.eq.s32.totalorder %s25, 1
      %p95 = por %p93, %p94
      %p96 = scmp.ne.s32.totalorder %s85, %s86
      %p97 = scmp.eq.s32.totalorder %s25, 0
      %p98 = por %p96, %p97
      %p99 = scmp.ne.s32.totalorder %s85, %s86
      %p100 = scmp.eq.s32.totalorder %s26, 1
      %p101 = por %p99, %p100
      %p103 = scmp.ne.s32.totalorder %s86, %s102
      %p104 = scmp.eq.s32.totalorder %s26, 0
      %p105 = por %p103, %p104
      %s107 = sadd.s32 %s106, 1
      %p110 = scmp.eq.s32.totalorder %s20, 1
      %p111 = scmp.ne.s32.totalorder %s106, %s108
      %p112 = scmp.eq.s32.totalorder %s20, 0
      %p113 = por %p111, %p112
      %p114 = scmp.ne.s32.totalorder %s106, %s108
      %p115 = scmp.eq.s32.totalorder %s25, 1
      %p116 = por %p114, %p115
      %p117 = scmp.ne.s32.totalorder %s108, %s109
      %p118 = scmp.eq.s32.totalorder %s25, 0
      %p119 = por %p117, %p118
      %p120 = scmp.ne.s32.totalorder %s108, %s109
      %p121 = scmp.eq.s32.totalorder %s26, 1
      %p122 = por %p120, %p121
      %p124 = scmp.ne.s32.totalorder %s109, %s123
      %p125 = scmp.eq.s32.totalorder %s26, 0
      %p126 = por %p124, %p125
      %s128 = sadd.s32 %s127, 1
      %p131 = scmp.eq.s32.totalorder %s20, 1
      %p132 = scmp.ne.s32.totalorder %s127, %s129
      %p133 = scmp.eq.s32.totalorder %s20, 0
      %p134 = por %p132, %p133
      %p135 = scmp.ne.s32.totalorder %s127, %s129
      %p136 = scmp.eq.s32.totalorder %s25, 1
      %p137 = por %p135, %p136
      %p138 = scmp.ne.s32.totalorder %s129, %s130
      %p139 = scmp.eq.s32.totalorder %s25, 0
      %p140 = por %p138, %p139
      %p141 = scmp.ne.s32.totalorder %s129, %s130
      %p142 = scmp.eq.s32.totalorder %s26, 1
      %p143 = por %p141, %p142
      %p145 = scmp.ne.s32.totalorder %s130, %s144
      %p146 = scmp.eq.s32.totalorder %s26, 0
      %p147 = por %p145, %p146
      %s148 = ssub.s32 %s20, %s27
      %p149 = scmp.eq.s32.totalorder %s148, 0
      %s151 = sadd.s32 %s150, 1
      %s152 = scalar_select %p149, %s150, %s151
      %p155 = pneg %p149
      %p156 = scmp.eq.s32.totalorder %s20, 1
      %p157 = por %p155, %p156
      %p158 = scmp.ne.s32.totalorder %s150, %s153
      %p159 = scmp.eq.s32.totalorder %s20, 0
      %p160 = por %p158, %p159
      %p161 = scmp.ne.s32.totalorder %s150, %s153
      %p162 = scmp.eq.s32.totalorder %s25, 1
      %p163 = por %p161, %p162
      %p164 = scmp.ne.s32.totalorder %s153, %s154
      %p165 = scmp.eq.s32.totalorder %s25, 0
      %p166 = por %p164, %p165
      %p167 = scmp.ne.s32.totalorder %s153, %s154
      %p168 = scmp.eq.s32.totalorder %s26, 1
      %p169 = por %p167, %p168
      %p171 = scmp.ne.s32.totalorder %s154, %s170
      %p172 = scmp.eq.s32.totalorder %s26, 0
      %p173 = por %p171, %p172
      %s174 = ssub.s32 %s20, %s27
      %p175 = scmp.eq.s32.totalorder %s174, 0
      %s177 = sadd.s32 %s176, 1
      %s178 = scalar_select %p175, %s176, %s177
      %p181 = pneg %p175
      %p182 = scmp.eq.s32.totalorder %s20, 1
      %p183 = por %p181, %p182
      %p184 = scmp.ne.s32.totalorder %s176, %s179
      %p185 = scmp.eq.s32.totalorder %s20, 0
      %p186 = por %p184, %p185
      %p187 = scmp.ne.s32.totalorder %s176, %s179
      %p188 = scmp.eq.s32.totalorder %s25, 1
      %p189 = por %p187, %p188
      %p190 = scmp.ne.s32.totalorder %s179, %s180
      %p191 = scmp.eq.s32.totalorder %s25, 0
      %p192 = por %p190, %p191
      %p193 = scmp.ne.s32.totalorder %s179, %s180
      %p194 = scmp.eq.s32.totalorder %s26, 1
      %p195 = por %p193, %p194
      %p197 = scmp.ne.s32.totalorder %s180, %s196
      %p198 = scmp.eq.s32.totalorder %s26, 0
      %p199 = por %p197, %p198
      %s200 = ssub.s32 %s20, %s27
      %p201 = scmp.eq.s32.totalorder %s200, 0
      %s203 = sadd.s32 %s202, 1
      %s204 = scalar_select %p201, %s202, %s203
      %p207 = pneg %p201
      %p208 = scmp.eq.s32.totalorder %s20, 1
      %p209 = por %p207, %p208
      %p210 = scmp.ne.s32.totalorder %s202, %s205
      %p211 = scmp.eq.s32.totalorder %s20, 0
      %p212 = por %p210, %p211
      %p213 = scmp.ne.s32.totalorder %s202, %s205
      %p214 = scmp.eq.s32.totalorder %s25, 1
      %p215 = por %p213, %p214
      %p216 = scmp.ne.s32.totalorder %s205, %s206
      %p217 = scmp.eq.s32.totalorder %s25, 0
      %p218 = por %p216, %p217
      %p219 = scmp.ne.s32.totalorder %s205, %s206
      %p220 = scmp.eq.s32.totalorder %s26, 1
      %p221 = por %p219, %p220
      %p223 = scmp.ne.s32.totalorder %s206, %s222
      %p224 = scmp.eq.s32.totalorder %s26, 0
      %p225 = por %p223, %p224
      %p226 = scmp.le.s32.totalorder 1, %s20
      %p227 = scmp.lt.s32.totalorder %s20, 3
      %p228 = pnand %p226, %p227
      %p229 = pneg %p228
      // Predicated region
      $region9: #{tpu_custom_call.1} parent=5 // pred_check
        _
      $region10: #{tpu_custom_call.1} parent=5 // pred_check_branch
        %231 = sbr.rel (%p228) target = $region12
      $region11: #{tpu_custom_call.1} parent=5 // pred_region
        %s232 = ssub.s32 %s20, 1
        // Predicated region
        $region13: #{tpu_custom_call.1} parent=11 // pred_check
          %p233 = pneg %p119
        $region14: #{tpu_custom_call.1} parent=11 // pred_check_branch
          %235 = sbr.rel (%p233) target = $region16
        $region15: #{tpu_custom_call.1} parent=11 // pred_region
          _
        $region16: #{tpu_custom_call.1} parent=11 // pred_fallthru
          _
        // Predicated region
        $region17: #{tpu_custom_call.1} parent=11 // pred_check
          %p236 = pneg %p140
        $region18: #{tpu_custom_call.1} parent=11 // pred_check_branch
          %238 = sbr.rel (%p236) target = $region20
        $region19: #{tpu_custom_call.1} parent=11 // pred_region
          _
        $region20: #{tpu_custom_call.1} parent=11 // pred_fallthru
          _
      $region12: #{tpu_custom_call.1} parent=5 // pred_fallthru
        _
      %p239 = scmp.lt.s32.totalorder %s20, 2
      // Predicated region
      $region21: #{tpu_custom_call.1} parent=5 // pred_check
        %p240 = pneg %p239
      $region22: #{tpu_custom_call.1} parent=5 // pred_check_branch
        %242 = sbr.rel (%p240) target = $region24
      $region23: #{tpu_custom_call.1} parent=5 // pred_region
        // Predicated region
        $region25: #{tpu_custom_call.1} parent=23 // pred_check
          %p243 = pneg %p40
        $region26: #{tpu_custom_call.1} parent=23 // pred_check_branch
          %245 = sbr.rel (%p243) target = $region28
        $region27: #{tpu_custom_call.1} parent=23 // pred_region
          %s246 = sand.u32 %s30, 1
          %s247 = scalar_lea.sflag [#allocation3], %s246
          %s248 = sand.u32 %s30, 1
          %s249 = smul.addr %s248, 64
          %s250 = scalar_lea.vmem [#allocation2], %s249
          %s252 = ssub.s32 1024, 1024
          %253 = vsyncadd %s247, %s252
          %s254 = smul.addr %s20, 8
          %s255 = smul.addr %s254, 128
          %s256 = scalar_lea.hbm %s0, %s255
          %s257 = sshll.u32 %s250, 4
          %s258 = int_to_ptr.vmem [resolvable:$true] %s257
          %263 = dma.hbm_to_vmem [thread:$0]  %s256, 1024, %s258, %s247, 256, 256, 16
        $region28: #{tpu_custom_call.1} parent=23 // pred_fallthru
          _
        // Predicated region
        $region29: #{tpu_custom_call.1} parent=23 // pred_check
          %p264 = pneg %p66
        $region30: #{tpu_custom_call.1} parent=23 // pred_check_branch
          %266 = sbr.rel (%p264) target = $region32
        $region31: #{tpu_custom_call.1} parent=23 // pred_region
          %s267 = sand.u32 %s20, 1
          %s268 = scalar_lea.sflag [#allocation5], %s267
          %s269 = sand.u32 %s56, 1
          %s270 = smul.addr %s269, 192
          %s271 = scalar_lea.vmem [#allocation4], %s270
          %s273 = ssub.s32 3072, 3072
          %274 = vsyncadd %s268, %s273
          %s275 = smul.addr %s20, 24
          %s276 = smul.addr %s275, 128
          %s277 = scalar_lea.hbm %s1, %s276
          %s278 = sshll.u32 %s271, 4
          %s279 = int_to_ptr.vmem [resolvable:$true] %s278
          %284 = dma.hbm_to_vmem [thread:$0]  %s277, 3072, %s279, %s268, 768, 768, 48
        $region32: #{tpu_custom_call.1} parent=23 // pred_fallthru
          _
        // Predicated region
        $region33: #{tpu_custom_call.1} parent=23 // pred_check
          %p285 = pneg %p92
        $region34: #{tpu_custom_call.1} parent=23 // pred_check_branch
          %287 = sbr.rel (%p285) target = $region36
        $region35: #{tpu_custom_call.1} parent=23 // pred_region
          %s288 = sand.u32 %s20, 1
          %s289 = scalar_lea.sflag [#allocation5], %s288
          %s290 = sand.u32 %s82, 1
          %s291 = smul.addr %s290, 704
          %s292 = scalar_lea.vmem [#allocation6], %s291
          %s294 = ssub.s32 11264, 11264
          %295 = vsyncadd %s289, %s294
          %s296 = smul.addr %s20, 88
          %s297 = smul.addr %s296, 128
          %s298 = scalar_lea.hbm %s2, %s297
          %s299 = sshll.u32 %s292, 4
          %s300 = int_to_ptr.vmem [resolvable:$true] %s299
          %305 = dma.hbm_to_vmem [thread:$0]  %s298, 11264, %s300, %s289, 2816, 2816, 176
        $region36: #{tpu_custom_call.1} parent=23 // pred_fallthru
          _
      $region24: #{tpu_custom_call.1} parent=5 // pred_fallthru
        _
      %p306 = scmp.le.s32.totalorder 1, %s20
      %p307 = scmp.lt.s32.totalorder %s20, 3
      %p308 = pnand %p306, %p307
      %p309 = pneg %p308
      // Predicated region
      $region37: #{tpu_custom_call.1} parent=5 // pred_check
        _
      $region38: #{tpu_custom_call.1} parent=5 // pred_check_branch
        %311 = sbr.rel (%p308) target = $region40
      $region39: #{tpu_custom_call.1} parent=5 // pred_region
        %s312 = ssub.s32 %s20, 1
        %s313 = sand.u32 %s33, 1
        %s314 = scalar_lea.sflag [#allocation3], %s313
        %s315 = sand.u32 %s33, 1
        %s316 = smul.addr %s315, 64
        %s317 = scalar_lea.vmem [#allocation2], %s316
        // Predicated region
        $region41: #{tpu_custom_call.1} parent=39 // pred_check
          %p318 = pneg %p46
        $region42: #{tpu_custom_call.1} parent=39 // pred_check_branch
          %320 = sbr.rel (%p318) target = $region44
        $region43: #{tpu_custom_call.1} parent=39 // pred_region
          %321 = dma.done %s314, 1024
        $region44: #{tpu_custom_call.1} parent=39 // pred_fallthru
          _
        %s322 = sand.u32 %s25, 1
        %s323 = scalar_lea.sflag [#allocation5], %s322
        %s324 = sand.u32 %s59, 1
        %s325 = smul.addr %s324, 192
        %s326 = scalar_lea.vmem [#allocation4], %s325
        // Predicated region
        $region45: #{tpu_custom_call.1} parent=39 // pred_check
          %p327 = pneg %p72
        $region46: #{tpu_custom_call.1} parent=39 // pred_check_branch
          %329 = sbr.rel (%p327) target = $region48
        $region47: #{tpu_custom_call.1} parent=39 // pred_region
          %330 = dma.done %s323, 3072
        $region48: #{tpu_custom_call.1} parent=39 // pred_fallthru
          _
        %s331 = sand.u32 %s25, 1
        %s332 = scalar_lea.sflag [#allocation5], %s331
        %s333 = sand.u32 %s85, 1
        %s334 = smul.addr %s333, 704
        %s335 = scalar_lea.vmem [#allocation6], %s334
        // Predicated region
        $region49: #{tpu_custom_call.1} parent=39 // pred_check
          %p336 = pneg %p98
        $region50: #{tpu_custom_call.1} parent=39 // pred_check_branch
          %338 = sbr.rel (%p336) target = $region52
        $region51: #{tpu_custom_call.1} parent=39 // pred_region
          %339 = dma.done %s332, 11264
        $region52: #{tpu_custom_call.1} parent=39 // pred_fallthru
          _
        %s340 = sand.u32 %s33, 1
        %s341 = scalar_lea.sflag [#allocation3], %s340
        %s342 = sand.u32 %s33, 1
        %s343 = smul.addr %s342, 64
        %s344 = scalar_lea.vmem [#allocation2], %s343
        %p345 = pneg %p46
        %p346 = pneg %p43
        %s347 = sand.u32 %s25, 1
        %s348 = scalar_lea.sflag [#allocation5], %s347
        %s349 = sand.u32 %s59, 1
        %s350 = smul.addr %s349, 192
        %s351 = scalar_lea.vmem [#allocation4], %s350
        %p352 = pneg %p72
        %p353 = pneg %p69
        %s354 = sand.u32 %s25, 1
        %s355 = scalar_lea.sflag [#allocation5], %s354
        %s356 = sand.u32 %s85, 1
        %s357 = smul.addr %s356, 704
        %s358 = scalar_lea.vmem [#allocation6], %s357
        %p359 = pneg %p98
        %p360 = pneg %p95
        %p361 = pneg %p119
        %p362 = pneg %p116
        %p363 = pneg %p140
        %p364 = pneg %p137
        %p365 = pneg %p166
        %p366 = pneg %p163
        %p367 = scmp.lt.s32.totalorder %s25, 1
        %s368 = scalar_select %p367, %s25, 1
        %s369 = smul.addr %s368, 16
        %s370 = smul.addr %s369, 4
        %s371 = scalar_lea.vmem %s5, %s370
        %p372 = pneg %p192
        %p373 = pneg %p189
        %p374 = scmp.lt.s32.totalorder %s25, 1
        %s375 = scalar_select %p374, %s25, 1
        %s376 = smul.addr %s375, 48
        %s377 = smul.addr %s376, 4
        %s378 = scalar_lea.vmem %s6, %s377
        %p379 = pneg %p218
        %p380 = pneg %p215
        %p381 = scmp.lt.s32.totalorder %s25, 1
        %s382 = scalar_select %p381, %s25, 1
        %s383 = smul.addr %s382, 176
        %s384 = smul.addr %s383, 4
        %s385 = scalar_lea.vmem %s7, %s384
        %p386 = scmp.lt.s32.totalorder %s25, 1
        %s387 = scalar_select %p386, %s25, 1
        %s388 = smul.addr %s387, 16
        %s389 = smul.addr %s388, 4
        %s390 = scalar_lea.vmem %s5, %s389
        %p391 = scmp.lt.s32.totalorder %s25, 1
        %s392 = scalar_select %p391, %s25, 1
        %s393 = smul.addr %s392, 48
        %s394 = smul.addr %s393, 4
        %s395 = scalar_lea.vmem %s6, %s394
        %p396 = scmp.lt.s32.totalorder %s25, 1
        %s397 = scalar_select %p396, %s25, 1
        %s398 = smul.addr %s397, 176
        %s399 = smul.addr %s398, 4
        %s400 = scalar_lea.vmem %s7, %s399
        %s402 = scvt.s32.f32 %s25
        %v403 = vld [vmem:[%s317] sm:$0xff]
        %v404 = vld [vmem:[%s317 + $0x8] sm:$0xff]
        %v405 = vld [vmem:[%s317 + $0x10] sm:$0xff]
        %v406 = vld [vmem:[%s317 + $0x18] sm:$0xff]
        %v407 = vld [vmem:[%s317 + $0x20] sm:$0xff]
        %v408 = vld [vmem:[%s317 + $0x28] sm:$0xff]
        %v409 = vld [vmem:[%s317 + $0x30] sm:$0xff]
        %v410 = vld [vmem:[%s317 + $0x38] sm:$0xff]
        %v411 = vpack.c.bf16 %v405, %v403
        %v412 = vpack.c.bf16 %v406, %v404
        %v413 = vpack.c.bf16 %v409, %v407
        %v414 = vpack.c.bf16 %v410, %v408
        %v415 = vld [vmem:[%s3] sm:$0xf]
        %v416 = vld [vmem:[%s3 + $0x4] sm:$0xf]
        %v417 = vld [vmem:[%s3 + $0x8] sm:$0xf]
        %v418 = vld [vmem:[%s3 + $0xc] sm:$0xf]
        %v419 = vld [vmem:[%s4] sm:$0xff]
        %v420 = vld [vmem:[%s4 + $0x8] sm:$0xff]
        %v421 = vld [vmem:[%s4 + $0x10] sm:$0xff]
        %v422 = vld [vmem:[%s4 + $0x18] sm:$0xff]
        %424 = vset.pattern.permute.xlu0 0
        %425 = vperm.xlu0 %424, %v419
        %v426 = vpop.permute.xlu0 %425
        %429 = vset.pattern.permute.xlu0 0
        %430 = vperm.xlu0 %429, %v420
        %v431 = vpop.permute.xlu0 %430
        %434 = vset.pattern.permute.xlu0 0
        %435 = vperm.xlu0 %434, %v421
        %v436 = vpop.permute.xlu0 %435
        %439 = vset.pattern.permute.xlu0 0
        %440 = vperm.xlu0 %439, %v422
        %v441 = vpop.permute.xlu0 %440
        %v447 = vunpack.c.l.b16 %v415
        %v448 = vunpack.c.l.b16 %v416
        %v449 = vunpack.c.l.b16 %v417
        %v450 = vunpack.c.l.b16 %v418
        %v451 = vpack.c.b16 %v448, %v447
        %v452 = vpack.c.b16 %v450, %v449
        %vm453 = vcmask 261120
        %v455 = vsel %vm453, %v451, 0
        %v458 = vsel %vm453, %v452, 0
        %460 = vmatprep.subr.bf16.mxu0 %v412
        %461 = vmatpush1.bf16.msra.mxu0 %v411
        %462 = vmatprep.subr.bf16.mxu0 %v414
        %463 = vmatpush1.bf16.msra.mxu0 %v413
        %464 = vmatprep.subr.bf16.mxu0 0
        %465 = vmatpush1.bf16.msra.mxu0 0
        %466 = vmatprep.subr.bf16.mxu0 0
        %467 = vmatpush1.bf16.msra.mxu0 0
        %468 = vmatprep.subr.bf16.mxu0 0
        %469 = vmatpush1.bf16.msra.mxu0 0
        %470 = vmatprep.subr.bf16.mxu0 0
        %471 = vmatpush1.bf16.msra.mxu0 0
        %472 = vmatprep.subr.bf16.mxu0 0
        %473 = vmatpush1.bf16.msra.mxu0 0
        %474 = vmatprep.subr.bf16.mxu0 0
        %475 = vmatpush1.bf16.msra.mxu0 0
        %476 = vmatprep.subr.bf16.mxu0 0
        %477 = vmatpush1.bf16.msra.mxu0 0
        %478 = vmatprep.subr.bf16.mxu0 0
        %479 = vmatpush1.bf16.msra.mxu0 0
        %480 = vmatprep.subr.bf16.mxu0 0
        %481 = vmatpush1.bf16.msra.mxu0 0
        %482 = vmatprep.subr.bf16.mxu0 0
        %483 = vmatpush1.bf16.msra.mxu0 0
        %484 = vmatprep.subr.bf16.mxu0 0
        %485 = vmatpush1.bf16.msra.mxu0 0
        %486 = vmatprep.subr.bf16.mxu0 0
        %487 = vmatpush1.bf16.msra.mxu0 0
        %488 = vmatprep.subr.bf16.mxu0 0
        %489 = vmatpush1.bf16.msra.mxu0 0
        %490 = vmatprep.subr.bf16.mxu0 0
        %491 = vmatpush1.bf16.msra.mxu0 0
        %492 = vmatprep.mubr.bf16.mxu0 0
        %493 = vmatmul.mubr.bf16.gmra.mrb[0].mxu0 %v455
        %v494 = vpop.f32.mrb[0].mxu0
        %v495 = vadd.f32 %v426, %v494
        %v496 = vpop.f32.mrb[0].mxu0
        %v497 = vadd.f32 %v426, %v496
        %v498 = vpop.f32.mrb[0].mxu0
        %v499 = vadd.f32 %v431, %v498
        %v500 = vpop.f32.mrb[0].mxu0
        %v501 = vadd.f32 %v431, %v500
        %502 = vmatprep.mubr.bf16.mxu0 0
        %503 = vmatmul.mubr.bf16.gmra.mrb[0].mxu0 %v458
        %v504 = vpop.f32.mrb[0].mxu0
        %v505 = vadd.f32 %v436, %v504
        %v506 = vpop.f32.mrb[0].mxu0
        %v507 = vadd.f32 %v436, %v506
        %v508 = vpop.f32.mrb[0].mxu0
        %v509 = vadd.f32 %v441, %v508
        %v510 = vpop.f32.mrb[0].mxu0
        %v511 = vadd.f32 %v441, %v510
        %512 = vdwg.mxu0
        %v513 = vlaneseq
        %v514 = vand.u32 %v513, 127
        %v515 = vadd.s32 %v514, 128
        %v516 = vcvt.s32.f32 %v514
        %v517 = vcvt.s32.f32 %v515
        %v518 = vadd.f32 %v516, 0.5
        %v519 = vadd.f32 %v517, 0.5
        %v520 = vmul.f32 %v518, 0.07692308
        %v521 = vmul.f32 %v519, 0.07692308
        %v522 = vfloor.f32 %v520
        %v523 = vfloor.f32 %v521
        %v524 = vmul.f32 %v522, 13.0
        %v525 = vmul.f32 %v523, 13.0
        %v526 = vsub.f32 %v516, %v524
        %v527 = vsub.f32 %v517, %v525
        %v528 = vlaneseq
        %v529 = vshrl.u32 %v528, 7
        %vm530 = vcmp.eq.s32.totalorder %v529, 0
        %vm531 = vcmp.eq.s32.totalorder %v529, 1
        %v532 = vsel %vm531, 156.0, 373.0
        %v533 = vsel %vm530, 116.0, %v532
        %v534 = vsel %vm531, 198.0, 326.0
        %v535 = vsel %vm530, 90.0, %v534
        %v536 = vstv %s402
        %vm537 = vcmask 1042432
        %vm538 = vcmask 333828
        %vm539 = vmor %vm538, %vm537
        %540 = vst.msk [vmem:[%s390] sm:$0x77] %vm539, %v536
        %v541 = vsub.f32 0.0, %v495
        %v542 = vsub.f32 0.0, %v497
        %v543 = vmul.f32 %v541, 1.442695
        %v544 = vpow.pop %v543
        %v545 = vmul.f32 %v542, 1.442695
        %v546 = vpow.pop %v545
        %v547 = vadd.f32 %v544, 1.0
        %v548 = vadd.f32 %v546, 1.0
        %v549 = vrcp.pop %v547
        %v550 = vrcp.pop %v548
        %v553 = vcombine.low %v549, %v550
        %s555 = scalar_lea.vmem %s390, 8
        %556 = vst.msk [vmem:[%s555] sm:$0x77] %vm539, %v553
        %v557 = vadd.f32 %v526, %v495
        %v558 = vadd.f32 %v527, %v497
        %v559 = vmul.f32 %v557, 32.0
        %v560 = vmul.f32 %v558, 32.0
        %v563 = vcombine.low %v559, %v560
        %v564 = vcombine.high %v559, %v560
        %vm565 = vcmask 1040384
        %vm566 = vcmask 1044484
        %vm567 = vmor %vm565, %vm566
        %v568 = vrot.slane %v563, 7
        %v569 = vrot.slane %v568, 4
        %v570 = vrot.slane %v564, 7
        %v571 = vsel %vm567, %v569, %v570
        %s573 = scalar_lea.vmem %s390, 16
        %574 = vst.msk [vmem:[%s573] sm:$0x77] %vm539, %v571
        %v575 = vadd.f32 %v522, %v495
        %v576 = vadd.f32 %v523, %v497
        %v577 = vmul.f32 %v575, 32.0
        %v578 = vmul.f32 %v576, 32.0
        %v581 = vcombine.low %v577, %v578
        %v582 = vcombine.high %v577, %v578
        %v583 = vrot.slane %v581, 7
        %v584 = vrot.slane %v583, 4
        %v585 = vrot.slane %v582, 7
        %v586 = vsel %vm567, %v584, %v585
        %s588 = scalar_lea.vmem %s390, 24
        %589 = vst.msk [vmem:[%s588] sm:$0x77] %vm539, %v586
        %v590 = vmul.f32 %v499, 1.442695
        %v591 = vpow.pop %v590
        %v592 = vmul.f32 %v501, 1.442695
        %v593 = vpow.pop %v592
        %v594 = vmul.f32 %v533, %v591
        %v595 = vmul.f32 %v533, %v593
        %v598 = vcombine.low %v594, %v595
        %s600 = scalar_lea.vmem %s390, 32
        %601 = vst.msk [vmem:[%s600] sm:$0x77] %vm539, %v598
        %v604 = vrot.slane %v591, 3
        %v605 = vrot.slane %v593, 3
        %v608 = vmul.f32 %v535, %v604
        %v609 = vmul.f32 %v535, %v605
        %v612 = vcombine.low %v608, %v609
        %s614 = scalar_lea.vmem %s390, 40
        %615 = vst.msk [vmem:[%s614] sm:$0x77] %vm539, %v612
        %v618 = vrot.slane %v505, 3
        %v619 = vrot.slane %v507, 3
        %v622 = vmax.f32 %v505, %v618
        %v623 = vmax.f32 %v507, %v619
        %v624 = vmax.f32 %v622, %v509
        %v625 = vmax.f32 %v623, %v511
        %vm626 = vcmp.ge.f32.partialorder %v505, %v624
        %vm627 = vcmp.ge.f32.partialorder %v507, %v625
        %v630 = vrot.slane %v624, 5
        %v631 = vrot.slane %v625, 5
        %vm634 = vcmp.ge.f32.partialorder %v505, %v630
        %vm635 = vcmp.ge.f32.partialorder %v507, %v631
        %v636 = vsel %vm634, 1.0, 2.0
        %v637 = vsel %vm635, 1.0, 2.0
        %v640 = vrot.slane %v636, 3
        %v641 = vrot.slane %v637, 3
        %v644 = vsel %vm626, 0.0, %v640
        %v645 = vsel %vm627, 0.0, %v641
        %v648 = vcombine.low %v644, %v645
        %s650 = scalar_lea.vmem %s390, 48
        %651 = vst.msk [vmem:[%s650] sm:$0x77] %vm539, %v648
        %vm652 = vcmp.gt.f32.partialorder %v495, 0.20067069
        %vm653 = vcmp.gt.f32.partialorder %v497, 0.20067069
        %v654 = vsel %vm652, 1, 0
        %v655 = vsel %vm653, 1, 0
        %v656 = vcvt.s32.f32 %v654
        %v657 = vcvt.s32.f32 %v655
        %v660 = vcombine.low %v656, %v657
        %s662 = scalar_lea.vmem %s390, 56
        %663 = vst.msk [vmem:[%s662] sm:$0x77] %vm539, %v660
        %v664 = vld [vmem:[%s326] sm:$0xff]
        %v665 = vld [vmem:[%s326 + $0x8] sm:$0xff]
        %v666 = vld [vmem:[%s326 + $0x10] sm:$0xff]
        %v667 = vld [vmem:[%s326 + $0x18] sm:$0xff]
        %v668 = vld [vmem:[%s326 + $0x20] sm:$0xff]
        %v669 = vld [vmem:[%s326 + $0x28] sm:$0xff]
        %v670 = vld [vmem:[%s326 + $0x30] sm:$0xff]
        %v671 = vld [vmem:[%s326 + $0x38] sm:$0xff]
        %v672 = vld [vmem:[%s326 + $0x40] sm:$0xff]
        %v673 = vld [vmem:[%s326 + $0x48] sm:$0xff]
        %v674 = vld [vmem:[%s326 + $0x50] sm:$0xff]
        %v675 = vld [vmem:[%s326 + $0x58] sm:$0xff]
        %v676 = vld [vmem:[%s326 + $0x60] sm:$0xff]
        %v677 = vld [vmem:[%s326 + $0x68] sm:$0xff]
        %v678 = vld [vmem:[%s326 + $0x70] sm:$0xff]
        %v679 = vld [vmem:[%s326 + $0x78] sm:$0xff]
        %v680 = vld [vmem:[%s326 + $0x80] sm:$0xff]
        %v681 = vld [vmem:[%s326 + $0x88] sm:$0xff]
        %v682 = vld [vmem:[%s326 + $0x90] sm:$0xff]
        %v683 = vld [vmem:[%s326 + $0x98] sm:$0xff]
        %v684 = vld [vmem:[%s326 + $0xa0] sm:$0xff]
        %v685 = vld [vmem:[%s326 + $0xa8] sm:$0xff]
        %v686 = vld [vmem:[%s326 + $0xb0] sm:$0xff]
        %v687 = vld [vmem:[%s326 + $0xb8] sm:$0xff]
        %v688 = vpack.c.bf16 %v670, %v664
        %v689 = vpack.c.bf16 %v671, %v665
        %v690 = vpack.c.bf16 %v672, %v666
        %v691 = vpack.c.bf16 %v673, %v667
        %v692 = vpack.c.bf16 %v674, %v668
        %v693 = vpack.c.bf16 %v675, %v669
        %v694 = vpack.c.bf16 %v682, %v676
        %v695 = vpack.c.bf16 %v683, %v677
        %v696 = vpack.c.bf16 %v684, %v678
        %v697 = vpack.c.bf16 %v685, %v679
        %v698 = vpack.c.bf16 %v686, %v680
        %v699 = vpack.c.bf16 %v687, %v681
        %s700 = scalar_lea.vmem %s3, 16
        %v701 = vld [vmem:[%s700] sm:$0xf]
        %v702 = vld [vmem:[%s700 + $0x4] sm:$0xf]
        %v703 = vld [vmem:[%s700 + $0x8] sm:$0xf]
        %v704 = vld [vmem:[%s700 + $0xc] sm:$0xf]
        %s705 = scalar_lea.vmem %s4, 32
        %v706 = vld [vmem:[%s705] sm:$0xff]
        %v707 = vld [vmem:[%s705 + $0x8] sm:$0xff]
        %v708 = vld [vmem:[%s705 + $0x10] sm:$0xff]
        %v709 = vld [vmem:[%s705 + $0x18] sm:$0xff]
        %711 = vset.pattern.permute.xlu0 0
        %712 = vperm.xlu0 %711, %v706
        %v713 = vpop.permute.xlu0 %712
        %716 = vset.pattern.permute.xlu0 0
        %717 = vperm.xlu0 %716, %v707
        %v718 = vpop.permute.xlu0 %717
        %721 = vset.pattern.permute.xlu0 0
        %722 = vperm.xlu0 %721, %v708
        %v723 = vpop.permute.xlu0 %722
        %726 = vset.pattern.permute.xlu0 0
        %727 = vperm.xlu0 %726, %v709
        %v728 = vpop.permute.xlu0 %727
        %v734 = vunpack.c.l.b16 %v701
        %v735 = vunpack.c.l.b16 %v702
        %v736 = vunpack.c.l.b16 %v703
        %v737 = vunpack.c.l.b16 %v704
        %v738 = vpack.c.b16 %v735, %v734
        %v739 = vpack.c.b16 %v737, %v736
        %v741 = vsel %vm453, %v738, 0
        %v744 = vsel %vm453, %v739, 0
        %746 = vmatprep.subr.bf16.mxu0 %v689
        %747 = vmatpush1.bf16.msra.mxu0 %v688
        %748 = vmatprep.subr.bf16.mxu0 %v695
        %749 = vmatpush1.bf16.msra.mxu0 %v694
        %750 = vmatprep.subr.bf16.mxu0 0
        %751 = vmatpush1.bf16.msra.mxu0 0
        %752 = vmatprep.subr.bf16.mxu0 0
        %753 = vmatpush1.bf16.msra.mxu0 0
        %754 = vmatprep.subr.bf16.mxu0 0
        %755 = vmatpush1.bf16.msra.mxu0 0
        %756 = vmatprep.subr.bf16.mxu0 0
        %757 = vmatpush1.bf16.msra.mxu0 0
        %758 = vmatprep.subr.bf16.mxu0 0
        %759 = vmatpush1.bf16.msra.mxu0 0
        %760 = vmatprep.subr.bf16.mxu0 0
        %761 = vmatpush1.bf16.msra.mxu0 0
        %762 = vmatprep.subr.bf16.mxu0 0
        %763 = vmatpush1.bf16.msra.mxu0 0
        %764 = vmatprep.subr.bf16.mxu0 0
        %765 = vmatpush1.bf16.msra.mxu0 0
        %766 = vmatprep.subr.bf16.mxu0 0
        %767 = vmatpush1.bf16.msra.mxu0 0
        %768 = vmatprep.subr.bf16.mxu0 0
        %769 = vmatpush1.bf16.msra.mxu0 0
        %770 = vmatprep.subr.bf16.mxu0 0
        %771 = vmatpush1.bf16.msra.mxu0 0
        %772 = vmatprep.subr.bf16.mxu0 0
        %773 = vmatpush1.bf16.msra.mxu0 0
        %774 = vmatprep.subr.bf16.mxu0 0
        %775 = vmatpush1.bf16.msra.mxu0 0
        %776 = vmatprep.subr.bf16.mxu0 0
        %777 = vmatpush1.bf16.msra.mxu0 0
        %778 = vmatprep.mubr.bf16.mxu0 0
        %779 = vmatmul.mubr.bf16.gmra.mrb[0].mxu0 %v741
        %v780 = vpop.f32.mrb[0].mxu0
        %v781 = vadd.f32 %v713, %v780
        %v782 = vpop.f32.mrb[0].mxu0
        %v783 = vadd.f32 %v713, %v782
        %v784 = vpop.f32.mrb[0].mxu0
        %v785 = vadd.f32 %v718, %v784
        %v786 = vpop.f32.mrb[0].mxu0
        %v787 = vadd.f32 %v718, %v786
        %788 = vmatprep.mubr.bf16.mxu0 0
        %789 = vmatmul.mubr.bf16.gmra.mrb[0].mxu0 %v744
        %v790 = vpop.f32.mrb[0].mxu0
        %v791 = vadd.f32 %v723, %v790
        %v792 = vpop.f32.mrb[0].mxu0
        %v793 = vadd.f32 %v723, %v792
        %v794 = vpop.f32.mrb[0].mxu0
        %v795 = vadd.f32 %v728, %v794
        %v796 = vpop.f32.mrb[0].mxu0
        %v797 = vadd.f32 %v728, %v796
        %798 = vdwg.mxu0
        %799 = vmatprep.subr.bf16.mxu0 %v691
        %800 = vmatpush1.bf16.msra.mxu0 %v690
        %801 = vmatprep.subr.bf16.mxu0 %v697
        %802 = vmatpush1.bf16.msra.mxu0 %v696
        %803 = vmatprep.subr.bf16.mxu0 0
        %804 = vmatpush1.bf16.msra.mxu0 0
        %805 = vmatprep.subr.bf16.mxu0 0
        %806 = vmatpush1.bf16.msra.mxu0 0
        %807 = vmatprep.subr.bf16.mxu0 0
        %808 = vmatpush1.bf16.msra.mxu0 0
        %809 = vmatprep.subr.bf16.mxu0 0
        %810 = vmatpush1.bf16.msra.mxu0 0
        %811 = vmatprep.subr.bf16.mxu0 0
        %812 = vmatpush1.bf16.msra.mxu0 0
        %813 = vmatprep.subr.bf16.mxu0 0
        %814 = vmatpush1.bf16.msra.mxu0 0
        %815 = vmatprep.subr.bf16.mxu0 0
        %816 = vmatpush1.bf16.msra.mxu0 0
        %817 = vmatprep.subr.bf16.mxu0 0
        %818 = vmatpush1.bf16.msra.mxu0 0
        %819 = vmatprep.subr.bf16.mxu0 0
        %820 = vmatpush1.bf16.msra.mxu0 0
        %821 = vmatprep.subr.bf16.mxu0 0
        %822 = vmatpush1.bf16.msra.mxu0 0
        %823 = vmatprep.subr.bf16.mxu0 0
        %824 = vmatpush1.bf16.msra.mxu0 0
        %825 = vmatprep.subr.bf16.mxu0 0
        %826 = vmatpush1.bf16.msra.mxu0 0
        %827 = vmatprep.subr.bf16.mxu0 0
        %828 = vmatpush1.bf16.msra.mxu0 0
        %829 = vmatprep.subr.bf16.mxu0 0
        %830 = vmatpush1.bf16.msra.mxu0 0
        %831 = vmatprep.mubr.bf16.mxu0 0
        %832 = vmatmul.mubr.bf16.gmra.mrb[0].mxu0 %v741
        %v833 = vpop.f32.mrb[0].mxu0
        %v834 = vadd.f32 %v713, %v833
        %v835 = vpop.f32.mrb[0].mxu0
        %v836 = vadd.f32 %v713, %v835
        %v837 = vpop.f32.mrb[0].mxu0
        %v838 = vadd.f32 %v718, %v837
        %v839 = vpop.f32.mrb[0].mxu0
        %v840 = vadd.f32 %v718, %v839
        %841 = vmatprep.mubr.bf16.mxu0 0
        %842 = vmatmul.mubr.bf16.gmra.mrb[0].mxu0 %v744
        %v843 = vpop.f32.mrb[0].mxu0
        %v844 = vadd.f32 %v723, %v843
        %v845 = vpop.f32.mrb[0].mxu0
        %v846 = vadd.f32 %v723, %v845
        %v847 = vpop.f32.mrb[0].mxu0
        %v848 = vadd.f32 %v728, %v847
        %v849 = vpop.f32.mrb[0].mxu0
        %v850 = vadd.f32 %v728, %v849
        %851 = vdwg.mxu0
        %852 = vmatprep.subr.bf16.mxu0 %v693
        %853 = vmatpush1.bf16.msra.mxu0 %v692
        %854 = vmatprep.subr.bf16.mxu0 %v699
        %855 = vmatpush1.bf16.msra.mxu0 %v698
        %856 = vmatprep.subr.bf16.mxu0 0
        %857 = vmatpush1.bf16.msra.mxu0 0
        %858 = vmatprep.subr.bf16.mxu0 0
        %859 = vmatpush1.bf16.msra.mxu0 0
        %860 = vmatprep.subr.bf16.mxu0 0
        %861 = vmatpush1.bf16.msra.mxu0 0
        %862 = vmatprep.subr.bf16.mxu0 0
        %863 = vmatpush1.bf16.msra.mxu0 0
        %864 = vmatprep.subr.bf16.mxu0 0
        %865 = vmatpush1.bf16.msra.mxu0 0
        %866 = vmatprep.subr.bf16.mxu0 0
        %867 = vmatpush1.bf16.msra.mxu0 0
        %868 = vmatprep.subr.bf16.mxu0 0
        %869 = vmatpush1.bf16.msra.mxu0 0
        %870 = vmatprep.subr.bf16.mxu0 0
        %871 = vmatpush1.bf16.msra.mxu0 0
        %872 = vmatprep.subr.bf16.mxu0 0
        %873 = vmatpush1.bf16.msra.mxu0 0
        %874 = vmatprep.subr.bf16.mxu0 0
        %875 = vmatpush1.bf16.msra.mxu0 0
        %876 = vmatprep.subr.bf16.mxu0 0
        %877 = vmatpush1.bf16.msra.mxu0 0
        %878 = vmatprep.subr.bf16.mxu0 0
        %879 = vmatpush1.bf16.msra.mxu0 0
        %880 = vmatprep.subr.bf16.mxu0 0
        %881 = vmatpush1.bf16.msra.mxu0 0
        %882 = vmatprep.subr.bf16.mxu0 0
        %883 = vmatpush1.bf16.msra.mxu0 0
        %884 = vmatprep.mubr.bf16.mxu0 0
        %885 = vmatmul.mubr.bf16.gmra.mrb[0].mxu0 %v741
        %v886 = vpop.f32.mrb[0].mxu0
        %v887 = vadd.f32 %v713, %v886
        %v888 = vpop.f32.mrb[0].mxu0
        %v889 = vadd.f32 %v713, %v888
        %v890 = vpop.f32.mrb[0].mxu0
        %v891 = vadd.f32 %v718, %v890
        %v892 = vpop.f32.mrb[0].mxu0
        %v893 = vadd.f32 %v718, %v892
        %894 = vmatprep.mubr.bf16.mxu0 0
        %895 = vmatmul.mubr.bf16.gmra.mrb[0].mxu0 %v744
        %v896 = vpop.f32.mrb[0].mxu0
        %v897 = vadd.f32 %v723, %v896
        %v898 = vpop.f32.mrb[0].mxu0
        %v899 = vadd.f32 %v723, %v898
        %v900 = vpop.f32.mrb[0].mxu0
        %v901 = vadd.f32 %v728, %v900
        %v902 = vpop.f32.mrb[0].mxu0
        %v903 = vadd.f32 %v728, %v902
        %904 = vdwg.mxu0
        %v905 = vadd.s32 %v514, 256
        %v906 = vadd.s32 %v514, 384
        %v907 = vadd.s32 %v514, 512
        %v908 = vadd.s32 %v514, 640
        %v909 = vcvt.s32.f32 %v905
        %v910 = vcvt.s32.f32 %v906
        %v911 = vcvt.s32.f32 %v907
        %v912 = vcvt.s32.f32 %v908
        %v913 = vadd.f32 %v909, 0.5
        %v914 = vadd.f32 %v910, 0.5
        %v915 = vadd.f32 %v911, 0.5
        %v916 = vadd.f32 %v912, 0.5
        %v917 = vmul.f32 %v518, 0.03846154
        %v918 = vmul.f32 %v519, 0.03846154
        %v919 = vmul.f32 %v913, 0.03846154
        %v920 = vmul.f32 %v914, 0.03846154
        %v921 = vmul.f32 %v915, 0.03846154
        %v922 = vmul.f32 %v916, 0.03846154
        %v923 = vfloor.f32 %v917
        %v924 = vfloor.f32 %v918
        %v925 = vfloor.f32 %v919
        %v926 = vfloor.f32 %v920
        %v927 = vfloor.f32 %v921
        %v928 = vfloor.f32 %v922
        %v929 = vmul.f32 %v923, 26.0
        %v930 = vmul.f32 %v924, 26.0
        %v931 = vmul.f32 %v925, 26.0
        %v932 = vmul.f32 %v926, 26.0
        %v933 = vmul.f32 %v927, 26.0
        %v934 = vmul.f32 %v928, 26.0
        %v935 = vsub.f32 %v516, %v929
        %v936 = vsub.f32 %v517, %v930
        %v937 = vsub.f32 %v909, %v931
        %v938 = vsub.f32 %v910, %v932
        %v939 = vsub.f32 %v911, %v933
        %v940 = vsub.f32 %v912, %v934
        %v941 = vsel %vm531, 62.0, 59.0
        %v942 = vsel %vm530, 30.0, %v941
        %v943 = vsel %vm531, 45.0, 119.0
        %v944 = vsel %vm530, 61.0, %v943
        %945 = vst [vmem:[%s395] sm:$0x77] %v536
        %946 = vst [vmem:[%s395 + $0x8] sm:$0x77] %v536
        %vm947 = vcmask 292868
        %vm948 = vmor %vm947, %vm537
        %949 = vst.msk [vmem:[%s395 + $0x10] sm:$0x77] %vm948, %v536
        %v950 = vsub.f32 0.0, %v781
        %v951 = vsub.f32 0.0, %v783
        %v952 = vsub.f32 0.0, %v834
        %v953 = vsub.f32 0.0, %v836
        %v954 = vsub.f32 0.0, %v887
        %v955 = vsub.f32 0.0, %v889
        %v956 = vmul.f32 %v950, 1.442695
        %v957 = vpow.pop %v956
        %v958 = vmul.f32 %v951, 1.442695
        %v959 = vpow.pop %v958
        %v960 = vmul.f32 %v952, 1.442695
        %v961 = vpow.pop %v960
        %v962 = vmul.f32 %v953, 1.442695
        %v963 = vpow.pop %v962
        %v964 = vmul.f32 %v954, 1.442695
        %v965 = vpow.pop %v964
        %v966 = vmul.f32 %v955, 1.442695
        %v967 = vpow.pop %v966
        %v968 = vadd.f32 %v957, 1.0
        %v969 = vadd.f32 %v959, 1.0
        %v970 = vadd.f32 %v961, 1.0
        %v971 = vadd.f32 %v963, 1.0
        %v972 = vadd.f32 %v965, 1.0
        %v973 = vadd.f32 %v967, 1.0
        %v974 = vrcp.pop %v968
        %v975 = vrcp.pop %v969
        %v976 = vrcp.pop %v970
        %v977 = vrcp.pop %v971
        %v978 = vrcp.pop %v972
        %v979 = vrcp.pop %v973
        %v986 = vcombine.low %v974, %v975
        %v987 = vcombine.low %v976, %v977
        %v988 = vcombine.low %v978, %v979
        %s992 = scalar_lea.vmem %s395, 24
        %993 = vst [vmem:[%s992] sm:$0x77] %v986
        %994 = vst [vmem:[%s992 + $0x8] sm:$0x77] %v987
        %995 = vst.msk [vmem:[%s992 + $0x10] sm:$0x77] %vm948, %v988
        %v996 = vadd.f32 %v935, %v781
        %v997 = vadd.f32 %v936, %v783
        %v998 = vadd.f32 %v937, %v834
        %v999 = vadd.f32 %v938, %v836
        %v1000 = vadd.f32 %v939, %v887
        %v1001 = vadd.f32 %v940, %v889
        %v1002 = vmul.f32 %v996, 16.0
        %v1003 = vmul.f32 %v997, 16.0
        %v1004 = vmul.f32 %v998, 16.0
        %v1005 = vmul.f32 %v999, 16.0
        %v1006 = vmul.f32 %v1000, 16.0
        %v1007 = vmul.f32 %v1001, 16.0
        %v1014 = vcombine.low %v1002, %v1003
        %v1015 = vcombine.high %v1002, %v1003
        %v1016 = vcombine.low %v1004, %v1005
        %v1017 = vcombine.high %v1004, %v1005
        %v1018 = vcombine.low %v1006, %v1007
        %v1019 = vcombine.high %v1006, %v1007
        %v1020 = vrot.slane %v1014, 7
        %v1021 = vrot.slane %v1020, 4
        %v1022 = vrot.slane %v1015, 7
        %v1023 = vsel %vm567, %v1021, %v1022
        %v1024 = vrot.slane %v1016, 7
        %v1025 = vrot.slane %v1024, 4
        %v1026 = vrot.slane %v1017, 7
        %v1027 = vsel %vm567, %v1025, %v1026
        %v1028 = vrot.slane %v1018, 7
        %v1029 = vrot.slane %v1028, 4
        %v1030 = vrot.slane %v1019, 7
        %v1031 = vsel %vm567, %v1029, %v1030
        %s1035 = scalar_lea.vmem %s395, 48
        %1036 = vst [vmem:[%s1035] sm:$0x77] %v1023
        %1037 = vst [vmem:[%s1035 + $0x8] sm:$0x77] %v1027
        %1038 = vst.msk [vmem:[%s1035 + $0x10] sm:$0x77] %vm948, %v1031
        %v1039 = vadd.f32 %v923, %v781
        %v1040 = vadd.f32 %v924, %v783
        %v1041 = vadd.f32 %v925, %v834
        %v1042 = vadd.f32 %v926, %v836
        %v1043 = vadd.f32 %v927, %v887
        %v1044 = vadd.f32 %v928, %v889
        %v1045 = vmul.f32 %v1039, 16.0
        %v1046 = vmul.f32 %v1040, 16.0
        %v1047 = vmul.f32 %v1041, 16.0
        %v1048 = vmul.f32 %v1042, 16.0
        %v1049 = vmul.f32 %v1043, 16.0
        %v1050 = vmul.f32 %v1044, 16.0
        %v1057 = vcombine.low %v1045, %v1046
        %v1058 = vcombine.high %v1045, %v1046
        %v1059 = vcombine.low %v1047, %v1048
        %v1060 = vcombine.high %v1047, %v1048
        %v1061 = vcombine.low %v1049, %v1050
        %v1062 = vcombine.high %v1049, %v1050
        %v1063 = vrot.slane %v1057, 7
        %v1064 = vrot.slane %v1063, 4
        %v1065 = vrot.slane %v1058, 7
        %v1066 = vsel %vm567, %v1064, %v1065
        %v1067 = vrot.slane %v1059, 7
        %v1068 = vrot.slane %v1067, 4
        %v1069 = vrot.slane %v1060, 7
        %v1070 = vsel %vm567, %v1068, %v1069
        %v1071 = vrot.slane %v1061, 7
        %v1072 = vrot.slane %v1071, 4
        %v1073 = vrot.slane %v1062, 7
        %v1074 = vsel %vm567, %v1072, %v1073
        %s1078 = scalar_lea.vmem %s395, 72
        %1079 = vst [vmem:[%s1078] sm:$0x77] %v1066
        %1080 = vst [vmem:[%s1078 + $0x8] sm:$0x77] %v1070
        %1081 = vst.msk [vmem:[%s1078 + $0x10] sm:$0x77] %vm948, %v1074
        %v1082 = vmul.f32 %v785, 1.442695
        %v1083 = vpow.pop %v1082
        %v1084 = vmul.f32 %v787, 1.442695
        %v1085 = vpow.pop %v1084
        %v1086 = vmul.f32 %v838, 1.442695
        %v1087 = vpow.pop %v1086
        %v1088 = vmul.f32 %v840, 1.442695
        %v1089 = vpow.pop %v1088
        %v1090 = vmul.f32 %v891, 1.442695
        %v1091 = vpow.pop %v1090
        %v1092 = vmul.f32 %v893, 1.442695
        %v1093 = vpow.pop %v1092
        %v1094 = vmul.f32 %v942, %v1083
        %v1095 = vmul.f32 %v942, %v1085
        %v1096 = vmul.f32 %v942, %v1087
        %v1097 = vmul.f32 %v942, %v1089
        %v1098 = vmul.f32 %v942, %v1091
        %v1099 = vmul.f32 %v942, %v1093
        %v1106 = vcombine.low %v1094, %v1095
        %v1107 = vcombine.low %v1096, %v1097
        %v1108 = vcombine.low %v1098, %v1099
        %s1112 = scalar_lea.vmem %s395, 96
        %1113 = vst [vmem:[%s1112] sm:$0x77] %v1106
        %1114 = vst [vmem:[%s1112 + $0x8] sm:$0x77] %v1107
        %1115 = vst.msk [vmem:[%s1112 + $0x10] sm:$0x77] %vm948, %v1108
        %v1122 = vrot.slane %v1083, 3
        %v1123 = vrot.slane %v1085, 3
        %v1124 = vrot.slane %v1087, 3
        %v1125 = vrot.slane %v1089, 3
        %v1126 = vrot.slane %v1091, 3
        %v1127 = vrot.slane %v1093, 3
        %v1134 = vmul.f32 %v944, %v1122
        %v1135 = vmul.f32 %v944, %v1123
        %v1136 = vmul.f32 %v944, %v1124
        %v1137 = vmul.f32 %v944, %v1125
        %v1138 = vmul.f32 %v944, %v1126
        %v1139 = vmul.f32 %v944, %v1127
        %v1146 = vcombine.low %v1134, %v1135
        %v1147 = vcombine.low %v1136, %v1137
        %v1148 = vcombine.low %v1138, %v1139
        %s1152 = scalar_lea.vmem %s395, 120
        %1153 = vst [vmem:[%s1152] sm:$0x77] %v1146
        %1154 = vst [vmem:[%s1152 + $0x8] sm:$0x77] %v1147
        %1155 = vst.msk [vmem:[%s1152 + $0x10] sm:$0x77] %vm948, %v1148
        %v1162 = vrot.slane %v791, 3
        %v1163 = vrot.slane %v793, 3
        %v1164 = vrot.slane %v844, 3
        %v1165 = vrot.slane %v846, 3
        %v1166 = vrot.slane %v897, 3
        %v1167 = vrot.slane %v899, 3
        %v1174 = vmax.f32 %v791, %v1162
        %v1175 = vmax.f32 %v793, %v1163
        %v1176 = vmax.f32 %v844, %v1164
        %v1177 = vmax.f32 %v846, %v1165
        %v1178 = vmax.f32 %v897, %v1166
        %v1179 = vmax.f32 %v899, %v1167
        %v1180 = vmax.f32 %v1174, %v795
        %v1181 = vmax.f32 %v1175, %v797
        %v1182 = vmax.f32 %v1176, %v848
        %v1183 = vmax.f32 %v1177, %v850
        %v1184 = vmax.f32 %v1178, %v901
        %v1185 = vmax.f32 %v1179, %v903
        %vm1186 = vcmp.ge.f32.partialorder %v791, %v1180
        %vm1187 = vcmp.ge.f32.partialorder %v793, %v1181
        %vm1188 = vcmp.ge.f32.partialorder %v844, %v1182
        %vm1189 = vcmp.ge.f32.partialorder %v846, %v1183
        %vm1190 = vcmp.ge.f32.partialorder %v897, %v1184
        %vm1191 = vcmp.ge.f32.partialorder %v899, %v1185
        %v1198 = vrot.slane %v1180, 5
        %v1199 = vrot.slane %v1181, 5
        %v1200 = vrot.slane %v1182, 5
        %v1201 = vrot.slane %v1183, 5
        %v1202 = vrot.slane %v1184, 5
        %v1203 = vrot.slane %v1185, 5
        %vm1210 = vcmp.ge.f32.partialorder %v791, %v1198
        %vm1211 = vcmp.ge.f32.partialorder %v793, %v1199
        %vm1212 = vcmp.ge.f32.partialorder %v844, %v1200
        %vm1213 = vcmp.ge.f32.partialorder %v846, %v1201
        %vm1214 = vcmp.ge.f32.partialorder %v897, %v1202
        %vm1215 = vcmp.ge.f32.partialorder %v899, %v1203
        %v1216 = vsel %vm1210, 1.0, 2.0
        %v1217 = vsel %vm1211, 1.0, 2.0
        %v1218 = vsel %vm1212, 1.0, 2.0
        %v1219 = vsel %vm1213, 1.0, 2.0
        %v1220 = vsel %vm1214, 1.0, 2.0
        %v1221 = vsel %vm1215, 1.0, 2.0
        %v1228 = vrot.slane %v1216, 3
        %v1229 = vrot.slane %v1217, 3
        %v1230 = vrot.slane %v1218, 3
        %v1231 = vrot.slane %v1219, 3
        %v1232 = vrot.slane %v1220, 3
        %v1233 = vrot.slane %v1221, 3
        %v1240 = vsel %vm1186, 0.0, %v1228
        %v1241 = vsel %vm1187, 0.0, %v1229
        %v1242 = vsel %vm1188, 0.0, %v1230
        %v1243 = vsel %vm1189, 0.0, %v1231
        %v1244 = vsel %vm1190, 0.0, %v1232
        %v1245 = vsel %vm1191, 0.0, %v1233
        %v1252 = vcombine.low %v1240, %v1241
        %v1253 = vcombine.low %v1242, %v1243
        %v1254 = vcombine.low %v1244, %v1245
        %s1258 = scalar_lea.vmem %s395, 144
        %1259 = vst [vmem:[%s1258] sm:$0x77] %v1252
        %1260 = vst [vmem:[%s1258 + $0x8] sm:$0x77] %v1253
        %1261 = vst.msk [vmem:[%s1258 + $0x10] sm:$0x77] %vm948, %v1254
        %vm1262 = vcmp.gt.f32.partialorder %v781, 0.20067069
        %vm1263 = vcmp.gt.f32.partialorder %v783, 0.20067069
        %vm1264 = vcmp.gt.f32.partialorder %v834, 0.20067069
        %vm1265 = vcmp.gt.f32.partialorder %v836, 0.20067069
        %vm1266 = vcmp.gt.f32.partialorder %v887, 0.20067069
        %vm1267 = vcmp.gt.f32.partialorder %v889, 0.20067069
        %v1268 = vsel %vm1262, 1, 0
        %v1269 = vsel %vm1263, 1, 0
        %v1270 = vsel %vm1264, 1, 0
        %v1271 = vsel %vm1265, 1, 0
        %v1272 = vsel %vm1266, 1, 0
        %v1273 = vsel %vm1267, 1, 0
        %v1274 = vcvt.s32.f32 %v1268
        %v1275 = vcvt.s32.f32 %v1269
        %v1276 = vcvt.s32.f32 %v1270
        %v1277 = vcvt.s32.f32 %v1271
        %v1278 = vcvt.s32.f32 %v1272
        %v1279 = vcvt.s32.f32 %v1273
        %v1286 = vcombine.low %v1274, %v1275
        %v1287 = vcombine.low %v1276, %v1277
        %v1288 = vcombine.low %v1278, %v1279
        %s1292 = scalar_lea.vmem %s395, 168
        %1293 = vst [vmem:[%s1292] sm:$0x77] %v1286
        %1294 = vst [vmem:[%s1292 + $0x8] sm:$0x77] %v1287
        %1295 = vst.msk [vmem:[%s1292 + $0x10] sm:$0x77] %vm948, %v1288
        %v1296 = vld [vmem:[%s335] sm:$0xff]
        %v1297 = vld [vmem:[%s335 + $0x8] sm:$0xff]
        %v1298 = vld [vmem:[%s335 + $0x10] sm:$0xff]
        %v1299 = vld [vmem:[%s335 + $0x18] sm:$0xff]
        %v1300 = vld [vmem:[%s335 + $0x20] sm:$0xff]
        %v1301 = vld [vmem:[%s335 + $0x28] sm:$0xff]
        %v1302 = vld [vmem:[%s335 + $0x30] sm:$0xff]
        %v1303 = vld [vmem:[%s335 + $0x38] sm:$0xff]
        %v1304 = vld [vmem:[%s335 + $0x40] sm:$0xff]
        %v1305 = vld [vmem:[%s335 + $0x48] sm:$0xff]
        %v1306 = vld [vmem:[%s335 + $0x50] sm:$0xff]
        %v1307 = vld [vmem:[%s335 + $0x58] sm:$0xff]
        %v1308 = vld [vmem:[%s335 + $0x60] sm:$0xff]
        %v1309 = vld [vmem:[%s335 + $0x68] sm:$0xff]
        %v1310 = vld [vmem:[%s335 + $0x70] sm:$0xff]
        %v1311 = vld [vmem:[%s335 + $0x78] sm:$0xff]
        %v1312 = vld [vmem:[%s335 + $0x80] sm:$0xff]
        %v1313 = vld [vmem:[%s335 + $0x88] sm:$0xff]
        %v1314 = vld [vmem:[%s335 + $0x90] sm:$0xff]
        %v1315 = vld [vmem:[%s335 + $0x98] sm:$0xff]
        %v1316 = vld [vmem:[%s335 + $0xa0] sm:$0xff]
        %v1317 = vld [vmem:[%s335 + $0xa8] sm:$0xff]
        %v1318 = vld [vmem:[%s335 + $0xb0] sm:$0xff]
        %v1319 = vld [vmem:[%s335 + $0xb8] sm:$0xff]
        %v1320 = vld [vmem:[%s335 + $0xc0] sm:$0xff]
        %v1321 = vld [vmem:[%s335 + $0xc8] sm:$0xff]
        %v1322 = vld [vmem:[%s335 + $0xd0] sm:$0xff]
        %v1323 = vld [vmem:[%s335 + $0xd8] sm:$0xff]
        %v1324 = vld [vmem:[%s335 + $0xe0] sm:$0xff]
        %v1325 = vld [vmem:[%s335 + $0xe8] sm:$0xff]
        %v1326 = vld [vmem:[%s335 + $0xf0] sm:$0xff]
        %v1327 = vld [vmem:[%s335 + $0xf8] sm:$0xff]
        %v1328 = vld [vmem:[%s335 + $0x100] sm:$0xff]
        %v1329 = vld [vmem:[%s335 + $0x108] sm:$0xff]
        %v1330 = vld [vmem:[%s335 + $0x110] sm:$0xff]
        %v1331 = vld [vmem:[%s335 + $0x118] sm:$0xff]
        %v1332 = vld [vmem:[%s335 + $0x120] sm:$0xff]
        %v1333 = vld [vmem:[%s335 + $0x128] sm:$0xff]
        %v1334 = vld [vmem:[%s335 + $0x130] sm:$0xff]
        %v1335 = vld [vmem:[%s335 + $0x138] sm:$0xff]
        %v1336 = vld [vmem:[%s335 + $0x140] sm:$0xff]
        %v1337 = vld [vmem:[%s335 + $0x148] sm:$0xff]
        %v1338 = vld [vmem:[%s335 + $0x150] sm:$0xff]
        %v1339 = vld [vmem:[%s335 + $0x158] sm:$0xff]
        %v1340 = vld [vmem:[%s335 + $0x160] sm:$0xff]
        %v1341 = vld [vmem:[%s335 + $0x168] sm:$0xff]
        %v1342 = vld [vmem:[%s335 + $0x170] sm:$0xff]
        %v1343 = vld [vmem:[%s335 + $0x178] sm:$0xff]
        %v1344 = vld [vmem:[%s335 + $0x180] sm:$0xff]
        %v1345 = vld [vmem:[%s335 + $0x188] sm:$0xff]
        %v1346 = vld [vmem:[%s335 + $0x190] sm:$0xff]
        %v1347 = vld [vmem:[%s335 + $0x198] sm:$0xff]
        %v1348 = vld [vmem:[%s335 + $0x1a0] sm:$0xff]
        %v1349 = vld [vmem:[%s335 + $0x1a8] sm:$0xff]
        %v1350 = vld [vmem:[%s335 + $0x1b0] sm:$0xff]
        %v1351 = vld [vmem:[%s335 + $0x1b8] sm:$0xff]
        %v1352 = vld [vmem:[%s335 + $0x1c0] sm:$0xff]
        %v1353 = vld [vmem:[%s335 + $0x1c8] sm:$0xff]
        %v1354 = vld [vmem:[%s335 + $0x1d0] sm:$0xff]
        %v1355 = vld [vmem:[%s335 + $0x1d8] sm:$0xff]
        %v1356 = vld [vmem:[%s335 + $0x1e0] sm:$0xff]
        %v1357 = vld [vmem:[%s335 + $0x1e8] sm:$0xff]
        %v1358 = vld [vmem:[%s335 + $0x1f0] sm:$0xff]
        %v1359 = vld [vmem:[%s335 + $0x1f8] sm:$0xff]
        %v1360 = vld [vmem:[%s335 + $0x200] sm:$0xff]
        %v1361 = vld [vmem:[%s335 + $0x208] sm:$0xff]
        %v1362 = vld [vmem:[%s335 + $0x210] sm:$0xff]
        %v1363 = vld [vmem:[%s335 + $0x218] sm:$0xff]
        %v1364 = vld [vmem:[%s335 + $0x220] sm:$0xff]
        %v1365 = vld [vmem:[%s335 + $0x228] sm:$0xff]
        %v1366 = vld [vmem:[%s335 + $0x230] sm:$0xff]
        %v1367 = vld [vmem:[%s335 + $0x238] sm:$0xff]
        %v1368 = vld [vmem:[%s335 + $0x240] sm:$0xff]
        %v1369 = vld [vmem:[%s335 + $0x248] sm:$0xff]
        %v1370 = vld [vmem:[%s335 + $0x250] sm:$0xff]
        %v1371 = vld [vmem:[%s335 + $0x258] sm:$0xff]
        %v1372 = vld [vmem:[%s335 + $0x260] sm:$0xff]
        %v1373 = vld [vmem:[%s335 + $0x268] sm:$0xff]
        %v1374 = vld [vmem:[%s335 + $0x270] sm:$0xff]
        %v1375 = vld [vmem:[%s335 + $0x278] sm:$0xff]
        %v1376 = vld [vmem:[%s335 + $0x280] sm:$0xff]
        %v1377 = vld [vmem:[%s335 + $0x288] sm:$0xff]
        %v1378 = vld [vmem:[%s335 + $0x290] sm:$0xff]
        %v1379 = vld [vmem:[%s335 + $0x298] sm:$0xff]
        %v1380 = vld [vmem:[%s335 + $0x2a0] sm:$0xff]
        %v1381 = vld [vmem:[%s335 + $0x2a8] sm:$0xff]
        %v1382 = vld [vmem:[%s335 + $0x2b0] sm:$0xff]
        %v1383 = vld [vmem:[%s335 + $0x2b8] sm:$0xff]
        %v1384 = vpack.c.bf16 %v1318, %v1296
        %v1385 = vpack.c.bf16 %v1319, %v1297
        %v1386 = vpack.c.bf16 %v1320, %v1298
        %v1387 = vpack.c.bf16 %v1321, %v1299
        %v1388 = vpack.c.bf16 %v1322, %v1300
        %v1389 = vpack.c.bf16 %v1323, %v1301
        %v1390 = vpack.c.bf16 %v1324, %v1302
        %v1391 = vpack.c.bf16 %v1325, %v1303
        %v1392 = vpack.c.bf16 %v1326, %v1304
        %v1393 = vpack.c.bf16 %v1327, %v1305
        %v1394 = vpack.c.bf16 %v1328, %v1306
        %v1395 = vpack.c.bf16 %v1329, %v1307
        %v1396 = vpack.c.bf16 %v1330, %v1308
        %v1397 = vpack.c.bf16 %v1331, %v1309
        %v1398 = vpack.c.bf16 %v1332, %v1310
        %v1399 = vpack.c.bf16 %v1333, %v1311
        %v1400 = vpack.c.bf16 %v1334, %v1312
        %v1401 = vpack.c.bf16 %v1335, %v1313
        %v1402 = vpack.c.bf16 %v1336, %v1314
        %v1403 = vpack.c.bf16 %v1337, %v1315
        %v1404 = vpack.c.bf16 %v1338, %v1316
        %v1405 = vpack.c.bf16 %v1339, %v1317
        %v1406 = vpack.c.bf16 %v1362, %v1340
        %v1407 = vpack.c.bf16 %v1363, %v1341
        %v1408 = vpack.c.bf16 %v1364, %v1342
        %v1409 = vpack.c.bf16 %v1365, %v1343
        %v1410 = vpack.c.bf16 %v1366, %v1344
        %v1411 = vpack.c.bf16 %v1367, %v1345
        %v1412 = vpack.c.bf16 %v1368, %v1346
        %v1413 = vpack.c.bf16 %v1369, %v1347
        %v1414 = vpack.c.bf16 %v1370, %v1348
        %v1415 = vpack.c.bf16 %v1371, %v1349
        %v1416 = vpack.c.bf16 %v1372, %v1350
        %v1417 = vpack.c.bf16 %v1373, %v1351
        %v1418 = vpack.c.bf16 %v1374, %v1352
        %v1419 = vpack.c.bf16 %v1375, %v1353
        %v1420 = vpack.c.bf16 %v1376, %v1354
        %v1421 = vpack.c.bf16 %v1377, %v1355
        %v1422 = vpack.c.bf16 %v1378, %v1356
        %v1423 = vpack.c.bf16 %v1379, %v1357
        %v1424 = vpack.c.bf16 %v1380, %v1358
        %v1425 = vpack.c.bf16 %v1381, %v1359
        %v1426 = vpack.c.bf16 %v1382, %v1360
        %v1427 = vpack.c.bf16 %v1383, %v1361
        %s1428 = scalar_lea.vmem %s3, 32
        %v1429 = vld [vmem:[%s1428] sm:$0xf]
        %v1430 = vld [vmem:[%s1428 + $0x4] sm:$0xf]
        %v1431 = vld [vmem:[%s1428 + $0x8] sm:$0xf]
        %v1432 = vld [vmem:[%s1428 + $0xc] sm:$0xf]
        %s1433 = scalar_lea.vmem %s4, 64
        %v1434 = vld [vmem:[%s1433] sm:$0xff]
        %v1435 = vld [vmem:[%s1433 + $0x8] sm:$0xff]
        %v1436 = vld [vmem:[%s1433 + $0x10] sm:$0xff]
        %v1437 = vld [vmem:[%s1433 + $0x18] sm:$0xff]
        %1439 = vset.pattern.permute.xlu0 0
        %1440 = vperm.xlu0 %1439, %v1434
        %v1441 = vpop.permute.xlu0 %1440
        %1444 = vset.pattern.permute.xlu0 0
        %1445 = vperm.xlu0 %1444, %v1435
        %v1446 = vpop.permute.xlu0 %1445
        %1449 = vset.pattern.permute.xlu0 0
        %1450 = vperm.xlu0 %1449, %v1436
        %v1451 = vpop.permute.xlu0 %1450
        %1454 = vset.pattern.permute.xlu0 0
        %1455 = vperm.xlu0 %1454, %v1437
        %v1456 = vpop.permute.xlu0 %1455
        %v1462 = vunpack.c.l.b16 %v1429
        %v1463 = vunpack.c.l.b16 %v1430
        %v1464 = vunpack.c.l.b16 %v1431
        %v1465 = vunpack.c.l.b16 %v1432
        %v1466 = vpack.c.b16 %v1463, %v1462
        %v1467 = vpack.c.b16 %v1465, %v1464
        %v1469 = vsel %vm453, %v1466, 0
        %v1472 = vsel %vm453, %v1467, 0
        %1474 = vmatprep.subr.bf16.mxu0 %v1385
        %1475 = vmatpush1.bf16.msra.mxu0 %v1384
        %1476 = vmatprep.subr.bf16.mxu0 %v1407
        %1477 = vmatpush1.bf16.msra.mxu0 %v1406
        %1478 = vmatprep.subr.bf16.mxu0 0
        %1479 = vmatpush1.bf16.msra.mxu0 0
        %1480 = vmatprep.subr.bf16.mxu0 0
        %1481 = vmatpush1.bf16.msra.mxu0 0
        %1482 = vmatprep.subr.bf16.mxu0 0
        %1483 = vmatpush1.bf16.msra.mxu0 0
        %1484 = vmatprep.subr.bf16.mxu0 0
        %1485 = vmatpush1.bf16.msra.mxu0 0
        %1486 = vmatprep.subr.bf16.mxu0 0
        %1487 = vmatpush1.bf16.msra.mxu0 0
        %1488 = vmatprep.subr.bf16.mxu0 0
        %1489 = vmatpush1.bf16.msra.mxu0 0
        %1490 = vmatprep.subr.bf16.mxu0 0
        %1491 = vmatpush1.bf16.msra.mxu0 0
        %1492 = vmatprep.subr.bf16.mxu0 0
        %1493 = vmatpush1.bf16.msra.mxu0 0
        %1494 = vmatprep.subr.bf16.mxu0 0
        %1495 = vmatpush1.bf16.msra.mxu0 0
        %1496 = vmatprep.subr.bf16.mxu0 0
        %1497 = vmatpush1.bf16.msra.mxu0 0
        %1498 = vmatprep.subr.bf16.mxu0 0
        %1499 = vmatpush1.bf16.msra.mxu0 0
        %1500 = vmatprep.subr.bf16.mxu0 0
        %1501 = vmatpush1.bf16.msra.mxu0 0
        %1502 = vmatprep.subr.bf16.mxu0 0
        %1503 = vmatpush1.bf16.msra.mxu0 0
        %1504 = vmatprep.subr.bf16.mxu0 0
        %1505 = vmatpush1.bf16.msra.mxu0 0
        %1506 = vmatprep.mubr.bf16.mxu0 0
        %1507 = vmatmul.mubr.bf16.gmra.mrb[0].mxu0 %v1469
        %v1508 = vpop.f32.mrb[0].mxu0
        %v1509 = vadd.f32 %v1441, %v1508
        %v1510 = vpop.f32.mrb[0].mxu0
        %v1511 = vadd.f32 %v1441, %v1510
        %v1512 = vpop.f32.mrb[0].mxu0
        %v1513 = vadd.f32 %v1446, %v1512
        %v1514 = vpop.f32.mrb[0].mxu0
        %v1515 = vadd.f32 %v1446, %v1514
        %1516 = vmatprep.mubr.bf16.mxu0 0
        %1517 = vmatmul.mubr.bf16.gmra.mrb[0].mxu0 %v1472
        %v1518 = vpop.f32.mrb[0].mxu0
        %v1519 = vadd.f32 %v1451, %v1518
        %v1520 = vpop.f32.mrb[0].mxu0
        %v1521 = vadd.f32 %v1451, %v1520
        %v1522 = vpop.f32.mrb[0].mxu0
        %v1523 = vadd.f32 %v1456, %v1522
        %v1524 = vpop.f32.mrb[0].mxu0
        %v1525 = vadd.f32 %v1456, %v1524
        %1526 = vdwg.mxu0
        %1527 = vmatprep.subr.bf16.mxu0 %v1387
        %1528 = vmatpush1.bf16.msra.mxu0 %v1386
        %1529 = vmatprep.subr.bf16.mxu0 %v1409
        %1530 = vmatpush1.bf16.msra.mxu0 %v1408
        %1531 = vmatprep.subr.bf16.mxu0 0
        %1532 = vmatpush1.bf16.msra.mxu0 0
        %1533 = vmatprep.subr.bf16.mxu0 0
        %1534 = vmatpush1.bf16.msra.mxu0 0
        %1535 = vmatprep.subr.bf16.mxu0 0
        %1536 = vmatpush1.bf16.msra.mxu0 0
        %1537 = vmatprep.subr.bf16.mxu0 0
        %1538 = vmatpush1.bf16.msra.mxu0 0
        %1539 = vmatprep.subr.bf16.mxu0 0
        %1540 = vmatpush1.bf16.msra.mxu0 0
        %1541 = vmatprep.subr.bf16.mxu0 0
        %1542 = vmatpush1.bf16.msra.mxu0 0
        %1543 = vmatprep.subr.bf16.mxu0 0
        %1544 = vmatpush1.bf16.msra.mxu0 0
        %1545 = vmatprep.subr.bf16.mxu0 0
        %1546 = vmatpush1.bf16.msra.mxu0 0
        %1547 = vmatprep.subr.bf16.mxu0 0
        %1548 = vmatpush1.bf16.msra.mxu0 0
        %1549 = vmatprep.subr.bf16.mxu0 0
        %1550 = vmatpush1.bf16.msra.mxu0 0
        %1551 = vmatprep.subr.bf16.mxu0 0
        %1552 = vmatpush1.bf16.msra.mxu0 0
        %1553 = vmatprep.subr.bf16.mxu0 0
        %1554 = vmatpush1.bf16.msra.mxu0 0
        %1555 = vmatprep.subr.bf16.mxu0 0
        %1556 = vmatpush1.bf16.msra.mxu0 0
        %1557 = vmatprep.subr.bf16.mxu0 0
        %1558 = vmatpush1.bf16.msra.mxu0 0
        %1559 = vmatprep.mubr.bf16.mxu0 0
        %1560 = vmatmul.mubr.bf16.gmra.mrb[0].mxu0 %v1469
        %v1561 = vpop.f32.mrb[0].mxu0
        %v1562 = vadd.f32 %v1441, %v1561
        %v1563 = vpop.f32.mrb[0].mxu0
        %v1564 = vadd.f32 %v1441, %v1563
        %v1565 = vpop.f32.mrb[0].mxu0
        %v1566 = vadd.f32 %v1446, %v1565
        %v1567 = vpop.f32.mrb[0].mxu0
        %v1568 = vadd.f32 %v1446, %v1567
        %1569 = vmatprep.mubr.bf16.mxu0 0
        %1570 = vmatmul.mubr.bf16.gmra.mrb[0].mxu0 %v1472
        %v1571 = vpop.f32.mrb[0].mxu0
        %v1572 = vadd.f32 %v1451, %v1571
        %v1573 = vpop.f32.mrb[0].mxu0
        %v1574 = vadd.f32 %v1451, %v1573
        %v1575 = vpop.f32.mrb[0].mxu0
        %v1576 = vadd.f32 %v1456, %v1575
        %v1577 = vpop.f32.mrb[0].mxu0
        %v1578 = vadd.f32 %v1456, %v1577
        %1579 = vdwg.mxu0
        %1580 = vmatprep.subr.bf16.mxu0 %v1389
        %1581 = vmatpush1.bf16.msra.mxu0 %v1388
        %1582 = vmatprep.subr.bf16.mxu0 %v1411
        %1583 = vmatpush1.bf16.msra.mxu0 %v1410
        %1584 = vmatprep.subr.bf16.mxu0 0
        %1585 = vmatpush1.bf16.msra.mxu0 0
        %1586 = vmatprep.subr.bf16.mxu0 0
        %1587 = vmatpush1.bf16.msra.mxu0 0
        %1588 = vmatprep.subr.bf16.mxu0 0
        %1589 = vmatpush1.bf16.msra.mxu0 0
        %1590 = vmatprep.subr.bf16.mxu0 0
        %1591 = vmatpush1.bf16.msra.mxu0 0
        %1592 = vmatprep.subr.bf16.mxu0 0
        %1593 = vmatpush1.bf16.msra.mxu0 0
        %1594 = vmatprep.subr.bf16.mxu0 0
        %1595 = vmatpush1.bf16.msra.mxu0 0
        %1596 = vmatprep.subr.bf16.mxu0 0
        %1597 = vmatpush1.bf16.msra.mxu0 0
        %1598 = vmatprep.subr.bf16.mxu0 0
        %1599 = vmatpush1.bf16.msra.mxu0 0
        %1600 = vmatprep.subr.bf16.mxu0 0
        %1601 = vmatpush1.bf16.msra.mxu0 0
        %1602 = vmatprep.subr.bf16.mxu0 0
        %1603 = vmatpush1.bf16.msra.mxu0 0
        %1604 = vmatprep.subr.bf16.mxu0 0
        %1605 = vmatpush1.bf16.msra.mxu0 0
        %1606 = vmatprep.subr.bf16.mxu0 0
        %1607 = vmatpush1.bf16.msra.mxu0 0
        %1608 = vmatprep.subr.bf16.mxu0 0
        %1609 = vmatpush1.bf16.msra.mxu0 0
        %1610 = vmatprep.subr.bf16.mxu0 0
        %1611 = vmatpush1.bf16.msra.mxu0 0
        %1612 = vmatprep.mubr.bf16.mxu0 0
        %1613 = vmatmul.mubr.bf16.gmra.mrb[0].mxu0 %v1469
        %v1614 = vpop.f32.mrb[0].mxu0
        %v1615 = vadd.f32 %v1441, %v1614
        %v1616 = vpop.f32.mrb[0].mxu0
        %v1617 = vadd.f32 %v1441, %v1616
        %v1618 = vpop.f32.mrb[0].mxu0
        %v1619 = vadd.f32 %v1446, %v1618
        %v1620 = vpop.f32.mrb[0].mxu0
        %v1621 = vadd.f32 %v1446, %v1620
        %1622 = vmatprep.mubr.bf16.mxu0 0
        %1623 = vmatmul.mubr.bf16.gmra.mrb[0].mxu0 %v1472
        %v1624 = vpop.f32.mrb[0].mxu0
        %v1625 = vadd.f32 %v1451, %v1624
        %v1626 = vpop.f32.mrb[0].mxu0
        %v1627 = vadd.f32 %v1451, %v1626
        %v1628 = vpop.f32.mrb[0].mxu0
        %v1629 = vadd.f32 %v1456, %v1628
        %v1630 = vpop.f32.mrb[0].mxu0
        %v1631 = vadd.f32 %v1456, %v1630
        %1632 = vdwg.mxu0
        %1633 = vmatprep.subr.bf16.mxu0 %v1391
        %1634 = vmatpush1.bf16.msra.mxu0 %v1390
        %1635 = vmatprep.subr.bf16.mxu0 %v1413
        %1636 = vmatpush1.bf16.msra.mxu0 %v1412
        %1637 = vmatprep.subr.bf16.mxu0 0
        %1638 = vmatpush1.bf16.msra.mxu0 0
        %1639 = vmatprep.subr.bf16.mxu0 0
        %1640 = vmatpush1.bf16.msra.mxu0 0
        %1641 = vmatprep.subr.bf16.mxu0 0
        %1642 = vmatpush1.bf16.msra.mxu0 0
        %1643 = vmatprep.subr.bf16.mxu0 0
        %1644 = vmatpush1.bf16.msra.mxu0 0
        %1645 = vmatprep.subr.bf16.mxu0 0
        %1646 = vmatpush1.bf16.msra.mxu0 0
        %1647 = vmatprep.subr.bf16.mxu0 0
        %1648 = vmatpush1.bf16.msra.mxu0 0
        %1649 = vmatprep.subr.bf16.mxu0 0
        %1650 = vmatpush1.bf16.msra.mxu0 0
        %1651 = vmatprep.subr.bf16.mxu0 0
        %1652 = vmatpush1.bf16.msra.mxu0 0
        %1653 = vmatprep.subr.bf16.mxu0 0
        %1654 = vmatpush1.bf16.msra.mxu0 0
        %1655 = vmatprep.subr.bf16.mxu0 0
        %1656 = vmatpush1.bf16.msra.mxu0 0
        %1657 = vmatprep.subr.bf16.mxu0 0
        %1658 = vmatpush1.bf16.msra.mxu0 0
        %1659 = vmatprep.subr.bf16.mxu0 0
        %1660 = vmatpush1.bf16.msra.mxu0 0
        %1661 = vmatprep.subr.bf16.mxu0 0
        %1662 = vmatpush1.bf16.msra.mxu0 0
        %1663 = vmatprep.subr.bf16.mxu0 0
        %1664 = vmatpush1.bf16.msra.mxu0 0
        %1665 = vmatprep.mubr.bf16.mxu0 0
        %1666 = vmatmul.mubr.bf16.gmra.mrb[0].mxu0 %v1469
        %v1667 = vpop.f32.mrb[0].mxu0
        %v1668 = vadd.f32 %v1441, %v1667
        %v1669 = vpop.f32.mrb[0].mxu0
        %v1670 = vadd.f32 %v1441, %v1669
        %v1671 = vpop.f32.mrb[0].mxu0
        %v1672 = vadd.f32 %v1446, %v1671
        %v1673 = vpop.f32.mrb[0].mxu0
        %v1674 = vadd.f32 %v1446, %v1673
        %1675 = vmatprep.mubr.bf16.mxu0 0
        %1676 = vmatmul.mubr.bf16.gmra.mrb[0].mxu0 %v1472
        %v1677 = vpop.f32.mrb[0].mxu0
        %v1678 = vadd.f32 %v1451, %v1677
        %v1679 = vpop.f32.mrb[0].mxu0
        %v1680 = vadd.f32 %v1451, %v1679
        %v1681 = vpop.f32.mrb[0].mxu0
        %v1682 = vadd.f32 %v1456, %v1681
        %v1683 = vpop.f32.mrb[0].mxu0
        %v1684 = vadd.f32 %v1456, %v1683
        %1685 = vdwg.mxu0
        %1686 = vmatprep.subr.bf16.mxu0 %v1393
        %1687 = vmatpush1.bf16.msra.mxu0 %v1392
        %1688 = vmatprep.subr.bf16.mxu0 %v1415
        %1689 = vmatpush1.bf16.msra.mxu0 %v1414
        %1690 = vmatprep.subr.bf16.mxu0 0
        %1691 = vmatpush1.bf16.msra.mxu0 0
        %1692 = vmatprep.subr.bf16.mxu0 0
        %1693 = vmatpush1.bf16.msra.mxu0 0
        %1694 = vmatprep.subr.bf16.mxu0 0
        %1695 = vmatpush1.bf16.msra.mxu0 0
        %1696 = vmatprep.subr.bf16.mxu0 0
        %1697 = vmatpush1.bf16.msra.mxu0 0
        %1698 = vmatprep.subr.bf16.mxu0 0
        %1699 = vmatpush1.bf16.msra.mxu0 0
        %1700 = vmatprep.subr.bf16.mxu0 0
        %1701 = vmatpush1.bf16.msra.mxu0 0
        %1702 = vmatprep.subr.bf16.mxu0 0
        %1703 = vmatpush1.bf16.msra.mxu0 0
        %1704 = vmatprep.subr.bf16.mxu0 0
        %1705 = vmatpush1.bf16.msra.mxu0 0
        %1706 = vmatprep.subr.bf16.mxu0 0
        %1707 = vmatpush1.bf16.msra.mxu0 0
        %1708 = vmatprep.subr.bf16.mxu0 0
        %1709 = vmatpush1.bf16.msra.mxu0 0
        %1710 = vmatprep.subr.bf16.mxu0 0
        %1711 = vmatpush1.bf16.msra.mxu0 0
        %1712 = vmatprep.subr.bf16.mxu0 0
        %1713 = vmatpush1.bf16.msra.mxu0 0
        %1714 = vmatprep.subr.bf16.mxu0 0
        %1715 = vmatpush1.bf16.msra.mxu0 0
        %1716 = vmatprep.subr.bf16.mxu0 0
        %1717 = vmatpush1.bf16.msra.mxu0 0
        %1718 = vmatprep.mubr.bf16.mxu0 0
        %1719 = vmatmul.mubr.bf16.gmra.mrb[0].mxu0 %v1469
        %v1720 = vpop.f32.mrb[0].mxu0
        %v1721 = vadd.f32 %v1441, %v1720
        %v1722 = vpop.f32.mrb[0].mxu0
        %v1723 = vadd.f32 %v1441, %v1722
        %v1724 = vpop.f32.mrb[0].mxu0
        %v1725 = vadd.f32 %v1446, %v1724
        %v1726 = vpop.f32.mrb[0].mxu0
        %v1727 = vadd.f32 %v1446, %v1726
        %1728 = vmatprep.mubr.bf16.mxu0 0
        %1729 = vmatmul.mubr.bf16.gmra.mrb[0].mxu0 %v1472
        %v1730 = vpop.f32.mrb[0].mxu0
        %v1731 = vadd.f32 %v1451, %v1730
        %v1732 = vpop.f32.mrb[0].mxu0
        %v1733 = vadd.f32 %v1451, %v1732
        %v1734 = vpop.f32.mrb[0].mxu0
        %v1735 = vadd.f32 %v1456, %v1734
        %v1736 = vpop.f32.mrb[0].mxu0
        %v1737 = vadd.f32 %v1456, %v1736
        %1738 = vdwg.mxu0
        %1739 = vmatprep.subr.bf16.mxu0 %v1395
        %1740 = vmatpush1.bf16.msra.mxu0 %v1394
        %1741 = vmatprep.subr.bf16.mxu0 %v1417
        %1742 = vmatpush1.bf16.msra.mxu0 %v1416
        %1743 = vmatprep.subr.bf16.mxu0 0
        %1744 = vmatpush1.bf16.msra.mxu0 0
        %1745 = vmatprep.subr.bf16.mxu0 0
        %1746 = vmatpush1.bf16.msra.mxu0 0
        %1747 = vmatprep.subr.bf16.mxu0 0
        %1748 = vmatpush1.bf16.msra.mxu0 0
        %1749 = vmatprep.subr.bf16.mxu0 0
        %1750 = vmatpush1.bf16.msra.mxu0 0
        %1751 = vmatprep.subr.bf16.mxu0 0
        %1752 = vmatpush1.bf16.msra.mxu0 0
        %1753 = vmatprep.subr.bf16.mxu0 0
        %1754 = vmatpush1.bf16.msra.mxu0 0
        %1755 = vmatprep.subr.bf16.mxu0 0
        %1756 = vmatpush1.bf16.msra.mxu0 0
        %1757 = vmatprep.subr.bf16.mxu0 0
        %1758 = vmatpush1.bf16.msra.mxu0 0
        %1759 = vmatprep.subr.bf16.mxu0 0
        %1760 = vmatpush1.bf16.msra.mxu0 0
        %1761 = vmatprep.subr.bf16.mxu0 0
        %1762 = vmatpush1.bf16.msra.mxu0 0
        %1763 = vmatprep.subr.bf16.mxu0 0
        %1764 = vmatpush1.bf16.msra.mxu0 0
        %1765 = vmatprep.subr.bf16.mxu0 0
        %1766 = vmatpush1.bf16.msra.mxu0 0
        %1767 = vmatprep.subr.bf16.mxu0 0
        %1768 = vmatpush1.bf16.msra.mxu0 0
        %1769 = vmatprep.subr.bf16.mxu0 0
        %1770 = vmatpush1.bf16.msra.mxu0 0
        %1771 = vmatprep.mubr.bf16.mxu0 0
        %1772 = vmatmul.mubr.bf16.gmra.mrb[0].mxu0 %v1469
        %v1773 = vpop.f32.mrb[0].mxu0
        %v1774 = vadd.f32 %v1441, %v1773
        %v1775 = vpop.f32.mrb[0].mxu0
        %v1776 = vadd.f32 %v1441, %v1775
        %v1777 = vpop.f32.mrb[0].mxu0
        %v1778 = vadd.f32 %v1446, %v1777
        %v1779 = vpop.f32.mrb[0].mxu0
        %v1780 = vadd.f32 %v1446, %v1779
        %1781 = vmatprep.mubr.bf16.mxu0 0
        %1782 = vmatmul.mubr.bf16.gmra.mrb[0].mxu0 %v1472
        %v1783 = vpop.f32.mrb[0].mxu0
        %v1784 = vadd.f32 %v1451, %v1783
        %v1785 = vpop.f32.mrb[0].mxu0
        %v1786 = vadd.f32 %v1451, %v1785
        %v1787 = vpop.f32.mrb[0].mxu0
        %v1788 = vadd.f32 %v1456, %v1787
        %v1789 = vpop.f32.mrb[0].mxu0
        %v1790 = vadd.f32 %v1456, %v1789
        %1791 = vdwg.mxu0
        %1792 = vmatprep.subr.bf16.mxu0 %v1397
        %1793 = vmatpush1.bf16.msra.mxu0 %v1396
        %1794 = vmatprep.subr.bf16.mxu0 %v1419
        %1795 = vmatpush1.bf16.msra.mxu0 %v1418
        %1796 = vmatprep.subr.bf16.mxu0 0
        %1797 = vmatpush1.bf16.msra.mxu0 0
        %1798 = vmatprep.subr.bf16.mxu0 0
        %1799 = vmatpush1.bf16.msra.mxu0 0
        %1800 = vmatprep.subr.bf16.mxu0 0
        %1801 = vmatpush1.bf16.msra.mxu0 0
        %1802 = vmatprep.subr.bf16.mxu0 0
        %1803 = vmatpush1.bf16.msra.mxu0 0
        %1804 = vmatprep.subr.bf16.mxu0 0
        %1805 = vmatpush1.bf16.msra.mxu0 0
        %1806 = vmatprep.subr.bf16.mxu0 0
        %1807 = vmatpush1.bf16.msra.mxu0 0
        %1808 = vmatprep.subr.bf16.mxu0 0
        %1809 = vmatpush1.bf16.msra.mxu0 0
        %1810 = vmatprep.subr.bf16.mxu0 0
        %1811 = vmatpush1.bf16.msra.mxu0 0
        %1812 = vmatprep.subr.bf16.mxu0 0
        %1813 = vmatpush1.bf16.msra.mxu0 0
        %1814 = vmatprep.subr.bf16.mxu0 0
        %1815 = vmatpush1.bf16.msra.mxu0 0
        %1816 = vmatprep.subr.bf16.mxu0 0
        %1817 = vmatpush1.bf16.msra.mxu0 0
        %1818 = vmatprep.subr.bf16.mxu0 0
        %1819 = vmatpush1.bf16.msra.mxu0 0
        %1820 = vmatprep.subr.bf16.mxu0 0
        %1821 = vmatpush1.bf16.msra.mxu0 0
        %1822 = vmatprep.subr.bf16.mxu0 0
        %1823 = vmatpush1.bf16.msra.mxu0 0
        %1824 = vmatprep.mubr.bf16.mxu0 0
        %1825 = vmatmul.mubr.bf16.gmra.mrb[0].mxu0 %v1469
        %v1826 = vpop.f32.mrb[0].mxu0
        %v1827 = vadd.f32 %v1441, %v1826
        %v1828 = vpop.f32.mrb[0].mxu0
        %v1829 = vadd.f32 %v1441, %v1828
        %v1830 = vpop.f32.mrb[0].mxu0
        %v1831 = vadd.f32 %v1446, %v1830
        %v1832 = vpop.f32.mrb[0].mxu0
        %v1833 = vadd.f32 %v1446, %v1832
        %1834 = vmatprep.mubr.bf16.mxu0 0
        %1835 = vmatmul.mubr.bf16.gmra.mrb[0].mxu0 %v1472
        %v1836 = vpop.f32.mrb[0].mxu0
        %v1837 = vadd.f32 %v1451, %v1836
        %v1838 = vpop.f32.mrb[0].mxu0
        %v1839 = vadd.f32 %v1451, %v1838
        %v1840 = vpop.f32.mrb[0].mxu0
        %v1841 = vadd.f32 %v1456, %v1840
        %v1842 = vpop.f32.mrb[0].mxu0
        %v1843 = vadd.f32 %v1456, %v1842
        %1844 = vdwg.mxu0
        %1845 = vmatprep.subr.bf16.mxu0 %v1399
        %1846 = vmatpush1.bf16.msra.mxu0 %v1398
        %1847 = vmatprep.subr.bf16.mxu0 %v1421
        %1848 = vmatpush1.bf16.msra.mxu0 %v1420
        %1849 = vmatprep.subr.bf16.mxu0 0
        %1850 = vmatpush1.bf16.msra.mxu0 0
        %1851 = vmatprep.subr.bf16.mxu0 0
        %1852 = vmatpush1.bf16.msra.mxu0 0
        %1853 = vmatprep.subr.bf16.mxu0 0
        %1854 = vmatpush1.bf16.msra.mxu0 0
        %1855 = vmatprep.subr.bf16.mxu0 0
        %1856 = vmatpush1.bf16.msra.mxu0 0
        %1857 = vmatprep.subr.bf16.mxu0 0
        %1858 = vmatpush1.bf16.msra.mxu0 0
        %1859 = vmatprep.subr.bf16.mxu0 0
        %1860 = vmatpush1.bf16.msra.mxu0 0
        %1861 = vmatprep.subr.bf16.mxu0 0
        %1862 = vmatpush1.bf16.msra.mxu0 0
        %1863 = vmatprep.subr.bf16.mxu0 0
        %1864 = vmatpush1.bf16.msra.mxu0 0
        %1865 = vmatprep.subr.bf16.mxu0 0
        %1866 = vmatpush1.bf16.msra.mxu0 0
        %1867 = vmatprep.subr.bf16.mxu0 0
        %1868 = vmatpush1.bf16.msra.mxu0 0
        %1869 = vmatprep.subr.bf16.mxu0 0
        %1870 = vmatpush1.bf16.msra.mxu0 0
        %1871 = vmatprep.subr.bf16.mxu0 0
        %1872 = vmatpush1.bf16.msra.mxu0 0
        %1873 = vmatprep.subr.bf16.mxu0 0
        %1874 = vmatpush1.bf16.msra.mxu0 0
        %1875 = vmatprep.subr.bf16.mxu0 0
        %1876 = vmatpush1.bf16.msra.mxu0 0
        %1877 = vmatprep.mubr.bf16.mxu0 0
        %1878 = vmatmul.mubr.bf16.gmra.mrb[0].mxu0 %v1469
        %v1879 = vpop.f32.mrb[0].mxu0
        %v1880 = vadd.f32 %v1441, %v1879
        %v1881 = vpop.f32.mrb[0].mxu0
        %v1882 = vadd.f32 %v1441, %v1881
        %v1883 = vpop.f32.mrb[0].mxu0
        %v1884 = vadd.f32 %v1446, %v1883
        %v1885 = vpop.f32.mrb[0].mxu0
        %v1886 = vadd.f32 %v1446, %v1885
        %1887 = vmatprep.mubr.bf16.mxu0 0
        %1888 = vmatmul.mubr.bf16.gmra.mrb[0].mxu0 %v1472
        %v1889 = vpop.f32.mrb[0].mxu0
        %v1890 = vadd.f32 %v1451, %v1889
        %v1891 = vpop.f32.mrb[0].mxu0
        %v1892 = vadd.f32 %v1451, %v1891
        %v1893 = vpop.f32.mrb[0].mxu0
        %v1894 = vadd.f32 %v1456, %v1893
        %v1895 = vpop.f32.mrb[0].mxu0
        %v1896 = vadd.f32 %v1456, %v1895
        %1897 = vdwg.mxu0
        %1898 = vmatprep.subr.bf16.mxu0 %v1401
        %1899 = vmatpush1.bf16.msra.mxu0 %v1400
        %1900 = vmatprep.subr.bf16.mxu0 %v1423
        %1901 = vmatpush1.bf16.msra.mxu0 %v1422
        %1902 = vmatprep.subr.bf16.mxu0 0
        %1903 = vmatpush1.bf16.msra.mxu0 0
        %1904 = vmatprep.subr.bf16.mxu0 0
        %1905 = vmatpush1.bf16.msra.mxu0 0
        %1906 = vmatprep.subr.bf16.mxu0 0
        %1907 = vmatpush1.bf16.msra.mxu0 0
        %1908 = vmatprep.subr.bf16.mxu0 0
        %1909 = vmatpush1.bf16.msra.mxu0 0
        %1910 = vmatprep.subr.bf16.mxu0 0
        %1911 = vmatpush1.bf16.msra.mxu0 0
        %1912 = vmatprep.subr.bf16.mxu0 0
        %1913 = vmatpush1.bf16.msra.mxu0 0
        %1914 = vmatprep.subr.bf16.mxu0 0
        %1915 = vmatpush1.bf16.msra.mxu0 0
        %1916 = vmatprep.subr.bf16.mxu0 0
        %1917 = vmatpush1.bf16.msra.mxu0 0
        %1918 = vmatprep.subr.bf16.mxu0 0
        %1919 = vmatpush1.bf16.msra.mxu0 0
        %1920 = vmatprep.subr.bf16.mxu0 0
        %1921 = vmatpush1.bf16.msra.mxu0 0
        %1922 = vmatprep.subr.bf16.mxu0 0
        %1923 = vmatpush1.bf16.msra.mxu0 0
        %1924 = vmatprep.subr.bf16.mxu0 0
        %1925 = vmatpush1.bf16.msra.mxu0 0
        %1926 = vmatprep.subr.bf16.mxu0 0
        %1927 = vmatpush1.bf16.msra.mxu0 0
        %1928 = vmatprep.subr.bf16.mxu0 0
        %1929 = vmatpush1.bf16.msra.mxu0 0
        %1930 = vmatprep.mubr.bf16.mxu0 0
        %1931 = vmatmul.mubr.bf16.gmra.mrb[0].mxu0 %v1469
        %v1932 = vpop.f32.mrb[0].mxu0
        %v1933 = vadd.f32 %v1441, %v1932
        %v1934 = vpop.f32.mrb[0].mxu0
        %v1935 = vadd.f32 %v1441, %v1934
        %v1936 = vpop.f32.mrb[0].mxu0
        %v1937 = vadd.f32 %v1446, %v1936
        %v1938 = vpop.f32.mrb[0].mxu0
        %v1939 = vadd.f32 %v1446, %v1938
        %1940 = vmatprep.mubr.bf16.mxu0 0
        %1941 = vmatmul.mubr.bf16.gmra.mrb[0].mxu0 %v1472
        %v1942 = vpop.f32.mrb[0].mxu0
        %v1943 = vadd.f32 %v1451, %v1942
        %v1944 = vpop.f32.mrb[0].mxu0
        %v1945 = vadd.f32 %v1451, %v1944
        %v1946 = vpop.f32.mrb[0].mxu0
        %v1947 = vadd.f32 %v1456, %v1946
        %v1948 = vpop.f32.mrb[0].mxu0
        %v1949 = vadd.f32 %v1456, %v1948
        %1950 = vdwg.mxu0
        %1951 = vmatprep.subr.bf16.mxu0 %v1403
        %1952 = vmatpush1.bf16.msra.mxu0 %v1402
        %1953 = vmatprep.subr.bf16.mxu0 %v1425
        %1954 = vmatpush1.bf16.msra.mxu0 %v1424
        %1955 = vmatprep.subr.bf16.mxu0 0
        %1956 = vmatpush1.bf16.msra.mxu0 0
        %1957 = vmatprep.subr.bf16.mxu0 0
        %1958 = vmatpush1.bf16.msra.mxu0 0
        %1959 = vmatprep.subr.bf16.mxu0 0
        %1960 = vmatpush1.bf16.msra.mxu0 0
        %1961 = vmatprep.subr.bf16.mxu0 0
        %1962 = vmatpush1.bf16.msra.mxu0 0
        %1963 = vmatprep.subr.bf16.mxu0 0
        %1964 = vmatpush1.bf16.msra.mxu0 0
        %1965 = vmatprep.subr.bf16.mxu0 0
        %1966 = vmatpush1.bf16.msra.mxu0 0
        %1967 = vmatprep.subr.bf16.mxu0 0
        %1968 = vmatpush1.bf16.msra.mxu0 0
        %1969 = vmatprep.subr.bf16.mxu0 0
        %1970 = vmatpush1.bf16.msra.mxu0 0
        %1971 = vmatprep.subr.bf16.mxu0 0
        %1972 = vmatpush1.bf16.msra.mxu0 0
        %1973 = vmatprep.subr.bf16.mxu0 0
        %1974 = vmatpush1.bf16.msra.mxu0 0
        %1975 = vmatprep.subr.bf16.mxu0 0
        %1976 = vmatpush1.bf16.msra.mxu0 0
        %1977 = vmatprep.subr.bf16.mxu0 0
        %1978 = vmatpush1.bf16.msra.mxu0 0
        %1979 = vmatprep.subr.bf16.mxu0 0
        %1980 = vmatpush1.bf16.msra.mxu0 0
        %1981 = vmatprep.subr.bf16.mxu0 0
        %1982 = vmatpush1.bf16.msra.mxu0 0
        %1983 = vmatprep.mubr.bf16.mxu0 0
        %1984 = vmatmul.mubr.bf16.gmra.mrb[0].mxu0 %v1469
        %v1985 = vpop.f32.mrb[0].mxu0
        %v1986 = vadd.f32 %v1441, %v1985
        %v1987 = vpop.f32.mrb[0].mxu0
        %v1988 = vadd.f32 %v1441, %v1987
        %v1989 = vpop.f32.mrb[0].mxu0
        %v1990 = vadd.f32 %v1446, %v1989
        %v1991 = vpop.f32.mrb[0].mxu0
        %v1992 = vadd.f32 %v1446, %v1991
        %1993 = vmatprep.mubr.bf16.mxu0 0
        %1994 = vmatmul.mubr.bf16.gmra.mrb[0].mxu0 %v1472
        %v1995 = vpop.f32.mrb[0].mxu0
        %v1996 = vadd.f32 %v1451, %v1995
        %v1997 = vpop.f32.mrb[0].mxu0
        %v1998 = vadd.f32 %v1451, %v1997
        %v1999 = vpop.f32.mrb[0].mxu0
        %v2000 = vadd.f32 %v1456, %v1999
        %v2001 = vpop.f32.mrb[0].mxu0
        %v2002 = vadd.f32 %v1456, %v2001
        %2003 = vdwg.mxu0
        %2004 = vmatprep.subr.bf16.mxu0 %v1405
        %2005 = vmatpush1.bf16.msra.mxu0 %v1404
        %2006 = vmatprep.subr.bf16.mxu0 %v1427
        %2007 = vmatpush1.bf16.msra.mxu0 %v1426
        %2008 = vmatprep.subr.bf16.mxu0 0
        %2009 = vmatpush1.bf16.msra.mxu0 0
        %2010 = vmatprep.subr.bf16.mxu0 0
        %2011 = vmatpush1.bf16.msra.mxu0 0
        %2012 = vmatprep.subr.bf16.mxu0 0
        %2013 = vmatpush1.bf16.msra.mxu0 0
        %2014 = vmatprep.subr.bf16.mxu0 0
        %2015 = vmatpush1.bf16.msra.mxu0 0
        %2016 = vmatprep.subr.bf16.mxu0 0
        %2017 = vmatpush1.bf16.msra.mxu0 0
        %2018 = vmatprep.subr.bf16.mxu0 0
        %2019 = vmatpush1.bf16.msra.mxu0 0
        %2020 = vmatprep.subr.bf16.mxu0 0
        %2021 = vmatpush1.bf16.msra.mxu0 0
        %2022 = vmatprep.subr.bf16.mxu0 0
        %2023 = vmatpush1.bf16.msra.mxu0 0
        %2024 = vmatprep.subr.bf16.mxu0 0
        %2025 = vmatpush1.bf16.msra.mxu0 0
        %2026 = vmatprep.subr.bf16.mxu0 0
        %2027 = vmatpush1.bf16.msra.mxu0 0
        %2028 = vmatprep.subr.bf16.mxu0 0
        %2029 = vmatpush1.bf16.msra.mxu0 0
        %2030 = vmatprep.subr.bf16.mxu0 0
        %2031 = vmatpush1.bf16.msra.mxu0 0
        %2032 = vmatprep.subr.bf16.mxu0 0
        %2033 = vmatpush1.bf16.msra.mxu0 0
        %2034 = vmatprep.subr.bf16.mxu0 0
        %2035 = vmatpush1.bf16.msra.mxu0 0
        %2036 = vmatprep.mubr.bf16.mxu0 0
        %2037 = vmatmul.mubr.bf16.gmra.mrb[0].mxu0 %v1469
        %v2038 = vpop.f32.mrb[0].mxu0
        %v2039 = vadd.f32 %v1441, %v2038
        %v2040 = vpop.f32.mrb[0].mxu0
        %v2041 = vadd.f32 %v1441, %v2040
        %v2042 = vpop.f32.mrb[0].mxu0
        %v2043 = vadd.f32 %v1446, %v2042
        %v2044 = vpop.f32.mrb[0].mxu0
        %v2045 = vadd.f32 %v1446, %v2044
        %2046 = vmatprep.mubr.bf16.mxu0 0
        %2047 = vmatmul.mubr.bf16.gmra.mrb[0].mxu0 %v1472
        %v2048 = vpop.f32.mrb[0].mxu0
        %v2049 = vadd.f32 %v1451, %v2048
        %v2050 = vpop.f32.mrb[0].mxu0
        %v2051 = vadd.f32 %v1451, %v2050
        %v2052 = vpop.f32.mrb[0].mxu0
        %v2053 = vadd.f32 %v1456, %v2052
        %v2054 = vpop.f32.mrb[0].mxu0
        %v2055 = vadd.f32 %v1456, %v2054
        %2056 = vdwg.mxu0
        %v2057 = vadd.s32 %v514, 768
        %v2058 = vadd.s32 %v514, 896
        %v2059 = vadd.s32 %v514, 1024
        %v2060 = vadd.s32 %v514, 1152
        %v2061 = vadd.s32 %v514, 1280
        %v2062 = vadd.s32 %v514, 1408
        %v2063 = vadd.s32 %v514, 1536
        %v2064 = vadd.s32 %v514, 1664
        %v2065 = vadd.s32 %v514, 1792
        %v2066 = vadd.s32 %v514, 1920
        %v2067 = vadd.s32 %v514, 2048
        %v2068 = vadd.s32 %v514, 2176
        %v2069 = vadd.s32 %v514, 2304
        %v2070 = vadd.s32 %v514, 2432
        %v2071 = vadd.s32 %v514, 2560
        %v2072 = vadd.s32 %v514, 2688
        %v2073 = vcvt.s32.f32 %v2057
        %v2074 = vcvt.s32.f32 %v2058
        %v2075 = vcvt.s32.f32 %v2059
        %v2076 = vcvt.s32.f32 %v2060
        %v2077 = vcvt.s32.f32 %v2061
        %v2078 = vcvt.s32.f32 %v2062
        %v2079 = vcvt.s32.f32 %v2063
        %v2080 = vcvt.s32.f32 %v2064
        %v2081 = vcvt.s32.f32 %v2065
        %v2082 = vcvt.s32.f32 %v2066
        %v2083 = vcvt.s32.f32 %v2067
        %v2084 = vcvt.s32.f32 %v2068
        %v2085 = vcvt.s32.f32 %v2069
        %v2086 = vcvt.s32.f32 %v2070
        %v2087 = vcvt.s32.f32 %v2071
        %v2088 = vcvt.s32.f32 %v2072
        %v2089 = vadd.f32 %v2073, 0.5
        %v2090 = vadd.f32 %v2074, 0.5
        %v2091 = vadd.f32 %v2075, 0.5
        %v2092 = vadd.f32 %v2076, 0.5
        %v2093 = vadd.f32 %v2077, 0.5
        %v2094 = vadd.f32 %v2078, 0.5
        %v2095 = vadd.f32 %v2079, 0.5
        %v2096 = vadd.f32 %v2080, 0.5
        %v2097 = vadd.f32 %v2081, 0.5
        %v2098 = vadd.f32 %v2082, 0.5
        %v2099 = vadd.f32 %v2083, 0.5
        %v2100 = vadd.f32 %v2084, 0.5
        %v2101 = vadd.f32 %v2085, 0.5
        %v2102 = vadd.f32 %v2086, 0.5
        %v2103 = vadd.f32 %v2087, 0.5
        %v2104 = vadd.f32 %v2088, 0.5
        %v2105 = vmul.f32 %v518, 0.01923077
        %v2106 = vmul.f32 %v519, 0.01923077
        %v2107 = vmul.f32 %v913, 0.01923077
        %v2108 = vmul.f32 %v914, 0.01923077
        %v2109 = vmul.f32 %v915, 0.01923077
        %v2110 = vmul.f32 %v916, 0.01923077
        %v2111 = vmul.f32 %v2089, 0.01923077
        %v2112 = vmul.f32 %v2090, 0.01923077
        %v2113 = vmul.f32 %v2091, 0.01923077
        %v2114 = vmul.f32 %v2092, 0.01923077
        %v2115 = vmul.f32 %v2093, 0.01923077
        %v2116 = vmul.f32 %v2094, 0.01923077
        %v2117 = vmul.f32 %v2095, 0.01923077
        %v2118 = vmul.f32 %v2096, 0.01923077
        %v2119 = vmul.f32 %v2097, 0.01923077
        %v2120 = vmul.f32 %v2098, 0.01923077
        %v2121 = vmul.f32 %v2099, 0.01923077
        %v2122 = vmul.f32 %v2100, 0.01923077
        %v2123 = vmul.f32 %v2101, 0.01923077
        %v2124 = vmul.f32 %v2102, 0.01923077
        %v2125 = vmul.f32 %v2103, 0.01923077
        %v2126 = vmul.f32 %v2104, 0.01923077
        %v2127 = vfloor.f32 %v2105
        %v2128 = vfloor.f32 %v2106
        %v2129 = vfloor.f32 %v2107
        %v2130 = vfloor.f32 %v2108
        %v2131 = vfloor.f32 %v2109
        %v2132 = vfloor.f32 %v2110
        %v2133 = vfloor.f32 %v2111
        %v2134 = vfloor.f32 %v2112
        %v2135 = vfloor.f32 %v2113
        %v2136 = vfloor.f32 %v2114
        %v2137 = vfloor.f32 %v2115
        %v2138 = vfloor.f32 %v2116
        %v2139 = vfloor.f32 %v2117
        %v2140 = vfloor.f32 %v2118
        %v2141 = vfloor.f32 %v2119
        %v2142 = vfloor.f32 %v2120
        %v2143 = vfloor.f32 %v2121
        %v2144 = vfloor.f32 %v2122
        %v2145 = vfloor.f32 %v2123
        %v2146 = vfloor.f32 %v2124
        %v2147 = vfloor.f32 %v2125
        %v2148 = vfloor.f32 %v2126
        %v2149 = vmul.f32 %v2127, 52.0
        %v2150 = vmul.f32 %v2128, 52.0
        %v2151 = vmul.f32 %v2129, 52.0
        %v2152 = vmul.f32 %v2130, 52.0
        %v2153 = vmul.f32 %v2131, 52.0
        %v2154 = vmul.f32 %v2132, 52.0
        %v2155 = vmul.f32 %v2133, 52.0
        %v2156 = vmul.f32 %v2134, 52.0
        %v2157 = vmul.f32 %v2135, 52.0
        %v2158 = vmul.f32 %v2136, 52.0
        %v2159 = vmul.f32 %v2137, 52.0
        %v2160 = vmul.f32 %v2138, 52.0
        %v2161 = vmul.f32 %v2139, 52.0
        %v2162 = vmul.f32 %v2140, 52.0
        %v2163 = vmul.f32 %v2141, 52.0
        %v2164 = vmul.f32 %v2142, 52.0
        %v2165 = vmul.f32 %v2143, 52.0
        %v2166 = vmul.f32 %v2144, 52.0
        %v2167 = vmul.f32 %v2145, 52.0
        %v2168 = vmul.f32 %v2146, 52.0
        %v2169 = vmul.f32 %v2147, 52.0
        %v2170 = vmul.f32 %v2148, 52.0
        %v2171 = vsub.f32 %v516, %v2149
        %v2172 = vsub.f32 %v517, %v2150
        %v2173 = vsub.f32 %v909, %v2151
        %v2174 = vsub.f32 %v910, %v2152
        %v2175 = vsub.f32 %v911, %v2153
        %v2176 = vsub.f32 %v912, %v2154
        %v2177 = vsub.f32 %v2073, %v2155
        %v2178 = vsub.f32 %v2074, %v2156
        %v2179 = vsub.f32 %v2075, %v2157
        %v2180 = vsub.f32 %v2076, %v2158
        %v2181 = vsub.f32 %v2077, %v2159
        %v2182 = vsub.f32 %v2078, %v2160
        %v2183 = vsub.f32 %v2079, %v2161
        %v2184 = vsub.f32 %v2080, %v2162
        %v2185 = vsub.f32 %v2081, %v2163
        %v2186 = vsub.f32 %v2082, %v2164
        %v2187 = vsub.f32 %v2083, %v2165
        %v2188 = vsub.f32 %v2084, %v2166
        %v2189 = vsub.f32 %v2085, %v2167
        %v2190 = vsub.f32 %v2086, %v2168
        %v2191 = vsub.f32 %v2087, %v2169
        %v2192 = vsub.f32 %v2088, %v2170
        %v2193 = vsel %vm531, 16.0, 33.0
        %v2194 = vsel %vm530, 10.0, %v2193
        %v2195 = vsel %vm531, 30.0, 23.0
        %v2196 = vsel %vm530, 13.0, %v2195
        %2197 = vst [vmem:[%s400] sm:$0x77] %v536
        %2198 = vst [vmem:[%s400 + $0x8] sm:$0x77] %v536
        %2199 = vst [vmem:[%s400 + $0x10] sm:$0x77] %v536
        %2200 = vst [vmem:[%s400 + $0x18] sm:$0x77] %v536
        %2201 = vst [vmem:[%s400 + $0x20] sm:$0x77] %v536
        %2202 = vst [vmem:[%s400 + $0x28] sm:$0x77] %v536
        %2203 = vst [vmem:[%s400 + $0x30] sm:$0x77] %v536
        %2204 = vst [vmem:[%s400 + $0x38] sm:$0x77] %v536
        %2205 = vst [vmem:[%s400 + $0x40] sm:$0x77] %v536
        %2206 = vst [vmem:[%s400 + $0x48] sm:$0x77] %v536
        %vm2207 = vcmask 129028
        %vm2208 = vmor %vm2207, %vm537
        %2209 = vst.msk [vmem:[%s400 + $0x50] sm:$0x77] %vm2208, %v536
        %v2210 = vsub.f32 0.0, %v1509
        %v2211 = vsub.f32 0.0, %v1511
        %v2212 = vsub.f32 0.0, %v1562
        %v2213 = vsub.f32 0.0, %v1564
        %v2214 = vsub.f32 0.0, %v1615
        %v2215 = vsub.f32 0.0, %v1617
        %v2216 = vsub.f32 0.0, %v1668
        %v2217 = vsub.f32 0.0, %v1670
        %v2218 = vsub.f32 0.0, %v1721
        %v2219 = vsub.f32 0.0, %v1723
        %v2220 = vsub.f32 0.0, %v1774
        %v2221 = vsub.f32 0.0, %v1776
        %v2222 = vsub.f32 0.0, %v1827
        %v2223 = vsub.f32 0.0, %v1829
        %v2224 = vsub.f32 0.0, %v1880
        %v2225 = vsub.f32 0.0, %v1882
        %v2226 = vsub.f32 0.0, %v1933
        %v2227 = vsub.f32 0.0, %v1935
        %v2228 = vsub.f32 0.0, %v1986
        %v2229 = vsub.f32 0.0, %v1988
        %v2230 = vsub.f32 0.0, %v2039
        %v2231 = vsub.f32 0.0, %v2041
        %v2232 = vmul.f32 %v2210, 1.442695
        %v2233 = vpow.pop %v2232
        %v2234 = vmul.f32 %v2211, 1.442695
        %v2235 = vpow.pop %v2234
        %v2236 = vmul.f32 %v2212, 1.442695
        %v2237 = vpow.pop %v2236
        %v2238 = vmul.f32 %v2213, 1.442695
        %v2239 = vpow.pop %v2238
        %v2240 = vmul.f32 %v2214, 1.442695
        %v2241 = vpow.pop %v2240
        %v2242 = vmul.f32 %v2215, 1.442695
        %v2243 = vpow.pop %v2242
        %v2244 = vmul.f32 %v2216, 1.442695
        %v2245 = vpow.pop %v2244
        %v2246 = vmul.f32 %v2217, 1.442695
        %v2247 = vpow.pop %v2246
        %v2248 = vmul.f32 %v2218, 1.442695
        %v2249 = vpow.pop %v2248
        %v2250 = vmul.f32 %v2219, 1.442695
        %v2251 = vpow.pop %v2250
        %v2252 = vmul.f32 %v2220, 1.442695
        %v2253 = vpow.pop %v2252
        %v2254 = vmul.f32 %v2221, 1.442695
        %v2255 = vpow.pop %v2254
        %v2256 = vmul.f32 %v2222, 1.442695
        %v2257 = vpow.pop %v2256
        %v2258 = vmul.f32 %v2223, 1.442695
        %v2259 = vpow.pop %v2258
        %v2260 = vmul.f32 %v2224, 1.442695
        %v2261 = vpow.pop %v2260
        %v2262 = vmul.f32 %v2225, 1.442695
        %v2263 = vpow.pop %v2262
        %v2264 = vmul.f32 %v2226, 1.442695
        %v2265 = vpow.pop %v2264
        %v2266 = vmul.f32 %v2227, 1.442695
        %v2267 = vpow.pop %v2266
        %v2268 = vmul.f32 %v2228, 1.442695
        %v2269 = vpow.pop %v2268
        %v2270 = vmul.f32 %v2229, 1.442695
        %v2271 = vpow.pop %v2270
        %v2272 = vmul.f32 %v2230, 1.442695
        %v2273 = vpow.pop %v2272
        %v2274 = vmul.f32 %v2231, 1.442695
        %v2275 = vpow.pop %v2274
        %v2276 = vadd.f32 %v2233, 1.0
        %v2277 = vadd.f32 %v2235, 1.0
        %v2278 = vadd.f32 %v2237, 1.0
        %v2279 = vadd.f32 %v2239, 1.0
        %v2280 = vadd.f32 %v2241, 1.0
        %v2281 = vadd.f32 %v2243, 1.0
        %v2282 = vadd.f32 %v2245, 1.0
        %v2283 = vadd.f32 %v2247, 1.0
        %v2284 = vadd.f32 %v2249, 1.0
        %v2285 = vadd.f32 %v2251, 1.0
        %v2286 = vadd.f32 %v2253, 1.0
        %v2287 = vadd.f32 %v2255, 1.0
        %v2288 = vadd.f32 %v2257, 1.0
        %v2289 = vadd.f32 %v2259, 1.0
        %v2290 = vadd.f32 %v2261, 1.0
        %v2291 = vadd.f32 %v2263, 1.0
        %v2292 = vadd.f32 %v2265, 1.0
        %v2293 = vadd.f32 %v2267, 1.0
        %v2294 = vadd.f32 %v2269, 1.0
        %v2295 = vadd.f32 %v2271, 1.0
        %v2296 = vadd.f32 %v2273, 1.0
        %v2297 = vadd.f32 %v2275, 1.0
        %v2298 = vrcp.pop %v2276
        %v2299 = vrcp.pop %v2277
        %v2300 = vrcp.pop %v2278
        %v2301 = vrcp.pop %v2279
        %v2302 = vrcp.pop %v2280
        %v2303 = vrcp.pop %v2281
        %v2304 = vrcp.pop %v2282
        %v2305 = vrcp.pop %v2283
        %v2306 = vrcp.pop %v2284
        %v2307 = vrcp.pop %v2285
        %v2308 = vrcp.pop %v2286
        %v2309 = vrcp.pop %v2287
        %v2310 = vrcp.pop %v2288
        %v2311 = vrcp.pop %v2289
        %v2312 = vrcp.pop %v2290
        %v2313 = vrcp.pop %v2291
        %v2314 = vrcp.pop %v2292
        %v2315 = vrcp.pop %v2293
        %v2316 = vrcp.pop %v2294
        %v2317 = vrcp.pop %v2295
        %v2318 = vrcp.pop %v2296
        %v2319 = vrcp.pop %v2297
        %v2342 = vcombine.low %v2298, %v2299
        %v2343 = vcombine.low %v2300, %v2301
        %v2344 = vcombine.low %v2302, %v2303
        %v2345 = vcombine.low %v2304, %v2305
        %v2346 = vcombine.low %v2306, %v2307
        %v2347 = vcombine.low %v2308, %v2309
        %v2348 = vcombine.low %v2310, %v2311
        %v2349 = vcombine.low %v2312, %v2313
        %v2350 = vcombine.low %v2314, %v2315
        %v2351 = vcombine.low %v2316, %v2317
        %v2352 = vcombine.low %v2318, %v2319
        %s2364 = scalar_lea.vmem %s400, 88
        %2365 = vst [vmem:[%s2364] sm:$0x77] %v2342
        %2366 = vst [vmem:[%s2364 + $0x8] sm:$0x77] %v2343
        %2367 = vst [vmem:[%s2364 + $0x10] sm:$0x77] %v2344
        %2368 = vst [vmem:[%s2364 + $0x18] sm:$0x77] %v2345
        %2369 = vst [vmem:[%s2364 + $0x20] sm:$0x77] %v2346
        %2370 = vst [vmem:[%s2364 + $0x28] sm:$0x77] %v2347
        %2371 = vst [vmem:[%s2364 + $0x30] sm:$0x77] %v2348
        %2372 = vst [vmem:[%s2364 + $0x38] sm:$0x77] %v2349
        %2373 = vst [vmem:[%s2364 + $0x40] sm:$0x77] %v2350
        %2374 = vst [vmem:[%s2364 + $0x48] sm:$0x77] %v2351
        %2375 = vst.msk [vmem:[%s2364 + $0x50] sm:$0x77] %vm2208, %v2352
        %v2376 = vadd.f32 %v2171, %v1509
        %v2377 = vadd.f32 %v2172, %v1511
        %v2378 = vadd.f32 %v2173, %v1562
        %v2379 = vadd.f32 %v2174, %v1564
        %v2380 = vadd.f32 %v2175, %v1615
        %v2381 = vadd.f32 %v2176, %v1617
        %v2382 = vadd.f32 %v2177, %v1668
        %v2383 = vadd.f32 %v2178, %v1670
        %v2384 = vadd.f32 %v2179, %v1721
        %v2385 = vadd.f32 %v2180, %v1723
        %v2386 = vadd.f32 %v2181, %v1774
        %v2387 = vadd.f32 %v2182, %v1776
        %v2388 = vadd.f32 %v2183, %v1827
        %v2389 = vadd.f32 %v2184, %v1829
        %v2390 = vadd.f32 %v2185, %v1880
        %v2391 = vadd.f32 %v2186, %v1882
        %v2392 = vadd.f32 %v2187, %v1933
        %v2393 = vadd.f32 %v2188, %v1935
        %v2394 = vadd.f32 %v2189, %v1986
        %v2395 = vadd.f32 %v2190, %v1988
        %v2396 = vadd.f32 %v2191, %v2039
        %v2397 = vadd.f32 %v2192, %v2041
        %v2398 = vmul.f32 %v2376, 8.0
        %v2399 = vmul.f32 %v2377, 8.0
        %v2400 = vmul.f32 %v2378, 8.0
        %v2401 = vmul.f32 %v2379, 8.0
        %v2402 = vmul.f32 %v2380, 8.0
        %v2403 = vmul.f32 %v2381, 8.0
        %v2404 = vmul.f32 %v2382, 8.0
        %v2405 = vmul.f32 %v2383, 8.0
        %v2406 = vmul.f32 %v2384, 8.0
        %v2407 = vmul.f32 %v2385, 8.0
        %v2408 = vmul.f32 %v2386, 8.0
        %v2409 = vmul.f32 %v2387, 8.0
        %v2410 = vmul.f32 %v2388, 8.0
        %v2411 = vmul.f32 %v2389, 8.0
        %v2412 = vmul.f32 %v2390, 8.0
        %v2413 = vmul.f32 %v2391, 8.0
        %v2414 = vmul.f32 %v2392, 8.0
        %v2415 = vmul.f32 %v2393, 8.0
        %v2416 = vmul.f32 %v2394, 8.0
        %v2417 = vmul.f32 %v2395, 8.0
        %v2418 = vmul.f32 %v2396, 8.0
        %v2419 = vmul.f32 %v2397, 8.0
        %v2442 = vcombine.low %v2398, %v2399
        %v2443 = vcombine.high %v2398, %v2399
        %v2444 = vcombine.low %v2400, %v2401
        %v2445 = vcombine.high %v2400, %v2401
        %v2446 = vcombine.low %v2402, %v2403
        %v2447 = vcombine.high %v2402, %v2403
        %v2448 = vcombine.low %v2404, %v2405
        %v2449 = vcombine.high %v2404, %v2405
        %v2450 = vcombine.low %v2406, %v2407
        %v2451 = vcombine.high %v2406, %v2407
        %v2452 = vcombine.low %v2408, %v2409
        %v2453 = vcombine.high %v2408, %v2409
        %v2454 = vcombine.low %v2410, %v2411
        %v2455 = vcombine.high %v2410, %v2411
        %v2456 = vcombine.low %v2412, %v2413
        %v2457 = vcombine.high %v2412, %v2413
        %v2458 = vcombine.low %v2414, %v2415
        %v2459 = vcombine.high %v2414, %v2415
        %v2460 = vcombine.low %v2416, %v2417
        %v2461 = vcombine.high %v2416, %v2417
        %v2462 = vcombine.low %v2418, %v2419
        %v2463 = vcombine.high %v2418, %v2419
        %v2464 = vrot.slane %v2442, 7
        %v2465 = vrot.slane %v2464, 4
        %v2466 = vrot.slane %v2443, 7
        %v2467 = vsel %vm567, %v2465, %v2466
        %v2468 = vrot.slane %v2444, 7
        %v2469 = vrot.slane %v2468, 4
        %v2470 = vrot.slane %v2445, 7
        %v2471 = vsel %vm567, %v2469, %v2470
        %v2472 = vrot.slane %v2446, 7
        %v2473 = vrot.slane %v2472, 4
        %v2474 = vrot.slane %v2447, 7
        %v2475 = vsel %vm567, %v2473, %v2474
        %v2476 = vrot.slane %v2448, 7
        %v2477 = vrot.slane %v2476, 4
        %v2478 = vrot.slane %v2449, 7
        %v2479 = vsel %vm567, %v2477, %v2478
        %v2480 = vrot.slane %v2450, 7
        %v2481 = vrot.slane %v2480, 4
        %v2482 = vrot.slane %v2451, 7
        %v2483 = vsel %vm567, %v2481, %v2482
        %v2484 = vrot.slane %v2452, 7
        %v2485 = vrot.slane %v2484, 4
        %v2486 = vrot.slane %v2453, 7
        %v2487 = vsel %vm567, %v2485, %v2486
        %v2488 = vrot.slane %v2454, 7
        %v2489 = vrot.slane %v2488, 4
        %v2490 = vrot.slane %v2455, 7
        %v2491 = vsel %vm567, %v2489, %v2490
        %v2492 = vrot.slane %v2456, 7
        %v2493 = vrot.slane %v2492, 4
        %v2494 = vrot.slane %v2457, 7
        %v2495 = vsel %vm567, %v2493, %v2494
        %v2496 = vrot.slane %v2458, 7
        %v2497 = vrot.slane %v2496, 4
        %v2498 = vrot.slane %v2459, 7
        %v2499 = vsel %vm567, %v2497, %v2498
        %v2500 = vrot.slane %v2460, 7
        %v2501 = vrot.slane %v2500, 4
        %v2502 = vrot.slane %v2461, 7
        %v2503 = vsel %vm567, %v2501, %v2502
        %v2504 = vrot.slane %v2462, 7
        %v2505 = vrot.slane %v2504, 4
        %v2506 = vrot.slane %v2463, 7
        %v2507 = vsel %vm567, %v2505, %v2506
        %s2519 = scalar_lea.vmem %s400, 176
        %2520 = vst [vmem:[%s2519] sm:$0x77] %v2467
        %2521 = vst [vmem:[%s2519 + $0x8] sm:$0x77] %v2471
        %2522 = vst [vmem:[%s2519 + $0x10] sm:$0x77] %v2475
        %2523 = vst [vmem:[%s2519 + $0x18] sm:$0x77] %v2479
        %2524 = vst [vmem:[%s2519 + $0x20] sm:$0x77] %v2483
        %2525 = vst [vmem:[%s2519 + $0x28] sm:$0x77] %v2487
        %2526 = vst [vmem:[%s2519 + $0x30] sm:$0x77] %v2491
        %2527 = vst [vmem:[%s2519 + $0x38] sm:$0x77] %v2495
        %2528 = vst [vmem:[%s2519 + $0x40] sm:$0x77] %v2499
        %2529 = vst [vmem:[%s2519 + $0x48] sm:$0x77] %v2503
        %2530 = vst.msk [vmem:[%s2519 + $0x50] sm:$0x77] %vm2208, %v2507
        %v2531 = vadd.f32 %v2127, %v1509
        %v2532 = vadd.f32 %v2128, %v1511
        %v2533 = vadd.f32 %v2129, %v1562
        %v2534 = vadd.f32 %v2130, %v1564
        %v2535 = vadd.f32 %v2131, %v1615
        %v2536 = vadd.f32 %v2132, %v1617
        %v2537 = vadd.f32 %v2133, %v1668
        %v2538 = vadd.f32 %v2134, %v1670
        %v2539 = vadd.f32 %v2135, %v1721
        %v2540 = vadd.f32 %v2136, %v1723
        %v2541 = vadd.f32 %v2137, %v1774
        %v2542 = vadd.f32 %v2138, %v1776
        %v2543 = vadd.f32 %v2139, %v1827
        %v2544 = vadd.f32 %v2140, %v1829
        %v2545 = vadd.f32 %v2141, %v1880
        %v2546 = vadd.f32 %v2142, %v1882
        %v2547 = vadd.f32 %v2143, %v1933
        %v2548 = vadd.f32 %v2144, %v1935
        %v2549 = vadd.f32 %v2145, %v1986
        %v2550 = vadd.f32 %v2146, %v1988
        %v2551 = vadd.f32 %v2147, %v2039
        %v2552 = vadd.f32 %v2148, %v2041
        %v2553 = vmul.f32 %v2531, 8.0
        %v2554 = vmul.f32 %v2532, 8.0
        %v2555 = vmul.f32 %v2533, 8.0
        %v2556 = vmul.f32 %v2534, 8.0
        %v2557 = vmul.f32 %v2535, 8.0
        %v2558 = vmul.f32 %v2536, 8.0
        %v2559 = vmul.f32 %v2537, 8.0
        %v2560 = vmul.f32 %v2538, 8.0
        %v2561 = vmul.f32 %v2539, 8.0
        %v2562 = vmul.f32 %v2540, 8.0
        %v2563 = vmul.f32 %v2541, 8.0
        %v2564 = vmul.f32 %v2542, 8.0
        %v2565 = vmul.f32 %v2543, 8.0
        %v2566 = vmul.f32 %v2544, 8.0
        %v2567 = vmul.f32 %v2545, 8.0
        %v2568 = vmul.f32 %v2546, 8.0
        %v2569 = vmul.f32 %v2547, 8.0
        %v2570 = vmul.f32 %v2548, 8.0
        %v2571 = vmul.f32 %v2549, 8.0
        %v2572 = vmul.f32 %v2550, 8.0
        %v2573 = vmul.f32 %v2551, 8.0
        %v2574 = vmul.f32 %v2552, 8.0
        %v2597 = vcombine.low %v2553, %v2554
        %v2598 = vcombine.high %v2553, %v2554
        %v2599 = vcombine.low %v2555, %v2556
        %v2600 = vcombine.high %v2555, %v2556
        %v2601 = vcombine.low %v2557, %v2558
        %v2602 = vcombine.high %v2557, %v2558
        %v2603 = vcombine.low %v2559, %v2560
        %v2604 = vcombine.high %v2559, %v2560
        %v2605 = vcombine.low %v2561, %v2562
        %v2606 = vcombine.high %v2561, %v2562
        %v2607 = vcombine.low %v2563, %v2564
        %v2608 = vcombine.high %v2563, %v2564
        %v2609 = vcombine.low %v2565, %v2566
        %v2610 = vcombine.high %v2565, %v2566
        %v2611 = vcombine.low %v2567, %v2568
        %v2612 = vcombine.high %v2567, %v2568
        %v2613 = vcombine.low %v2569, %v2570
        %v2614 = vcombine.high %v2569, %v2570
        %v2615 = vcombine.low %v2571, %v2572
        %v2616 = vcombine.high %v2571, %v2572
        %v2617 = vcombine.low %v2573, %v2574
        %v2618 = vcombine.high %v2573, %v2574
        %v2619 = vrot.slane %v2597, 7
        %v2620 = vrot.slane %v2619, 4
        %v2621 = vrot.slane %v2598, 7
        %v2622 = vsel %vm567, %v2620, %v2621
        %v2623 = vrot.slane %v2599, 7
        %v2624 = vrot.slane %v2623, 4
        %v2625 = vrot.slane %v2600, 7
        %v2626 = vsel %vm567, %v2624, %v2625
        %v2627 = vrot.slane %v2601, 7
        %v2628 = vrot.slane %v2627, 4
        %v2629 = vrot.slane %v2602, 7
        %v2630 = vsel %vm567, %v2628, %v2629
        %v2631 = vrot.slane %v2603, 7
        %v2632 = vrot.slane %v2631, 4
        %v2633 = vrot.slane %v2604, 7
        %v2634 = vsel %vm567, %v2632, %v2633
        %v2635 = vrot.slane %v2605, 7
        %v2636 = vrot.slane %v2635, 4
        %v2637 = vrot.slane %v2606, 7
        %v2638 = vsel %vm567, %v2636, %v2637
        %v2639 = vrot.slane %v2607, 7
        %v2640 = vrot.slane %v2639, 4
        %v2641 = vrot.slane %v2608, 7
        %v2642 = vsel %vm567, %v2640, %v2641
        %v2643 = vrot.slane %v2609, 7
        %v2644 = vrot.slane %v2643, 4
        %v2645 = vrot.slane %v2610, 7
        %v2646 = vsel %vm567, %v2644, %v2645
        %v2647 = vrot.slane %v2611, 7
        %v2648 = vrot.slane %v2647, 4
        %v2649 = vrot.slane %v2612, 7
        %v2650 = vsel %vm567, %v2648, %v2649
        %v2651 = vrot.slane %v2613, 7
        %v2652 = vrot.slane %v2651, 4
        %v2653 = vrot.slane %v2614, 7
        %v2654 = vsel %vm567, %v2652, %v2653
        %v2655 = vrot.slane %v2615, 7
        %v2656 = vrot.slane %v2655, 4
        %v2657 = vrot.slane %v2616, 7
        %v2658 = vsel %vm567, %v2656, %v2657
        %v2659 = vrot.slane %v2617, 7
        %v2660 = vrot.slane %v2659, 4
        %v2661 = vrot.slane %v2618, 7
        %v2662 = vsel %vm567, %v2660, %v2661
        %s2674 = scalar_lea.vmem %s400, 264
        %2675 = vst [vmem:[%s2674] sm:$0x77] %v2622
        %2676 = vst [vmem:[%s2674 + $0x8] sm:$0x77] %v2626
        %2677 = vst [vmem:[%s2674 + $0x10] sm:$0x77] %v2630
        %2678 = vst [vmem:[%s2674 + $0x18] sm:$0x77] %v2634
        %2679 = vst [vmem:[%s2674 + $0x20] sm:$0x77] %v2638
        %2680 = vst [vmem:[%s2674 + $0x28] sm:$0x77] %v2642
        %2681 = vst [vmem:[%s2674 + $0x30] sm:$0x77] %v2646
        %2682 = vst [vmem:[%s2674 + $0x38] sm:$0x77] %v2650
        %2683 = vst [vmem:[%s2674 + $0x40] sm:$0x77] %v2654
        %2684 = vst [vmem:[%s2674 + $0x48] sm:$0x77] %v2658
        %2685 = vst.msk [vmem:[%s2674 + $0x50] sm:$0x77] %vm2208, %v2662
        %v2686 = vmul.f32 %v1513, 1.442695
        %v2687 = vpow.pop %v2686
        %v2688 = vmul.f32 %v1515, 1.442695
        %v2689 = vpow.pop %v2688
        %v2690 = vmul.f32 %v1566, 1.442695
        %v2691 = vpow.pop %v2690
        %v2692 = vmul.f32 %v1568, 1.442695
        %v2693 = vpow.pop %v2692
        %v2694 = vmul.f32 %v1619, 1.442695
        %v2695 = vpow.pop %v2694
        %v2696 = vmul.f32 %v1621, 1.442695
        %v2697 = vpow.pop %v2696
        %v2698 = vmul.f32 %v1672, 1.442695
        %v2699 = vpow.pop %v2698
        %v2700 = vmul.f32 %v1674, 1.442695
        %v2701 = vpow.pop %v2700
        %v2702 = vmul.f32 %v1725, 1.442695
        %v2703 = vpow.pop %v2702
        %v2704 = vmul.f32 %v1727, 1.442695
        %v2705 = vpow.pop %v2704
        %v2706 = vmul.f32 %v1778, 1.442695
        %v2707 = vpow.pop %v2706
        %v2708 = vmul.f32 %v1780, 1.442695
        %v2709 = vpow.pop %v2708
        %v2710 = vmul.f32 %v1831, 1.442695
        %v2711 = vpow.pop %v2710
        %v2712 = vmul.f32 %v1833, 1.442695
        %v2713 = vpow.pop %v2712
        %v2714 = vmul.f32 %v1884, 1.442695
        %v2715 = vpow.pop %v2714
        %v2716 = vmul.f32 %v1886, 1.442695
        %v2717 = vpow.pop %v2716
        %v2718 = vmul.f32 %v1937, 1.442695
        %v2719 = vpow.pop %v2718
        %v2720 = vmul.f32 %v1939, 1.442695
        %v2721 = vpow.pop %v2720
        %v2722 = vmul.f32 %v1990, 1.442695
        %v2723 = vpow.pop %v2722
        %v2724 = vmul.f32 %v1992, 1.442695
        %v2725 = vpow.pop %v2724
        %v2726 = vmul.f32 %v2043, 1.442695
        %v2727 = vpow.pop %v2726
        %v2728 = vmul.f32 %v2045, 1.442695
        %v2729 = vpow.pop %v2728
        %v2730 = vmul.f32 %v2194, %v2687
        %v2731 = vmul.f32 %v2194, %v2689
        %v2732 = vmul.f32 %v2194, %v2691
        %v2733 = vmul.f32 %v2194, %v2693
        %v2734 = vmul.f32 %v2194, %v2695
        %v2735 = vmul.f32 %v2194, %v2697
        %v2736 = vmul.f32 %v2194, %v2699
        %v2737 = vmul.f32 %v2194, %v2701
        %v2738 = vmul.f32 %v2194, %v2703
        %v2739 = vmul.f32 %v2194, %v2705
        %v2740 = vmul.f32 %v2194, %v2707
        %v2741 = vmul.f32 %v2194, %v2709
        %v2742 = vmul.f32 %v2194, %v2711
        %v2743 = vmul.f32 %v2194, %v2713
        %v2744 = vmul.f32 %v2194, %v2715
        %v2745 = vmul.f32 %v2194, %v2717
        %v2746 = vmul.f32 %v2194, %v2719
        %v2747 = vmul.f32 %v2194, %v2721
        %v2748 = vmul.f32 %v2194, %v2723
        %v2749 = vmul.f32 %v2194, %v2725
        %v2750 = vmul.f32 %v2194, %v2727
        %v2751 = vmul.f32 %v2194, %v2729
        %v2774 = vcombine.low %v2730, %v2731
        %v2775 = vcombine.low %v2732, %v2733
        %v2776 = vcombine.low %v2734, %v2735
        %v2777 = vcombine.low %v2736, %v2737
        %v2778 = vcombine.low %v2738, %v2739
        %v2779 = vcombine.low %v2740, %v2741
        %v2780 = vcombine.low %v2742, %v2743
        %v2781 = vcombine.low %v2744, %v2745
        %v2782 = vcombine.low %v2746, %v2747
        %v2783 = vcombine.low %v2748, %v2749
        %v2784 = vcombine.low %v2750, %v2751
        %s2796 = scalar_lea.vmem %s400, 352
        %2797 = vst [vmem:[%s2796] sm:$0x77] %v2774
        %2798 = vst [vmem:[%s2796 + $0x8] sm:$0x77] %v2775
        %2799 = vst [vmem:[%s2796 + $0x10] sm:$0x77] %v2776
        %2800 = vst [vmem:[%s2796 + $0x18] sm:$0x77] %v2777
        %2801 = vst [vmem:[%s2796 + $0x20] sm:$0x77] %v2778
        %2802 = vst [vmem:[%s2796 + $0x28] sm:$0x77] %v2779
        %2803 = vst [vmem:[%s2796 + $0x30] sm:$0x77] %v2780
        %2804 = vst [vmem:[%s2796 + $0x38] sm:$0x77] %v2781
        %2805 = vst [vmem:[%s2796 + $0x40] sm:$0x77] %v2782
        %2806 = vst [vmem:[%s2796 + $0x48] sm:$0x77] %v2783
        %2807 = vst.msk [vmem:[%s2796 + $0x50] sm:$0x77] %vm2208, %v2784
        %v2830 = vrot.slane %v2687, 3
        %v2831 = vrot.slane %v2689, 3
        %v2832 = vrot.slane %v2691, 3
        %v2833 = vrot.slane %v2693, 3
        %v2834 = vrot.slane %v2695, 3
        %v2835 = vrot.slane %v2697, 3
        %v2836 = vrot.slane %v2699, 3
        %v2837 = vrot.slane %v2701, 3
        %v2838 = vrot.slane %v2703, 3
        %v2839 = vrot.slane %v2705, 3
        %v2840 = vrot.slane %v2707, 3
        %v2841 = vrot.slane %v2709, 3
        %v2842 = vrot.slane %v2711, 3
        %v2843 = vrot.slane %v2713, 3
        %v2844 = vrot.slane %v2715, 3
        %v2845 = vrot.slane %v2717, 3
        %v2846 = vrot.slane %v2719, 3
        %v2847 = vrot.slane %v2721, 3
        %v2848 = vrot.slane %v2723, 3
        %v2849 = vrot.slane %v2725, 3
        %v2850 = vrot.slane %v2727, 3
        %v2851 = vrot.slane %v2729, 3
        %v2874 = vmul.f32 %v2196, %v2830
        %v2875 = vmul.f32 %v2196, %v2831
        %v2876 = vmul.f32 %v2196, %v2832
        %v2877 = vmul.f32 %v2196, %v2833
        %v2878 = vmul.f32 %v2196, %v2834
        %v2879 = vmul.f32 %v2196, %v2835
        %v2880 = vmul.f32 %v2196, %v2836
        %v2881 = vmul.f32 %v2196, %v2837
        %v2882 = vmul.f32 %v2196, %v2838
        %v2883 = vmul.f32 %v2196, %v2839
        %v2884 = vmul.f32 %v2196, %v2840
        %v2885 = vmul.f32 %v2196, %v2841
        %v2886 = vmul.f32 %v2196, %v2842
        %v2887 = vmul.f32 %v2196, %v2843
        %v2888 = vmul.f32 %v2196, %v2844
        %v2889 = vmul.f32 %v2196, %v2845
        %v2890 = vmul.f32 %v2196, %v2846
        %v2891 = vmul.f32 %v2196, %v2847
        %v2892 = vmul.f32 %v2196, %v2848
        %v2893 = vmul.f32 %v2196, %v2849
        %v2894 = vmul.f32 %v2196, %v2850
        %v2895 = vmul.f32 %v2196, %v2851
        %v2918 = vcombine.low %v2874, %v2875
        %v2919 = vcombine.low %v2876, %v2877
        %v2920 = vcombine.low %v2878, %v2879
        %v2921 = vcombine.low %v2880, %v2881
        %v2922 = vcombine.low %v2882, %v2883
        %v2923 = vcombine.low %v2884, %v2885
        %v2924 = vcombine.low %v2886, %v2887
        %v2925 = vcombine.low %v2888, %v2889
        %v2926 = vcombine.low %v2890, %v2891
        %v2927 = vcombine.low %v2892, %v2893
        %v2928 = vcombine.low %v2894, %v2895
        %s2940 = scalar_lea.vmem %s400, 440
        %2941 = vst [vmem:[%s2940] sm:$0x77] %v2918
        %2942 = vst [vmem:[%s2940 + $0x8] sm:$0x77] %v2919
        %2943 = vst [vmem:[%s2940 + $0x10] sm:$0x77] %v2920
        %2944 = vst [vmem:[%s2940 + $0x18] sm:$0x77] %v2921
        %2945 = vst [vmem:[%s2940 + $0x20] sm:$0x77] %v2922
        %2946 = vst [vmem:[%s2940 + $0x28] sm:$0x77] %v2923
        %2947 = vst [vmem:[%s2940 + $0x30] sm:$0x77] %v2924
        %2948 = vst [vmem:[%s2940 + $0x38] sm:$0x77] %v2925
        %2949 = vst [vmem:[%s2940 + $0x40] sm:$0x77] %v2926
        %2950 = vst [vmem:[%s2940 + $0x48] sm:$0x77] %v2927
        %2951 = vst.msk [vmem:[%s2940 + $0x50] sm:$0x77] %vm2208, %v2928
        %v2974 = vrot.slane %v1519, 3
        %v2975 = vrot.slane %v1521, 3
        %v2976 = vrot.slane %v1572, 3
        %v2977 = vrot.slane %v1574, 3
        %v2978 = vrot.slane %v1625, 3
        %v2979 = vrot.slane %v1627, 3
        %v2980 = vrot.slane %v1678, 3
        %v2981 = vrot.slane %v1680, 3
        %v2982 = vrot.slane %v1731, 3
        %v2983 = vrot.slane %v1733, 3
        %v2984 = vrot.slane %v1784, 3
        %v2985 = vrot.slane %v1786, 3
        %v2986 = vrot.slane %v1837, 3
        %v2987 = vrot.slane %v1839, 3
        %v2988 = vrot.slane %v1890, 3
        %v2989 = vrot.slane %v1892, 3
        %v2990 = vrot.slane %v1943, 3
        %v2991 = vrot.slane %v1945, 3
        %v2992 = vrot.slane %v1996, 3
        %v2993 = vrot.slane %v1998, 3
        %v2994 = vrot.slane %v2049, 3
        %v2995 = vrot.slane %v2051, 3
        %v3018 = vmax.f32 %v1519, %v2974
        %v3019 = vmax.f32 %v1521, %v2975
        %v3020 = vmax.f32 %v1572, %v2976
        %v3021 = vmax.f32 %v1574, %v2977
        %v3022 = vmax.f32 %v1625, %v2978
        %v3023 = vmax.f32 %v1627, %v2979
        %v3024 = vmax.f32 %v1678, %v2980
        %v3025 = vmax.f32 %v1680, %v2981
        %v3026 = vmax.f32 %v1731, %v2982
        %v3027 = vmax.f32 %v1733, %v2983
        %v3028 = vmax.f32 %v1784, %v2984
        %v3029 = vmax.f32 %v1786, %v2985
        %v3030 = vmax.f32 %v1837, %v2986
        %v3031 = vmax.f32 %v1839, %v2987
        %v3032 = vmax.f32 %v1890, %v2988
        %v3033 = vmax.f32 %v1892, %v2989
        %v3034 = vmax.f32 %v1943, %v2990
        %v3035 = vmax.f32 %v1945, %v2991
        %v3036 = vmax.f32 %v1996, %v2992
        %v3037 = vmax.f32 %v1998, %v2993
        %v3038 = vmax.f32 %v2049, %v2994
        %v3039 = vmax.f32 %v2051, %v2995
        %v3040 = vmax.f32 %v3018, %v1523
        %v3041 = vmax.f32 %v3019, %v1525
        %v3042 = vmax.f32 %v3020, %v1576
        %v3043 = vmax.f32 %v3021, %v1578
        %v3044 = vmax.f32 %v3022, %v1629
        %v3045 = vmax.f32 %v3023, %v1631
        %v3046 = vmax.f32 %v3024, %v1682
        %v3047 = vmax.f32 %v3025, %v1684
        %v3048 = vmax.f32 %v3026, %v1735
        %v3049 = vmax.f32 %v3027, %v1737
        %v3050 = vmax.f32 %v3028, %v1788
        %v3051 = vmax.f32 %v3029, %v1790
        %v3052 = vmax.f32 %v3030, %v1841
        %v3053 = vmax.f32 %v3031, %v1843
        %v3054 = vmax.f32 %v3032, %v1894
        %v3055 = vmax.f32 %v3033, %v1896
        %v3056 = vmax.f32 %v3034, %v1947
        %v3057 = vmax.f32 %v3035, %v1949
        %v3058 = vmax.f32 %v3036, %v2000
        %v3059 = vmax.f32 %v3037, %v2002
        %v3060 = vmax.f32 %v3038, %v2053
        %v3061 = vmax.f32 %v3039, %v2055
        %vm3062 = vcmp.ge.f32.partialorder %v1519, %v3040
        %vm3063 = vcmp.ge.f32.partialorder %v1521, %v3041
        %vm3064 = vcmp.ge.f32.partialorder %v1572, %v3042
        %vm3065 = vcmp.ge.f32.partialorder %v1574, %v3043
        %vm3066 = vcmp.ge.f32.partialorder %v1625, %v3044
        %vm3067 = vcmp.ge.f32.partialorder %v1627, %v3045
        %vm3068 = vcmp.ge.f32.partialorder %v1678, %v3046
        %vm3069 = vcmp.ge.f32.partialorder %v1680, %v3047
        %vm3070 = vcmp.ge.f32.partialorder %v1731, %v3048
        %vm3071 = vcmp.ge.f32.partialorder %v1733, %v3049
        %vm3072 = vcmp.ge.f32.partialorder %v1784, %v3050
        %vm3073 = vcmp.ge.f32.partialorder %v1786, %v3051
        %vm3074 = vcmp.ge.f32.partialorder %v1837, %v3052
        %vm3075 = vcmp.ge.f32.partialorder %v1839, %v3053
        %vm3076 = vcmp.ge.f32.partialorder %v1890, %v3054
        %vm3077 = vcmp.ge.f32.partialorder %v1892, %v3055
        %vm3078 = vcmp.ge.f32.partialorder %v1943, %v3056
        %vm3079 = vcmp.ge.f32.partialorder %v1945, %v3057
        %vm3080 = vcmp.ge.f32.partialorder %v1996, %v3058
        %vm3081 = vcmp.ge.f32.partialorder %v1998, %v3059
        %vm3082 = vcmp.ge.f32.partialorder %v2049, %v3060
        %vm3083 = vcmp.ge.f32.partialorder %v2051, %v3061
        %v3106 = vrot.slane %v3040, 5
        %v3107 = vrot.slane %v3041, 5
        %v3108 = vrot.slane %v3042, 5
        %v3109 = vrot.slane %v3043, 5
        %v3110 = vrot.slane %v3044, 5
        %v3111 = vrot.slane %v3045, 5
        %v3112 = vrot.slane %v3046, 5
        %v3113 = vrot.slane %v3047, 5
        %v3114 = vrot.slane %v3048, 5
        %v3115 = vrot.slane %v3049, 5
        %v3116 = vrot.slane %v3050, 5
        %v3117 = vrot.slane %v3051, 5
        %v3118 = vrot.slane %v3052, 5
        %v3119 = vrot.slane %v3053, 5
        %v3120 = vrot.slane %v3054, 5
        %v3121 = vrot.slane %v3055, 5
        %v3122 = vrot.slane %v3056, 5
        %v3123 = vrot.slane %v3057, 5
        %v3124 = vrot.slane %v3058, 5
        %v3125 = vrot.slane %v3059, 5
        %v3126 = vrot.slane %v3060, 5
        %v3127 = vrot.slane %v3061, 5
        %vm3150 = vcmp.ge.f32.partialorder %v1519, %v3106
        %vm3151 = vcmp.ge.f32.partialorder %v1521, %v3107
        %vm3152 = vcmp.ge.f32.partialorder %v1572, %v3108
        %vm3153 = vcmp.ge.f32.partialorder %v1574, %v3109
        %vm3154 = vcmp.ge.f32.partialorder %v1625, %v3110
        %vm3155 = vcmp.ge.f32.partialorder %v1627, %v3111
        %vm3156 = vcmp.ge.f32.partialorder %v1678, %v3112
        %vm3157 = vcmp.ge.f32.partialorder %v1680, %v3113
        %vm3158 = vcmp.ge.f32.partialorder %v1731, %v3114
        %vm3159 = vcmp.ge.f32.partialorder %v1733, %v3115
        %vm3160 = vcmp.ge.f32.partialorder %v1784, %v3116
        %vm3161 = vcmp.ge.f32.partialorder %v1786, %v3117
        %vm3162 = vcmp.ge.f32.partialorder %v1837, %v3118
        %vm3163 = vcmp.ge.f32.partialorder %v1839, %v3119
        %vm3164 = vcmp.ge.f32.partialorder %v1890, %v3120
        %vm3165 = vcmp.ge.f32.partialorder %v1892, %v3121
        %vm3166 = vcmp.ge.f32.partialorder %v1943, %v3122
        %vm3167 = vcmp.ge.f32.partialorder %v1945, %v3123
        %vm3168 = vcmp.ge.f32.partialorder %v1996, %v3124
        %vm3169 = vcmp.ge.f32.partialorder %v1998, %v3125
        %vm3170 = vcmp.ge.f32.partialorder %v2049, %v3126
        %vm3171 = vcmp.ge.f32.partialorder %v2051, %v3127
        %v3172 = vsel %vm3150, 1.0, 2.0
        %v3173 = vsel %vm3151, 1.0, 2.0
        %v3174 = vsel %vm3152, 1.0, 2.0
        %v3175 = vsel %vm3153, 1.0, 2.0
        %v3176 = vsel %vm3154, 1.0, 2.0
        %v3177 = vsel %vm3155, 1.0, 2.0
        %v3178 = vsel %vm3156, 1.0, 2.0
        %v3179 = vsel %vm3157, 1.0, 2.0
        %v3180 = vsel %vm3158, 1.0, 2.0
        %v3181 = vsel %vm3159, 1.0, 2.0
        %v3182 = vsel %vm3160, 1.0, 2.0
        %v3183 = vsel %vm3161, 1.0, 2.0
        %v3184 = vsel %vm3162, 1.0, 2.0
        %v3185 = vsel %vm3163, 1.0, 2.0
        %v3186 = vsel %vm3164, 1.0, 2.0
        %v3187 = vsel %vm3165, 1.0, 2.0
        %v3188 = vsel %vm3166, 1.0, 2.0
        %v3189 = vsel %vm3167, 1.0, 2.0
        %v3190 = vsel %vm3168, 1.0, 2.0
        %v3191 = vsel %vm3169, 1.0, 2.0
        %v3192 = vsel %vm3170, 1.0, 2.0
        %v3193 = vsel %vm3171, 1.0, 2.0
        %v3216 = vrot.slane %v3172, 3
        %v3217 = vrot.slane %v3173, 3
        %v3218 = vrot.slane %v3174, 3
        %v3219 = vrot.slane %v3175, 3
        %v3220 = vrot.slane %v3176, 3
        %v3221 = vrot.slane %v3177, 3
        %v3222 = vrot.slane %v3178, 3
        %v3223 = vrot.slane %v3179, 3
        %v3224 = vrot.slane %v3180, 3
        %v3225 = vrot.slane %v3181, 3
        %v3226 = vrot.slane %v3182, 3
        %v3227 = vrot.slane %v3183, 3
        %v3228 = vrot.slane %v3184, 3
        %v3229 = vrot.slane %v3185, 3
        %v3230 = vrot.slane %v3186, 3
        %v3231 = vrot.slane %v3187, 3
        %v3232 = vrot.slane %v3188, 3
        %v3233 = vrot.slane %v3189, 3
        %v3234 = vrot.slane %v3190, 3
        %v3235 = vrot.slane %v3191, 3
        %v3236 = vrot.slane %v3192, 3
        %v3237 = vrot.slane %v3193, 3
        %v3260 = vsel %vm3062, 0.0, %v3216
        %v3261 = vsel %vm3063, 0.0, %v3217
        %v3262 = vsel %vm3064, 0.0, %v3218
        %v3263 = vsel %vm3065, 0.0, %v3219
        %v3264 = vsel %vm3066, 0.0, %v3220
        %v3265 = vsel %vm3067, 0.0, %v3221
        %v3266 = vsel %vm3068, 0.0, %v3222
        %v3267 = vsel %vm3069, 0.0, %v3223
        %v3268 = vsel %vm3070, 0.0, %v3224
        %v3269 = vsel %vm3071, 0.0, %v3225
        %v3270 = vsel %vm3072, 0.0, %v3226
        %v3271 = vsel %vm3073, 0.0, %v3227
        %v3272 = vsel %vm3074, 0.0, %v3228
        %v3273 = vsel %vm3075, 0.0, %v3229
        %v3274 = vsel %vm3076, 0.0, %v3230
        %v3275 = vsel %vm3077, 0.0, %v3231
        %v3276 = vsel %vm3078, 0.0, %v3232
        %v3277 = vsel %vm3079, 0.0, %v3233
        %v3278 = vsel %vm3080, 0.0, %v3234
        %v3279 = vsel %vm3081, 0.0, %v3235
        %v3280 = vsel %vm3082, 0.0, %v3236
        %v3281 = vsel %vm3083, 0.0, %v3237
        %v3304 = vcombine.low %v3260, %v3261
        %v3305 = vcombine.low %v3262, %v3263
        %v3306 = vcombine.low %v3264, %v3265
        %v3307 = vcombine.low %v3266, %v3267
        %v3308 = vcombine.low %v3268, %v3269
        %v3309 = vcombine.low %v3270, %v3271
        %v3310 = vcombine.low %v3272, %v3273
        %v3311 = vcombine.low %v3274, %v3275
        %v3312 = vcombine.low %v3276, %v3277
        %v3313 = vcombine.low %v3278, %v3279
        %v3314 = vcombine.low %v3280, %v3281
        %s3326 = scalar_lea.vmem %s400, 528
        %3327 = vst [vmem:[%s3326] sm:$0x77] %v3304
        %3328 = vst [vmem:[%s3326 + $0x8] sm:$0x77] %v3305
        %3329 = vst [vmem:[%s3326 + $0x10] sm:$0x77] %v3306
        %3330 = vst [vmem:[%s3326 + $0x18] sm:$0x77] %v3307
        %3331 = vst [vmem:[%s3326 + $0x20] sm:$0x77] %v3308
        %3332 = vst [vmem:[%s3326 + $0x28] sm:$0x77] %v3309
        %3333 = vst [vmem:[%s3326 + $0x30] sm:$0x77] %v3310
        %3334 = vst [vmem:[%s3326 + $0x38] sm:$0x77] %v3311
        %3335 = vst [vmem:[%s3326 + $0x40] sm:$0x77] %v3312
        %3336 = vst [vmem:[%s3326 + $0x48] sm:$0x77] %v3313
        %3337 = vst.msk [vmem:[%s3326 + $0x50] sm:$0x77] %vm2208, %v3314
        %vm3338 = vcmp.gt.f32.partialorder %v1509, 0.20067069
        %vm3339 = vcmp.gt.f32.partialorder %v1511, 0.20067069
        %vm3340 = vcmp.gt.f32.partialorder %v1562, 0.20067069
        %vm3341 = vcmp.gt.f32.partialorder %v1564, 0.20067069
        %vm3342 = vcmp.gt.f32.partialorder %v1615, 0.20067069
        %vm3343 = vcmp.gt.f32.partialorder %v1617, 0.20067069
        %vm3344 = vcmp.gt.f32.partialorder %v1668, 0.20067069
        %vm3345 = vcmp.gt.f32.partialorder %v1670, 0.20067069
        %vm3346 = vcmp.gt.f32.partialorder %v1721, 0.20067069
        %vm3347 = vcmp.gt.f32.partialorder %v1723, 0.20067069
        %vm3348 = vcmp.gt.f32.partialorder %v1774, 0.20067069
        %vm3349 = vcmp.gt.f32.partialorder %v1776, 0.20067069
        %vm3350 = vcmp.gt.f32.partialorder %v1827, 0.20067069
        %vm3351 = vcmp.gt.f32.partialorder %v1829, 0.20067069
        %vm3352 = vcmp.gt.f32.partialorder %v1880, 0.20067069
        %vm3353 = vcmp.gt.f32.partialorder %v1882, 0.20067069
        %vm3354 = vcmp.gt.f32.partialorder %v1933, 0.20067069
        %vm3355 = vcmp.gt.f32.partialorder %v1935, 0.20067069
        %vm3356 = vcmp.gt.f32.partialorder %v1986, 0.20067069
        %vm3357 = vcmp.gt.f32.partialorder %v1988, 0.20067069
        %vm3358 = vcmp.gt.f32.partialorder %v2039, 0.20067069
        %vm3359 = vcmp.gt.f32.partialorder %v2041, 0.20067069
        %v3360 = vsel %vm3338, 1, 0
        %v3361 = vsel %vm3339, 1, 0
        %v3362 = vsel %vm3340, 1, 0
        %v3363 = vsel %vm3341, 1, 0
        %v3364 = vsel %vm3342, 1, 0
        %v3365 = vsel %vm3343, 1, 0
        %v3366 = vsel %vm3344, 1, 0
        %v3367 = vsel %vm3345, 1, 0
        %v3368 = vsel %vm3346, 1, 0
        %v3369 = vsel %vm3347, 1, 0
        %v3370 = vsel %vm3348, 1, 0
        %v3371 = vsel %vm3349, 1, 0
        %v3372 = vsel %vm3350, 1, 0
        %v3373 = vsel %vm3351, 1, 0
        %v3374 = vsel %vm3352, 1, 0
        %v3375 = vsel %vm3353, 1, 0
        %v3376 = vsel %vm3354, 1, 0
        %v3377 = vsel %vm3355, 1, 0
        %v3378 = vsel %vm3356, 1, 0
        %v3379 = vsel %vm3357, 1, 0
        %v3380 = vsel %vm3358, 1, 0
        %v3381 = vsel %vm3359, 1, 0
        %v3382 = vcvt.s32.f32 %v3360
        %v3383 = vcvt.s32.f32 %v3361
        %v3384 = vcvt.s32.f32 %v3362
        %v3385 = vcvt.s32.f32 %v3363
        %v3386 = vcvt.s32.f32 %v3364
        %v3387 = vcvt.s32.f32 %v3365
        %v3388 = vcvt.s32.f32 %v3366
        %v3389 = vcvt.s32.f32 %v3367
        %v3390 = vcvt.s32.f32 %v3368
        %v3391 = vcvt.s32.f32 %v3369
        %v3392 = vcvt.s32.f32 %v3370
        %v3393 = vcvt.s32.f32 %v3371
        %v3394 = vcvt.s32.f32 %v3372
        %v3395 = vcvt.s32.f32 %v3373
        %v3396 = vcvt.s32.f32 %v3374
        %v3397 = vcvt.s32.f32 %v3375
        %v3398 = vcvt.s32.f32 %v3376
        %v3399 = vcvt.s32.f32 %v3377
        %v3400 = vcvt.s32.f32 %v3378
        %v3401 = vcvt.s32.f32 %v3379
        %v3402 = vcvt.s32.f32 %v3380
        %v3403 = vcvt.s32.f32 %v3381
        %v3426 = vcombine.low %v3382, %v3383
        %v3427 = vcombine.low %v3384, %v3385
        %v3428 = vcombine.low %v3386, %v3387
        %v3429 = vcombine.low %v3388, %v3389
        %v3430 = vcombine.low %v3390, %v3391
        %v3431 = vcombine.low %v3392, %v3393
        %v3432 = vcombine.low %v3394, %v3395
        %v3433 = vcombine.low %v3396, %v3397
        %v3434 = vcombine.low %v3398, %v3399
        %v3435 = vcombine.low %v3400, %v3401
        %v3436 = vcombine.low %v3402, %v3403
        %s3448 = scalar_lea.vmem %s400, 616
        %3449 = vst [vmem:[%s3448] sm:$0x77] %v3426
        %3450 = vst [vmem:[%s3448 + $0x8] sm:$0x77] %v3427
        %3451 = vst [vmem:[%s3448 + $0x10] sm:$0x77] %v3428
        %3452 = vst [vmem:[%s3448 + $0x18] sm:$0x77] %v3429
        %3453 = vst [vmem:[%s3448 + $0x20] sm:$0x77] %v3430
        %3454 = vst [vmem:[%s3448 + $0x28] sm:$0x77] %v3431
        %3455 = vst [vmem:[%s3448 + $0x30] sm:$0x77] %v3432
        %3456 = vst [vmem:[%s3448 + $0x38] sm:$0x77] %v3433
        %3457 = vst [vmem:[%s3448 + $0x40] sm:$0x77] %v3434
        %3458 = vst [vmem:[%s3448 + $0x48] sm:$0x77] %v3435
        %3459 = vst.msk [vmem:[%s3448 + $0x50] sm:$0x77] %vm2208, %v3436
        %p3460 = scmp.lt.s32.totalorder %s25, 1
        %s3461 = scalar_select %p3460, %s25, 1
        %s3462 = smul.addr %s3461, 16
        %s3463 = smul.addr %s3462, 4
        %s3464 = scalar_lea.vmem %s5, %s3463
        %p3465 = scmp.lt.s32.totalorder %s25, 1
        %s3466 = scalar_select %p3465, %s25, 1
        %s3467 = smul.addr %s3466, 48
        %s3468 = smul.addr %s3467, 4
        %s3469 = scalar_lea.vmem %s6, %s3468
        %p3470 = scmp.lt.s32.totalorder %s25, 1
        %s3471 = scalar_select %p3470, %s25, 1
        %s3472 = smul.addr %s3471, 176
        %s3473 = smul.addr %s3472, 4
        %s3474 = scalar_lea.vmem %s7, %s3473
        // Predicated region
        $region53: #{tpu_custom_call.1} parent=39 // pred_check
          %p3475 = pneg %p163
        $region54: #{tpu_custom_call.1} parent=39 // pred_check_branch
          %3477 = sbr.rel (%p3475) target = $region56
        $region55: #{tpu_custom_call.1} parent=39 // pred_region
          _
        $region56: #{tpu_custom_call.1} parent=39 // pred_fallthru
          _
        // Predicated region
        $region57: #{tpu_custom_call.1} parent=39 // pred_check
          %p3478 = pneg %p189
        $region58: #{tpu_custom_call.1} parent=39 // pred_check_branch
          %3480 = sbr.rel (%p3478) target = $region60
        $region59: #{tpu_custom_call.1} parent=39 // pred_region
          _
        $region60: #{tpu_custom_call.1} parent=39 // pred_fallthru
          _
        // Predicated region
        $region61: #{tpu_custom_call.1} parent=39 // pred_check
          %p3481 = pneg %p215
        $region62: #{tpu_custom_call.1} parent=39 // pred_check_branch
          %3483 = sbr.rel (%p3481) target = $region64
        $region63: #{tpu_custom_call.1} parent=39 // pred_region
          _
        $region64: #{tpu_custom_call.1} parent=39 // pred_fallthru
          _
      $region40: #{tpu_custom_call.1} parent=5 // pred_fallthru
        _
      %p3484 = scmp.le.s32.totalorder 2, %s20
      // Predicated region
      $region65: #{tpu_custom_call.1} parent=5 // pred_check
        %p3485 = pneg %p3484
      $region66: #{tpu_custom_call.1} parent=5 // pred_check_branch
        %3487 = sbr.rel (%p3485) target = $region68
      $region67: #{tpu_custom_call.1} parent=5 // pred_region
        %s3488 = ssub.s32 %s20, 2
        // Predicated region
        $region69: #{tpu_custom_call.1} parent=67 // pred_check
          %p3489 = pneg %p169
        $region70: #{tpu_custom_call.1} parent=67 // pred_check_branch
          %3491 = sbr.rel (%p3489) target = $region72
        $region71: #{tpu_custom_call.1} parent=67 // pred_region
          %p3492 = scmp.lt.s32.totalorder %s26, 1
          %s3493 = scalar_select %p3492, %s26, 1
          %s3494 = smul.addr %s3493, 16
          %s3495 = smul.addr %s3494, 4
          %s3496 = scalar_lea.vmem %s5, %s3495
        $region72: #{tpu_custom_call.1} parent=67 // pred_fallthru
          _
        // Predicated region
        $region73: #{tpu_custom_call.1} parent=67 // pred_check
          %p3497 = pneg %p195
        $region74: #{tpu_custom_call.1} parent=67 // pred_check_branch
          %3499 = sbr.rel (%p3497) target = $region76
        $region75: #{tpu_custom_call.1} parent=67 // pred_region
          %p3500 = scmp.lt.s32.totalorder %s26, 1
          %s3501 = scalar_select %p3500, %s26, 1
          %s3502 = smul.addr %s3501, 48
          %s3503 = smul.addr %s3502, 4
          %s3504 = scalar_lea.vmem %s6, %s3503
        $region76: #{tpu_custom_call.1} parent=67 // pred_fallthru
          _
        // Predicated region
        $region77: #{tpu_custom_call.1} parent=67 // pred_check
          %p3505 = pneg %p221
        $region78: #{tpu_custom_call.1} parent=67 // pred_check_branch
          %3507 = sbr.rel (%p3505) target = $region80
        $region79: #{tpu_custom_call.1} parent=67 // pred_region
          %p3508 = scmp.lt.s32.totalorder %s26, 1
          %s3509 = scalar_select %p3508, %s26, 1
          %s3510 = smul.addr %s3509, 176
          %s3511 = smul.addr %s3510, 4
          %s3512 = scalar_lea.vmem %s7, %s3511
        $region80: #{tpu_custom_call.1} parent=67 // pred_fallthru
          _
      $region68: #{tpu_custom_call.1} parent=5 // pred_fallthru
        _
    $region6: #{tpu_custom_call.1} parent=1 // loop_footer
      %s24 = sadd.s32 1, %s20
    $region7: #{tpu_custom_call.1} parent=1 // loop_footer_branch
      %19 = sbr.rel target = $region3
    $region8: #{tpu_custom_call.1} parent=1 // loop_exit
      _
    %3513 = vsyncpa [#allocation3], 1
    %s3514 = scalar_lea.sflag [#allocation3], 1
    %3515 = vsyncpa %s3514, 1
    %3516 = vsyncpa [#allocation5], 1
    %s3517 = scalar_lea.sflag [#allocation5], 1
    %3518 = vsyncpa %s3517, 1

</llo_original>
